<compile_context>
chip_gen: v6e
topology: v6e:2x2x1
jax: 0.10.0
libtpu: 0.0.40
codegen_flags: <defaults>
</compile_context>

<pallas_src>
import numpy as np
import jax
import jax.numpy as jnp
from jax.experimental import pallas as pl
from jax.experimental.pallas import tpu as pltpu


def _rope_kernel(ids_ref, scale_ref, cos_ref, sin_ref):
    # angle[s, j] = ids[s, axis_of_col_j] * inv_freq[j]; exactly one nonzero term per column.
    # MXU matmul (HIGHEST => ~f32-exact product) keeps the VPU free for the sin/cos work.
    angle = jnp.dot(
        ids_ref[...], scale_ref[...],
        preferred_element_type=jnp.float32,
        precision=jax.lax.Precision.HIGHEST,
    )
    cos_ref[...] = jnp.cos(angle)
    sin_ref[...] = jnp.sin(angle)


def _build_scale(theta, axes_dim, a_pad, d_pad):
    """(a_pad, d_pad) per-column inverse frequencies, fp64 host-side, zero off-axis."""
    scale = np.zeros((a_pad, d_pad), dtype=np.float64)
    off = 0
    for a, dim in enumerate(axes_dim):
        assert dim % 2 == 0
        exps = np.arange(0, dim, 2, dtype=np.float64)[: dim // 2] / dim
        inv_freq = 1.0 / (float(theta) ** exps)                 # (dim/2,)
        scale[a, off:off + dim] = np.repeat(inv_freq, 2)        # repeat_interleave(2)
        off += dim
    return jnp.asarray(scale, dtype=jnp.float32)


def flux_pos_embed(ids, *, theta, axes_dim, tile_s=2048):
    """Pallas implementation of FluxPosEmbed.forward.

    Args:
      ids: (S, n_axes) or (1, S, n_axes) position ids (int or float).
    Returns:
      (freqs_cos, freqs_sin), each (S, sum(axes_dim)) float32.
    """
    ids = jnp.asarray(ids)
    if ids.ndim == 3:
        if ids.shape[0] != 1:
            raise ValueError("FluxPosEmbed expects batch-1 (or 2-D) ids; got "
                             f"shape {ids.shape}")
        ids = ids[0]                              # matches torch .squeeze() for batch-1 ids
    S, n_axes = ids.shape
    assert n_axes == len(axes_dim)

    D = int(sum(axes_dim))
    D_pad = ((D + 127) // 128) * 128              # lane-dense, unmasked stores (Flux: D=128 -> no pad)
    A_pad = ((n_axes + 7) // 8) * 8               # full sublane of K for the MXU matmul (zero rows -> exact)

    ids_f = ids.astype(jnp.float32)
    if A_pad != n_axes:
        # Tiny pad (S x (A_pad - n_axes) x 4B), negligible vs the two S x D outputs.
        ids_f = jnp.pad(ids_f, ((0, S - S), (0, A_pad - n_axes))) if False else \
            jnp.pad(ids_f, ((0, 0), (0, A_pad - n_axes)))

    # Row tiling: big tiles amortize the ~0.35us per-grid-step overhead.  Clamp so the
    # "parallel" grid axis has >= 2 steps when possible (v7x megacore uses both TCs), and
    # keep double-buffered output tiles (2 outs x 2 bufs x tile_s x D_pad x 4B) under the
    # v5e default scoped-VMEM limit.
    half_rows = (((S + 1) // 2) + 7) // 8 * 8
    vmem_cap_rows = max(8, ((12 * 1024 * 1024) // (16 * D_pad)) // 8 * 8)
    tile_s = int(max(8, min(int(tile_s), half_rows, vmem_cap_rows)))
    tile_s = (tile_s // 8) * 8
    grid_s = pl.cdiv(S, tile_s)

    scale = _build_scale(theta, axes_dim, A_pad, D_pad)

    cost = pl.CostEstimate(
        flops=2 * S * A_pad * D_pad,
        transcendentals=2 * S * D_pad,
        bytes_accessed=4 * (S * A_pad + A_pad * D_pad + 2 * S * D_pad),
    )

    cos_p, sin_p = pl.pallas_call(
        _rope_kernel,
        out_shape=(
            jax.ShapeDtypeStruct((S, D_pad), jnp.float32),
            jax.ShapeDtypeStruct((S, D_pad), jnp.float32),
        ),
        grid_spec=pltpu.PrefetchScalarGridSpec(
            num_scalar_prefetch=0,
            grid=(grid_s,),
            in_specs=[
                pl.BlockSpec((tile_s, A_pad), lambda i: (i, 0)),   # ids row tile
                pl.BlockSpec((A_pad, D_pad), lambda i: (0, 0)),    # freq table (resident)
            ],
            out_specs=[
                pl.BlockSpec((tile_s, D_pad), lambda i: (i, 0)),   # cos
                pl.BlockSpec((tile_s, D_pad), lambda i: (i, 0)),   # sin
            ],
        ),
        compiler_params=pltpu.CompilerParams(
            dimension_semantics=("parallel",)),                    # v7x: shard across both TCs
        cost_estimate=cost,
    )(ids_f, scale)

    if D_pad != D:   # Flux default (sum(axes_dim) multiple of 128): dead code, no extra HBM pass.
        cos_p = cos_p[:, :D]
        sin_p = sin_p[:, :D]
    return cos_p, sin_p


def _reference_np(ids, theta, axes_dim):
    """numpy float64 reference mirroring the PyTorch forward."""
    ids = np.asarray(ids, dtype=np.float64)
    cos_out, sin_out = [], []
    for i, dim in enumerate(axes_dim):
        exps = np.arange(0, dim, 2, dtype=np.float64)[: dim // 2] / dim
        inv_freq = 1.0 / (float(theta) ** exps)
        f = np.outer(ids[:, i], inv_freq)                           # (S, dim/2)
        cos_out.append(np.repeat(np.cos(f), 2, axis=1))
        sin_out.append(np.repeat(np.sin(f), 2, axis=1))
    return (np.concatenate(cos_out, -1).astype(np.float32),
            np.concatenate(sin_out, -1).astype(np.float32))


if __name__ == "__main__":
    theta = 10000
    axes_dim = [16, 56, 56]      # Flux defaults; sum = 128
    S = 200                      # deliberately not a multiple of the row tile

    key = jax.random.PRNGKey(0)
    # Flux-style ids: small non-negative position indices per axis.
    ids = jax.random.randint(key, (S, len(axes_dim)), 0, 48).astype(jnp.float32)

    cos, sin = flux_pos_embed(ids, theta=theta, axes_dim=axes_dim)
    cos, sin = jax.block_until_ready((cos, sin))

    ref_cos, ref_sin = _reference_np(np.asarray(ids), theta, axes_dim)
    assert cos.shape == (S, sum(axes_dim)) and sin.shape == (S, sum(axes_dim))
    assert np.allclose(np.asarray(cos), ref_cos, rtol=1e-4, atol=2e-4), "cos mismatch"
    assert np.allclose(np.asarray(sin), ref_sin, rtol=1e-4, atol=2e-4), "sin mismatch"

    print("KERNEL_OK")
</pallas_src>

<mosaic_0001>
module attributes {stable_mosaic.version = 11 : i64} {
  func.func @_rope_kernel(%arg0: i32, %arg1: memref<104x8xf32, #tpu.memory_space<vmem>>, %arg2: memref<8x128xf32, #tpu.memory_space<vmem>>, %arg3: memref<104x128xf32, #tpu.memory_space<vmem>>, %arg4: memref<104x128xf32, #tpu.memory_space<vmem>>) attributes {dimension_semantics = [#tpu.dimension_semantics<parallel>], iteration_bounds = array<i64: 2>, scalar_prefetch = 0 : i64, scratch_operands = 0 : i64, tpu.core_type = #tpu.core_type<tc>, window_params = [{transform_indices = @transform_0, window_bounds = array<i64: 104, 8>}, {pipeline_mode = #tpu.pipeline_mode<synchronous>, transform_indices = @transform_1, window_bounds = array<i64: 8, 128>}, {transform_indices = @transform_2, window_bounds = array<i64: 104, 128>}, {transform_indices = @transform_3, window_bounds = array<i64: 104, 128>}]} {
    %c0 = arith.constant 0 : index
    %c0_0 = arith.constant 0 : index
    %0 = vector.load %arg1[%c0, %c0_0] : memref<104x8xf32, #tpu.memory_space<vmem>>, vector<104x8xf32>
    %c0_1 = arith.constant 0 : index
    %c0_2 = arith.constant 0 : index
    %1 = vector.load %arg2[%c0_1, %c0_2] : memref<8x128xf32, #tpu.memory_space<vmem>>, vector<8x128xf32>
    %cst = arith.constant dense<0.000000e+00> : vector<104x128xf32>
    %2 = tpu.matmul %0, %1, %cst {dimension_numbers = #tpu.dot_dimension_numbers<[1], [0], [0], [1], [0, 0, 1, 1], [], []>, precision = #tpu.contract_precision<fp32>} : vector<104x8xf32>, vector<8x128xf32>, vector<104x128xf32> -> vector<104x128xf32>
    %3 = math.cos %2 : vector<104x128xf32>
    %c0_3 = arith.constant 0 : index
    %c0_4 = arith.constant 0 : index
    %4 = vector.load %arg3[%c0_3, %c0_4] : memref<104x128xf32, #tpu.memory_space<vmem>>, vector<104x128xf32>
    tpu.vector_store %arg3[%c0_3, %c0_4], %3 {strides = array<i32>} : memref<104x128xf32, #tpu.memory_space<vmem>>, vector<104x128xf32>,
    %5 = math.sin %2 : vector<104x128xf32>
    %c0_5 = arith.constant 0 : index
    %c0_6 = arith.constant 0 : index
    %6 = vector.load %arg4[%c0_5, %c0_6] : memref<104x128xf32, #tpu.memory_space<vmem>>, vector<104x128xf32>
    tpu.vector_store %arg4[%c0_5, %c0_6], %5 {strides = array<i32>} : memref<104x128xf32, #tpu.memory_space<vmem>>, vector<104x128xf32>,
    return
  }
  func.func @transform_0(%arg0: i32) -> (i32, i32) {
    %c0_i32 = arith.constant 0 : i32
    %c0_i32_0 = arith.constant 0 : i32
    return %arg0, %c0_i32 : i32, i32
  }
  func.func @transform_1(%arg0: i32) -> (i32, i32) {
    %c0_i32 = arith.constant 0 : i32
    %c0_i32_0 = arith.constant 0 : i32
    %c0_i32_1 = arith.constant 0 : i32
    return %c0_i32, %c0_i32_0 : i32, i32
  }
  func.func @transform_2(%arg0: i32) -> (i32, i32) {
    %c0_i32 = arith.constant 0 : i32
    %c0_i32_0 = arith.constant 0 : i32
    return %arg0, %c0_i32 : i32, i32
  }
  func.func @transform_3(%arg0: i32) -> (i32, i32) {
    %c0_i32 = arith.constant 0 : i32
    %c0_i32_0 = arith.constant 0 : i32
    return %arg0, %c0_i32 : i32, i32
  }
}

</mosaic_0001>

<llo_original>
// kernel: tpu_custom_call.1
$region0: #{tpu_custom_call.1}
  #allocation0 [shape = 'u32[]', space=smem, size = 0x4, offset = 0x4, fixed_abs, tag = 'smem constant byte address 0x4 - core index']
  #allocation1 [shape = 'u32[144,128]{1,0:T(1,128)}', space=vmem, size = 0x12000, scoped, tag = 'internal scratch']
  %s0 = inlined_call_operand.vmem [shape: f32[200,8], index: 0, kind: input, shape index: {}]
  %s1 = inlined_call_operand.vmem [shape: f32[8,128], index: 1, kind: input, shape index: {}]
  %s2 = inlined_call_operand.hbm [shape: f32[200,128], index: 2, kind: output, shape index: {0}]
  %s3 = inlined_call_operand.hbm [shape: f32[200,128], index: 3, kind: output, shape index: {1}]
  %4 = xla_tuple %s2, %s3
  %s5 = sld [smem:[#allocation0]]
  $region49: #{tpu_custom_call.1} parent=0
    _
  %s7 = ssub.s32 1, %s5
  %s8 = scalar_select 0, %s7, %s5
  $region1: #{tpu_custom_call.1} parent=0
    #allocation2 [shape = 'u8[106496]{0}', space=vmem, size = 0x1a000, scoped, tag = 'output window, operand 0']
    #allocation3 [shape = 's32[2]{0}', space=sflag, size = 0x8, scoped, tag = 'scoped memory for tpu_custom_call.1']
    #allocation4 [shape = 'u8[106496]{0}', space=vmem, size = 0x1a000, scoped, tag = 'output window, operand 1']
    #allocation5 [shape = 's32[2]{0}', space=sflag, size = 0x8, scoped, tag = 'scoped memory for tpu_custom_call.1']
    %9 = vsyncpa [#allocation3], 0
    %s10 = scalar_lea.sflag [#allocation3], 1
    %11 = vsyncpa %s10, 0
    %12 = vsyncpa [#allocation5], 0
    %s13 = scalar_lea.sflag [#allocation5], 1
    %14 = vsyncpa %s13, 0
    loop: start=0, step=1, limit=4
    $region2: #{tpu_custom_call.1} parent=1 // loop_pre_header
      _
    $region3: #{tpu_custom_call.1} parent=1 // loop_header
      %s16 = sphi 0, %s20
      %p17 = scmp.ge.s32.totalorder %s16, 4
      %s26 = sphi 0, %s28
      %s29 = sphi 0, %s26
      %s30 = sphi 0, %s29
      %s46 = sphi 0, %s30
      %s50 = sphi 0, %s50
      %s52 = sphi 0, %s50
      %s53 = sphi 0, %s52
      %s67 = sphi 0, %s53
      %s73 = sphi 0, %s75
      %s76 = sphi 0, %s73
      %s77 = sphi 0, %s76
      %s93 = sphi 0, %s77
      %s99 = sphi 0, %s101
      %s102 = sphi 0, %s99
      %s103 = sphi 0, %s102
      %s119 = sphi 0, %s103
    $region4: #{tpu_custom_call.1} parent=1 // loop_header_branch
      %19 = sbr.rel (%p17) target = $region8
    $region5: #{tpu_custom_call.1} parent=1 // loop_body
      %s21 = ssub.s32 %s16, 1
      %s22 = ssub.s32 %s16, 2
      %s23 = sadd.s32 %s16, 1
      %s24 = ssub.s32 %s16, %s23
      %p25 = scmp.eq.s32.totalorder %s24, 0
      %s27 = sadd.s32 %s26, 1
      %s28 = scalar_select %p25, %s26, %s27
      %p31 = pneg %p25
      %p32 = scmp.eq.s32.totalorder %s16, 1
      %p33 = por %p31, %p32
      %p34 = scmp.ne.s32.totalorder %s26, %s29
      %p35 = scmp.eq.s32.totalorder %s16, 0
      %p36 = por %p34, %p35
      %p37 = scmp.ne.s32.totalorder %s26, %s29
      %p38 = scmp.eq.s32.totalorder %s21, 1
      %p39 = por %p37, %p38
      %p40 = scmp.ne.s32.totalorder %s29, %s30
      %p41 = scmp.eq.s32.totalorder %s21, 0
      %p42 = por %p40, %p41
      %p43 = scmp.ne.s32.totalorder %s29, %s30
      %p44 = scmp.eq.s32.totalorder %s22, 1
      %p45 = por %p43, %p44
      %p47 = scmp.ne.s32.totalorder %s30, %s46
      %p48 = scmp.eq.s32.totalorder %s22, 0
      %p49 = por %p47, %p48
      %s51 = sadd.s32 %s50, 1
      %p54 = scmp.eq.s32.totalorder %s16, 1
      %p55 = scmp.ne.s32.totalorder %s50, %s52
      %p56 = scmp.eq.s32.totalorder %s16, 0
      %p57 = por %p55, %p56
      %p58 = scmp.ne.s32.totalorder %s50, %s52
      %p59 = scmp.eq.s32.totalorder %s21, 1
      %p60 = por %p58, %p59
      %p61 = scmp.ne.s32.totalorder %s52, %s53
      %p62 = scmp.eq.s32.totalorder %s21, 0
      %p63 = por %p61, %p62
      %p64 = scmp.ne.s32.totalorder %s52, %s53
      %p65 = scmp.eq.s32.totalorder %s22, 1
      %p66 = por %p64, %p65
      %p68 = scmp.ne.s32.totalorder %s53, %s67
      %p69 = scmp.eq.s32.totalorder %s22, 0
      %p70 = por %p68, %p69
      %s71 = ssub.s32 %s16, %s23
      %p72 = scmp.eq.s32.totalorder %s71, 0
      %s74 = sadd.s32 %s73, 1
      %s75 = scalar_select %p72, %s73, %s74
      %p78 = pneg %p72
      %p79 = scmp.eq.s32.totalorder %s16, 1
      %p80 = por %p78, %p79
      %p81 = scmp.ne.s32.totalorder %s73, %s76
      %p82 = scmp.eq.s32.totalorder %s16, 0
      %p83 = por %p81, %p82
      %p84 = scmp.ne.s32.totalorder %s73, %s76
      %p85 = scmp.eq.s32.totalorder %s21, 1
      %p86 = por %p84, %p85
      %p87 = scmp.ne.s32.totalorder %s76, %s77
      %p88 = scmp.eq.s32.totalorder %s21, 0
      %p89 = por %p87, %p88
      %p90 = scmp.ne.s32.totalorder %s76, %s77
      %p91 = scmp.eq.s32.totalorder %s22, 1
      %p92 = por %p90, %p91
      %p94 = scmp.ne.s32.totalorder %s77, %s93
      %p95 = scmp.eq.s32.totalorder %s22, 0
      %p96 = por %p94, %p95
      %s97 = ssub.s32 %s16, %s23
      %p98 = scmp.eq.s32.totalorder %s97, 0
      %s100 = sadd.s32 %s99, 1
      %s101 = scalar_select %p98, %s99, %s100
      %p104 = pneg %p98
      %p105 = scmp.eq.s32.totalorder %s16, 1
      %p106 = por %p104, %p105
      %p107 = scmp.ne.s32.totalorder %s99, %s102
      %p108 = scmp.eq.s32.totalorder %s16, 0
      %p109 = por %p107, %p108
      %p110 = scmp.ne.s32.totalorder %s99, %s102
      %p111 = scmp.eq.s32.totalorder %s21, 1
      %p112 = por %p110, %p111
      %p113 = scmp.ne.s32.totalorder %s102, %s103
      %p114 = scmp.eq.s32.totalorder %s21, 0
      %p115 = por %p113, %p114
      %p116 = scmp.ne.s32.totalorder %s102, %s103
      %p117 = scmp.eq.s32.totalorder %s22, 1
      %p118 = por %p116, %p117
      %p120 = scmp.ne.s32.totalorder %s103, %s119
      %p121 = scmp.eq.s32.totalorder %s22, 0
      %p122 = por %p120, %p121
      %p123 = scmp.le.s32.totalorder 1, %s16
      %p124 = scmp.lt.s32.totalorder %s16, 3
      %p125 = pnand %p123, %p124
      %p126 = pneg %p125
      // Predicated region
      $region9: #{tpu_custom_call.1} parent=5 // pred_check
        _
      $region10: #{tpu_custom_call.1} parent=5 // pred_check_branch
        %128 = sbr.rel (%p125) target = $region12
      $region11: #{tpu_custom_call.1} parent=5 // pred_region
        %s129 = ssub.s32 %s16, 1
        // Predicated region
        $region13: #{tpu_custom_call.1} parent=11 // pred_check
          %p130 = pneg %p63
        $region14: #{tpu_custom_call.1} parent=11 // pred_check_branch
          %132 = sbr.rel (%p130) target = $region16
        $region15: #{tpu_custom_call.1} parent=11 // pred_region
          _
        $region16: #{tpu_custom_call.1} parent=11 // pred_fallthru
          _
      $region12: #{tpu_custom_call.1} parent=5 // pred_fallthru
        _
      %p133 = scmp.lt.s32.totalorder %s16, 2
      // Predicated region
      $region17: #{tpu_custom_call.1} parent=5 // pred_check
        %p134 = pneg %p133
      $region18: #{tpu_custom_call.1} parent=5 // pred_check_branch
        %136 = sbr.rel (%p134) target = $region20
      $region19: #{tpu_custom_call.1} parent=5 // pred_region
        // Predicated region
        $region21: #{tpu_custom_call.1} parent=19 // pred_check
          %p137 = pneg %p36
        $region22: #{tpu_custom_call.1} parent=19 // pred_check_branch
          %139 = sbr.rel (%p137) target = $region24
        $region23: #{tpu_custom_call.1} parent=19 // pred_region
          %s140 = smul.u32 13, %s16
          %s141 = ssub.s32 25, %s140
          %p142 = scmp.lt.s32.totalorder %s141, 13
          %s143 = scalar_select %p142, %s141, 13
          %s144 = smul.u32 128, %s143
          %p145 = scmp.lt.s32.totalorder %s140, 24
          %s146 = scalar_select %p145, %s140, 24
          %s147 = smul.addr %s146, 8
          %s148 = scalar_lea.vmem %s0, %s147
          %s149 = smul.u32 13, %s16
          %s150 = ssub.s32 25, %s149
          %p151 = scmp.lt.s32.totalorder %s150, 13
          %s152 = scalar_select %p151, %s150, 13
          %s153 = smul.u32 128, %s152
        $region24: #{tpu_custom_call.1} parent=19 // pred_fallthru
          _
      $region20: #{tpu_custom_call.1} parent=5 // pred_fallthru
        _
      %p154 = scmp.le.s32.totalorder 1, %s16
      %p155 = scmp.lt.s32.totalorder %s16, 3
      %p156 = pnand %p154, %p155
      %p157 = pneg %p156
      // Predicated region
      $region25: #{tpu_custom_call.1} parent=5 // pred_check
        _
      $region26: #{tpu_custom_call.1} parent=5 // pred_check_branch
        %159 = sbr.rel (%p156) target = $region28
      $region27: #{tpu_custom_call.1} parent=5 // pred_region
        %s160 = ssub.s32 %s16, 1
        %s161 = smul.u32 13, %s21
        %s162 = ssub.s32 25, %s161
        %p163 = scmp.lt.s32.totalorder %s162, 13
        %s164 = scalar_select %p163, %s162, 13
        %s165 = smul.u32 128, %s164
        %p166 = scmp.lt.s32.totalorder %s161, 24
        %s167 = scalar_select %p166, %s161, 24
        %s168 = smul.addr %s167, 8
        %s169 = scalar_lea.vmem %s0, %s168
        %p170 = pneg %p42
        %p171 = pneg %p39
        %p172 = pneg %p63
        %p173 = pneg %p60
        %p174 = pneg %p89
        %p175 = pneg %p86
        %s176 = sand.u32 %s76, 1
        %s177 = scalar_lea.sflag [#allocation3], %s176
        %s178 = sand.u32 %s76, 1
        %s179 = smul.addr %s178, 104
        %s180 = scalar_lea.vmem [#allocation2], %s179
        %p181 = pneg %p115
        %p182 = pneg %p112
        %s183 = sand.u32 %s102, 1
        %s184 = scalar_lea.sflag [#allocation5], %s183
        %s185 = sand.u32 %s102, 1
        %s186 = smul.addr %s185, 104
        %s187 = scalar_lea.vmem [#allocation4], %s186
        %s188 = smul.u32 13, %s21
        %s189 = ssub.s32 25, %s188
        %p190 = scmp.lt.s32.totalorder %s189, 13
        %s191 = scalar_select %p190, %s189, 13
        %s192 = smul.u32 128, %s191
        %p193 = scmp.lt.s32.totalorder %s188, 24
        %s194 = scalar_select %p193, %s188, 24
        %s195 = smul.addr %s194, 8
        %s196 = scalar_lea.vmem %s0, %s195
        %s197 = smul.u32 13, %s21
        %s198 = ssub.s32 25, %s197
        %p199 = scmp.lt.s32.totalorder %s198, 13
        %s200 = scalar_select %p199, %s198, 13
        %s201 = smul.u32 128, %s200
        %s202 = smul.u32 13, %s21
        %s203 = ssub.s32 25, %s202
        %p204 = scmp.lt.s32.totalorder %s203, 13
        %s205 = scalar_select %p204, %s203, 13
        %s206 = smul.u32 128, %s205
        %s207 = smul.u32 13, %s21
        %s208 = ssub.s32 25, %s207
        %p209 = scmp.lt.s32.totalorder %s208, 13
        %s210 = scalar_select %p209, %s208, 13
        %s211 = smul.u32 128, %s210
        %v212 = vld [vmem:[%s196] sm:$0xff]
        %v213 = vld [vmem:[%s196 + $0x8] sm:$0xff]
        %v214 = vld [vmem:[%s196 + $0x10] sm:$0xff]
        %v215 = vld [vmem:[%s196 + $0x18] sm:$0xff]
        %v216 = vld [vmem:[%s196 + $0x20] sm:$0xff]
        %v217 = vld [vmem:[%s196 + $0x28] sm:$0xff]
        %v218 = vld [vmem:[%s196 + $0x30] sm:$0xff]
        %v219 = vld [vmem:[%s196 + $0x38] sm:$0xff]
        %v220 = vld [vmem:[%s196 + $0x40] sm:$0xff]
        %v221 = vld [vmem:[%s196 + $0x48] sm:$0xff]
        %v222 = vld [vmem:[%s196 + $0x50] sm:$0xff]
        %v223 = vld [vmem:[%s196 + $0x58] sm:$0xff]
        %v224 = vld [vmem:[%s196 + $0x60] sm:$0xff]
        %v225 = vld [vmem:[%s1] sm:$0xff]
        %vm226 = vcmask 64512
        %v228 = vsel %vm226, %v212, 0
        %v231 = vsel %vm226, %v213, 0
        %v234 = vsel %vm226, %v214, 0
        %v237 = vsel %vm226, %v215, 0
        %v240 = vsel %vm226, %v216, 0
        %v243 = vsel %vm226, %v217, 0
        %v246 = vsel %vm226, %v218, 0
        %v249 = vsel %vm226, %v219, 0
        %v252 = vsel %vm226, %v220, 0
        %v255 = vsel %vm226, %v221, 0
        %v258 = vsel %vm226, %v222, 0
        %v261 = vsel %vm226, %v223, 0
        %v264 = vsel %vm226, %v224, 0
        %266 = vmatprep.subr.mxu0 0.0
        %267 = vmatpush1.msra.mxu0 0.0
        %268 = vmatprep.subr.mxu0 0.0
        %269 = vmatpush1.msra.mxu0 0.0
        %270 = vmatprep.subr.mxu0 0.0
        %271 = vmatpush1.msra.mxu0 0.0
        %272 = vmatprep.subr.mxu0 0.0
        %273 = vmatpush1.msra.mxu0 0.0
        %274 = vmatprep.subr.mxu0 0.0
        %275 = vmatpush1.msra.mxu0 0.0
        %276 = vmatprep.subr.mxu0 0.0
        %277 = vmatpush1.msra.mxu0 0.0
        %278 = vmatprep.subr.mxu0 0.0
        %279 = vmatpush1.msra.mxu0 0.0
        %280 = vmatprep.subr.mxu0 0.0
        %281 = vmatpush1.msra.mxu0 0.0
        %282 = vmatprep.subr.mxu0 0.0
        %283 = vmatpush1.msra.mxu0 0.0
        %284 = vmatprep.subr.mxu0 0.0
        %285 = vmatpush1.msra.mxu0 0.0
        %286 = vmatprep.subr.mxu0 0.0
        %287 = vmatpush1.msra.mxu0 0.0
        %288 = vmatprep.subr.mxu0 0.0
        %289 = vmatpush1.msra.mxu0 0.0
        %290 = vmatprep.subr.mxu0 0.0
        %291 = vmatpush1.msra.mxu0 0.0
        %292 = vmatprep.subr.mxu0 0.0
        %293 = vmatpush1.msra.mxu0 0.0
        %294 = vmatprep.subr.mxu0 0.0
        %295 = vmatpush1.msra.mxu0 0.0
        %296 = vmatprep.subr.mxu0 0.0
        %v297 = vand.u32 %v225, 4294901760
        %298 = vmatpush1.msra.mxu0 %v297
        %299 = vmatprep.subr.mxu0 0.0
        %300 = vmatpush2.msra.mxu0 0.0
        %301 = vmatprep.subr.mxu0 0.0
        %302 = vmatpush2.msra.mxu0 0.0
        %303 = vmatprep.subr.mxu0 0.0
        %304 = vmatpush2.msra.mxu0 0.0
        %305 = vmatprep.subr.mxu0 0.0
        %306 = vmatpush2.msra.mxu0 0.0
        %307 = vmatprep.subr.mxu0 0.0
        %308 = vmatpush2.msra.mxu0 0.0
        %309 = vmatprep.subr.mxu0 0.0
        %310 = vmatpush2.msra.mxu0 0.0
        %311 = vmatprep.subr.mxu0 0.0
        %312 = vmatpush2.msra.mxu0 0.0
        %313 = vmatprep.subr.mxu0 0.0
        %314 = vmatpush2.msra.mxu0 0.0
        %315 = vmatprep.subr.mxu0 0.0
        %316 = vmatpush2.msra.mxu0 0.0
        %317 = vmatprep.subr.mxu0 0.0
        %318 = vmatpush2.msra.mxu0 0.0
        %319 = vmatprep.subr.mxu0 0.0
        %320 = vmatpush2.msra.mxu0 0.0
        %321 = vmatprep.subr.mxu0 0.0
        %322 = vmatpush2.msra.mxu0 0.0
        %323 = vmatprep.subr.mxu0 0.0
        %324 = vmatpush2.msra.mxu0 0.0
        %325 = vmatprep.subr.mxu0 0.0
        %326 = vmatpush2.msra.mxu0 0.0
        %327 = vmatprep.subr.mxu0 0.0
        %328 = vmatpush2.msra.mxu0 0.0
        %329 = vmatprep.subr.mxu0 0.0
        %330 = vmatpush2.msra.mxu0 0.0
        %331 = vmatprep.mubr.f32.mxu0 0.0
        %v332 = vand.u32 %v228, 4294901760
        %v333 = vsub.f32 %v228, %v332
        %v334 = vand.u32 %v333, 4294901760
        %v335 = vsub.f32 %v333, %v334
        %v336 = vand.u32 %v335, 4294901760
        %337 = vmatmul.mubr.f32.gmra.mxu0 %v336
        %v338 = vpop.f32.mrf.mxu0
        %v339 = vadd.f32 0.0, %v338
        %v340 = vpop.f32.mrf.mxu0
        %341 = vmatprep.mubr.f32.mxu0 0.0
        %v342 = vand.u32 %v231, 4294901760
        %v343 = vsub.f32 %v231, %v342
        %v344 = vand.u32 %v343, 4294901760
        %v345 = vsub.f32 %v343, %v344
        %v346 = vand.u32 %v345, 4294901760
        %347 = vmatmul.mubr.f32.gmra.mxu0 %v346
        %v348 = vpop.f32.mrf.mxu0
        %v349 = vadd.f32 0.0, %v348
        %v350 = vpop.f32.mrf.mxu0
        %351 = vmatprep.mubr.f32.mxu0 0.0
        %v352 = vand.u32 %v234, 4294901760
        %v353 = vsub.f32 %v234, %v352
        %v354 = vand.u32 %v353, 4294901760
        %v355 = vsub.f32 %v353, %v354
        %v356 = vand.u32 %v355, 4294901760
        %357 = vmatmul.mubr.f32.gmra.mxu0 %v356
        %v358 = vpop.f32.mrf.mxu0
        %v359 = vadd.f32 0.0, %v358
        %v360 = vpop.f32.mrf.mxu0
        %361 = vmatprep.mubr.f32.mxu0 0.0
        %v362 = vand.u32 %v237, 4294901760
        %v363 = vsub.f32 %v237, %v362
        %v364 = vand.u32 %v363, 4294901760
        %v365 = vsub.f32 %v363, %v364
        %v366 = vand.u32 %v365, 4294901760
        %367 = vmatmul.mubr.f32.gmra.mxu0 %v366
        %v368 = vpop.f32.mrf.mxu0
        %v369 = vadd.f32 0.0, %v368
        %v370 = vpop.f32.mrf.mxu0
        %371 = vmatprep.mubr.f32.mxu0 0.0
        %v372 = vand.u32 %v240, 4294901760
        %v373 = vsub.f32 %v240, %v372
        %v374 = vand.u32 %v373, 4294901760
        %v375 = vsub.f32 %v373, %v374
        %v376 = vand.u32 %v375, 4294901760
        %377 = vmatmul.mubr.f32.gmra.mxu0 %v376
        %v378 = vpop.f32.mrf.mxu0
        %v379 = vadd.f32 0.0, %v378
        %v380 = vpop.f32.mrf.mxu0
        %381 = vmatprep.mubr.f32.mxu0 0.0
        %v382 = vand.u32 %v243, 4294901760
        %v383 = vsub.f32 %v243, %v382
        %v384 = vand.u32 %v383, 4294901760
        %v385 = vsub.f32 %v383, %v384
        %v386 = vand.u32 %v385, 4294901760
        %387 = vmatmul.mubr.f32.gmra.mxu0 %v386
        %v388 = vpop.f32.mrf.mxu0
        %v389 = vadd.f32 0.0, %v388
        %v390 = vpop.f32.mrf.mxu0
        %391 = vmatprep.mubr.f32.mxu0 0.0
        %v392 = vand.u32 %v246, 4294901760
        %v393 = vsub.f32 %v246, %v392
        %v394 = vand.u32 %v393, 4294901760
        %v395 = vsub.f32 %v393, %v394
        %v396 = vand.u32 %v395, 4294901760
        %397 = vmatmul.mubr.f32.gmra.mxu0 %v396
        %v398 = vpop.f32.mrf.mxu0
        %v399 = vadd.f32 0.0, %v398
        %v400 = vpop.f32.mrf.mxu0
        %401 = vmatprep.mubr.f32.mxu0 0.0
        %v402 = vand.u32 %v249, 4294901760
        %v403 = vsub.f32 %v249, %v402
        %v404 = vand.u32 %v403, 4294901760
        %v405 = vsub.f32 %v403, %v404
        %v406 = vand.u32 %v405, 4294901760
        %407 = vmatmul.mubr.f32.gmra.mxu0 %v406
        %v408 = vpop.f32.mrf.mxu0
        %v409 = vadd.f32 0.0, %v408
        %v410 = vpop.f32.mrf.mxu0
        %411 = vmatprep.mubr.f32.mxu0 0.0
        %v412 = vand.u32 %v252, 4294901760
        %v413 = vsub.f32 %v252, %v412
        %v414 = vand.u32 %v413, 4294901760
        %v415 = vsub.f32 %v413, %v414
        %v416 = vand.u32 %v415, 4294901760
        %417 = vmatmul.mubr.f32.gmra.mxu0 %v416
        %v418 = vpop.f32.mrf.mxu0
        %v419 = vadd.f32 0.0, %v418
        %v420 = vpop.f32.mrf.mxu0
        %421 = vmatprep.mubr.f32.mxu0 0.0
        %v422 = vand.u32 %v255, 4294901760
        %v423 = vsub.f32 %v255, %v422
        %v424 = vand.u32 %v423, 4294901760
        %v425 = vsub.f32 %v423, %v424
        %v426 = vand.u32 %v425, 4294901760
        %427 = vmatmul.mubr.f32.gmra.mxu0 %v426
        %v428 = vpop.f32.mrf.mxu0
        %v429 = vadd.f32 0.0, %v428
        %v430 = vpop.f32.mrf.mxu0
        %431 = vmatprep.mubr.f32.mxu0 0.0
        %v432 = vand.u32 %v258, 4294901760
        %v433 = vsub.f32 %v258, %v432
        %v434 = vand.u32 %v433, 4294901760
        %v435 = vsub.f32 %v433, %v434
        %v436 = vand.u32 %v435, 4294901760
        %437 = vmatmul.mubr.f32.gmra.mxu0 %v436
        %v438 = vpop.f32.mrf.mxu0
        %v439 = vadd.f32 0.0, %v438
        %v440 = vpop.f32.mrf.mxu0
        %441 = vmatprep.mubr.f32.mxu0 0.0
        %v442 = vand.u32 %v261, 4294901760
        %v443 = vsub.f32 %v261, %v442
        %v444 = vand.u32 %v443, 4294901760
        %v445 = vsub.f32 %v443, %v444
        %v446 = vand.u32 %v445, 4294901760
        %447 = vmatmul.mubr.f32.gmra.mxu0 %v446
        %v448 = vpop.f32.mrf.mxu0
        %v449 = vadd.f32 0.0, %v448
        %v450 = vpop.f32.mrf.mxu0
        %451 = vmatprep.mubr.f32.mxu0 0.0
        %v452 = vand.u32 %v264, 4294901760
        %v453 = vsub.f32 %v264, %v452
        %v454 = vand.u32 %v453, 4294901760
        %v455 = vsub.f32 %v453, %v454
        %v456 = vand.u32 %v455, 4294901760
        %457 = vmatmul.mubr.f32.gmra.mxu0 %v456
        %v458 = vpop.f32.mrf.mxu0
        %v459 = vadd.f32 0.0, %v458
        %v460 = vpop.f32.mrf.mxu0
        %461 = vdwg.mxu0
        %462 = vmatprep.subr.mxu0 0.0
        %463 = vmatpush1.msra.mxu0 0.0
        %464 = vmatprep.subr.mxu0 0.0
        %465 = vmatpush1.msra.mxu0 0.0
        %466 = vmatprep.subr.mxu0 0.0
        %467 = vmatpush1.msra.mxu0 0.0
        %468 = vmatprep.subr.mxu0 0.0
        %469 = vmatpush1.msra.mxu0 0.0
        %470 = vmatprep.subr.mxu0 0.0
        %471 = vmatpush1.msra.mxu0 0.0
        %472 = vmatprep.subr.mxu0 0.0
        %473 = vmatpush1.msra.mxu0 0.0
        %474 = vmatprep.subr.mxu0 0.0
        %475 = vmatpush1.msra.mxu0 0.0
        %476 = vmatprep.subr.mxu0 0.0
        %477 = vmatpush1.msra.mxu0 0.0
        %478 = vmatprep.subr.mxu0 0.0
        %479 = vmatpush1.msra.mxu0 0.0
        %480 = vmatprep.subr.mxu0 0.0
        %481 = vmatpush1.msra.mxu0 0.0
        %482 = vmatprep.subr.mxu0 0.0
        %483 = vmatpush1.msra.mxu0 0.0
        %484 = vmatprep.subr.mxu0 0.0
        %485 = vmatpush1.msra.mxu0 0.0
        %486 = vmatprep.subr.mxu0 0.0
        %487 = vmatpush1.msra.mxu0 0.0
        %488 = vmatprep.subr.mxu0 0.0
        %489 = vmatpush1.msra.mxu0 0.0
        %490 = vmatprep.subr.mxu0 0.0
        %491 = vmatpush1.msra.mxu0 0.0
        %492 = vmatprep.subr.mxu0 0.0
        %v493 = vand.u32 %v225, 4294901760
        %v494 = vsub.f32 %v225, %v493
        %v495 = vand.u32 %v494, 4294901760
        %v496 = vsub.f32 %v494, %v495
        %v497 = vand.u32 %v496, 4294901760
        %498 = vmatpush1.msra.mxu0 %v497
        %499 = vmatprep.subr.mxu0 0.0
        %500 = vmatpush2.msra.mxu0 0.0
        %501 = vmatprep.subr.mxu0 0.0
        %502 = vmatpush2.msra.mxu0 0.0
        %503 = vmatprep.subr.mxu0 0.0
        %504 = vmatpush2.msra.mxu0 0.0
        %505 = vmatprep.subr.mxu0 0.0
        %506 = vmatpush2.msra.mxu0 0.0
        %507 = vmatprep.subr.mxu0 0.0
        %508 = vmatpush2.msra.mxu0 0.0
        %509 = vmatprep.subr.mxu0 0.0
        %510 = vmatpush2.msra.mxu0 0.0
        %511 = vmatprep.subr.mxu0 0.0
        %512 = vmatpush2.msra.mxu0 0.0
        %513 = vmatprep.subr.mxu0 0.0
        %514 = vmatpush2.msra.mxu0 0.0
        %515 = vmatprep.subr.mxu0 0.0
        %516 = vmatpush2.msra.mxu0 0.0
        %517 = vmatprep.subr.mxu0 0.0
        %518 = vmatpush2.msra.mxu0 0.0
        %519 = vmatprep.subr.mxu0 0.0
        %520 = vmatpush2.msra.mxu0 0.0
        %521 = vmatprep.subr.mxu0 0.0
        %522 = vmatpush2.msra.mxu0 0.0
        %523 = vmatprep.subr.mxu0 0.0
        %524 = vmatpush2.msra.mxu0 0.0
        %525 = vmatprep.subr.mxu0 0.0
        %526 = vmatpush2.msra.mxu0 0.0
        %527 = vmatprep.subr.mxu0 0.0
        %528 = vmatpush2.msra.mxu0 0.0
        %529 = vmatprep.subr.mxu0 0.0
        %530 = vmatpush2.msra.mxu0 0.0
        %531 = vmatprep.mubr.f32.mxu0 0.0
        %v532 = vand.u32 %v228, 4294901760
        %533 = vmatmul.mubr.f32.gmra.mxu0 %v532
        %v534 = vpop.f32.mrf.mxu0
        %v535 = vadd.f32 %v339, %v534
        %v536 = vpop.f32.mrf.mxu0
        %537 = vmatprep.mubr.f32.mxu0 0.0
        %v538 = vand.u32 %v231, 4294901760
        %539 = vmatmul.mubr.f32.gmra.mxu0 %v538
        %v540 = vpop.f32.mrf.mxu0
        %v541 = vadd.f32 %v349, %v540
        %v542 = vpop.f32.mrf.mxu0
        %543 = vmatprep.mubr.f32.mxu0 0.0
        %v544 = vand.u32 %v234, 4294901760
        %545 = vmatmul.mubr.f32.gmra.mxu0 %v544
        %v546 = vpop.f32.mrf.mxu0
        %v547 = vadd.f32 %v359, %v546
        %v548 = vpop.f32.mrf.mxu0
        %549 = vmatprep.mubr.f32.mxu0 0.0
        %v550 = vand.u32 %v237, 4294901760
        %551 = vmatmul.mubr.f32.gmra.mxu0 %v550
        %v552 = vpop.f32.mrf.mxu0
        %v553 = vadd.f32 %v369, %v552
        %v554 = vpop.f32.mrf.mxu0
        %555 = vmatprep.mubr.f32.mxu0 0.0
        %v556 = vand.u32 %v240, 4294901760
        %557 = vmatmul.mubr.f32.gmra.mxu0 %v556
        %v558 = vpop.f32.mrf.mxu0
        %v559 = vadd.f32 %v379, %v558
        %v560 = vpop.f32.mrf.mxu0
        %561 = vmatprep.mubr.f32.mxu0 0.0
        %v562 = vand.u32 %v243, 4294901760
        %563 = vmatmul.mubr.f32.gmra.mxu0 %v562
        %v564 = vpop.f32.mrf.mxu0
        %v565 = vadd.f32 %v389, %v564
        %v566 = vpop.f32.mrf.mxu0
        %567 = vmatprep.mubr.f32.mxu0 0.0
        %v568 = vand.u32 %v246, 4294901760
        %569 = vmatmul.mubr.f32.gmra.mxu0 %v568
        %v570 = vpop.f32.mrf.mxu0
        %v571 = vadd.f32 %v399, %v570
        %v572 = vpop.f32.mrf.mxu0
        %573 = vmatprep.mubr.f32.mxu0 0.0
        %v574 = vand.u32 %v249, 4294901760
        %575 = vmatmul.mubr.f32.gmra.mxu0 %v574
        %v576 = vpop.f32.mrf.mxu0
        %v577 = vadd.f32 %v409, %v576
        %v578 = vpop.f32.mrf.mxu0
        %579 = vmatprep.mubr.f32.mxu0 0.0
        %v580 = vand.u32 %v252, 4294901760
        %581 = vmatmul.mubr.f32.gmra.mxu0 %v580
        %v582 = vpop.f32.mrf.mxu0
        %v583 = vadd.f32 %v419, %v582
        %v584 = vpop.f32.mrf.mxu0
        %585 = vmatprep.mubr.f32.mxu0 0.0
        %v586 = vand.u32 %v255, 4294901760
        %587 = vmatmul.mubr.f32.gmra.mxu0 %v586
        %v588 = vpop.f32.mrf.mxu0
        %v589 = vadd.f32 %v429, %v588
        %v590 = vpop.f32.mrf.mxu0
        %591 = vmatprep.mubr.f32.mxu0 0.0
        %v592 = vand.u32 %v258, 4294901760
        %593 = vmatmul.mubr.f32.gmra.mxu0 %v592
        %v594 = vpop.f32.mrf.mxu0
        %v595 = vadd.f32 %v439, %v594
        %v596 = vpop.f32.mrf.mxu0
        %597 = vmatprep.mubr.f32.mxu0 0.0
        %v598 = vand.u32 %v261, 4294901760
        %599 = vmatmul.mubr.f32.gmra.mxu0 %v598
        %v600 = vpop.f32.mrf.mxu0
        %v601 = vadd.f32 %v449, %v600
        %v602 = vpop.f32.mrf.mxu0
        %603 = vmatprep.mubr.f32.mxu0 0.0
        %v604 = vand.u32 %v264, 4294901760
        %605 = vmatmul.mubr.f32.gmra.mxu0 %v604
        %v606 = vpop.f32.mrf.mxu0
        %v607 = vadd.f32 %v459, %v606
        %v608 = vpop.f32.mrf.mxu0
        %609 = vdwg.mxu0
        %610 = vmatprep.subr.mxu0 0.0
        %611 = vmatpush1.msra.mxu0 0.0
        %612 = vmatprep.subr.mxu0 0.0
        %613 = vmatpush1.msra.mxu0 0.0
        %614 = vmatprep.subr.mxu0 0.0
        %615 = vmatpush1.msra.mxu0 0.0
        %616 = vmatprep.subr.mxu0 0.0
        %617 = vmatpush1.msra.mxu0 0.0
        %618 = vmatprep.subr.mxu0 0.0
        %619 = vmatpush1.msra.mxu0 0.0
        %620 = vmatprep.subr.mxu0 0.0
        %621 = vmatpush1.msra.mxu0 0.0
        %622 = vmatprep.subr.mxu0 0.0
        %623 = vmatpush1.msra.mxu0 0.0
        %624 = vmatprep.subr.mxu0 0.0
        %625 = vmatpush1.msra.mxu0 0.0
        %626 = vmatprep.subr.mxu0 0.0
        %627 = vmatpush1.msra.mxu0 0.0
        %628 = vmatprep.subr.mxu0 0.0
        %629 = vmatpush1.msra.mxu0 0.0
        %630 = vmatprep.subr.mxu0 0.0
        %631 = vmatpush1.msra.mxu0 0.0
        %632 = vmatprep.subr.mxu0 0.0
        %633 = vmatpush1.msra.mxu0 0.0
        %634 = vmatprep.subr.mxu0 0.0
        %635 = vmatpush1.msra.mxu0 0.0
        %636 = vmatprep.subr.mxu0 0.0
        %637 = vmatpush1.msra.mxu0 0.0
        %638 = vmatprep.subr.mxu0 0.0
        %639 = vmatpush1.msra.mxu0 0.0
        %640 = vmatprep.subr.mxu0 0.0
        %v641 = vand.u32 %v225, 4294901760
        %v642 = vsub.f32 %v225, %v641
        %643 = vmatpush1.msra.mxu0 %v642
        %644 = vmatprep.subr.mxu0 0.0
        %645 = vmatpush2.msra.mxu0 0.0
        %646 = vmatprep.subr.mxu0 0.0
        %647 = vmatpush2.msra.mxu0 0.0
        %648 = vmatprep.subr.mxu0 0.0
        %649 = vmatpush2.msra.mxu0 0.0
        %650 = vmatprep.subr.mxu0 0.0
        %651 = vmatpush2.msra.mxu0 0.0
        %652 = vmatprep.subr.mxu0 0.0
        %653 = vmatpush2.msra.mxu0 0.0
        %654 = vmatprep.subr.mxu0 0.0
        %655 = vmatpush2.msra.mxu0 0.0
        %656 = vmatprep.subr.mxu0 0.0
        %657 = vmatpush2.msra.mxu0 0.0
        %658 = vmatprep.subr.mxu0 0.0
        %659 = vmatpush2.msra.mxu0 0.0
        %660 = vmatprep.subr.mxu0 0.0
        %661 = vmatpush2.msra.mxu0 0.0
        %662 = vmatprep.subr.mxu0 0.0
        %663 = vmatpush2.msra.mxu0 0.0
        %664 = vmatprep.subr.mxu0 0.0
        %665 = vmatpush2.msra.mxu0 0.0
        %666 = vmatprep.subr.mxu0 0.0
        %667 = vmatpush2.msra.mxu0 0.0
        %668 = vmatprep.subr.mxu0 0.0
        %669 = vmatpush2.msra.mxu0 0.0
        %670 = vmatprep.subr.mxu0 0.0
        %671 = vmatpush2.msra.mxu0 0.0
        %672 = vmatprep.subr.mxu0 0.0
        %673 = vmatpush2.msra.mxu0 0.0
        %674 = vmatprep.subr.mxu0 0.0
        %675 = vmatpush2.msra.mxu0 0.0
        %676 = vmatprep.mubr.f32.mxu0 0.0
        %v677 = vand.u32 %v228, 4294901760
        %v678 = vsub.f32 %v228, %v677
        %679 = vmatmul.mubr.f32.gmra.mxu0 %v678
        %v680 = vpop.f32.mrf.mxu0
        %v681 = vadd.f32 %v535, %v680
        %v682 = vpop.f32.mrf.mxu0
        %683 = vmatprep.mubr.f32.mxu0 0.0
        %v684 = vand.u32 %v231, 4294901760
        %v685 = vsub.f32 %v231, %v684
        %686 = vmatmul.mubr.f32.gmra.mxu0 %v685
        %v687 = vpop.f32.mrf.mxu0
        %v688 = vadd.f32 %v541, %v687
        %v689 = vpop.f32.mrf.mxu0
        %690 = vmatprep.mubr.f32.mxu0 0.0
        %v691 = vand.u32 %v234, 4294901760
        %v692 = vsub.f32 %v234, %v691
        %693 = vmatmul.mubr.f32.gmra.mxu0 %v692
        %v694 = vpop.f32.mrf.mxu0
        %v695 = vadd.f32 %v547, %v694
        %v696 = vpop.f32.mrf.mxu0
        %697 = vmatprep.mubr.f32.mxu0 0.0
        %v698 = vand.u32 %v237, 4294901760
        %v699 = vsub.f32 %v237, %v698
        %700 = vmatmul.mubr.f32.gmra.mxu0 %v699
        %v701 = vpop.f32.mrf.mxu0
        %v702 = vadd.f32 %v553, %v701
        %v703 = vpop.f32.mrf.mxu0
        %704 = vmatprep.mubr.f32.mxu0 0.0
        %v705 = vand.u32 %v240, 4294901760
        %v706 = vsub.f32 %v240, %v705
        %707 = vmatmul.mubr.f32.gmra.mxu0 %v706
        %v708 = vpop.f32.mrf.mxu0
        %v709 = vadd.f32 %v559, %v708
        %v710 = vpop.f32.mrf.mxu0
        %711 = vmatprep.mubr.f32.mxu0 0.0
        %v712 = vand.u32 %v243, 4294901760
        %v713 = vsub.f32 %v243, %v712
        %714 = vmatmul.mubr.f32.gmra.mxu0 %v713
        %v715 = vpop.f32.mrf.mxu0
        %v716 = vadd.f32 %v565, %v715
        %v717 = vpop.f32.mrf.mxu0
        %718 = vmatprep.mubr.f32.mxu0 0.0
        %v719 = vand.u32 %v246, 4294901760
        %v720 = vsub.f32 %v246, %v719
        %721 = vmatmul.mubr.f32.gmra.mxu0 %v720
        %v722 = vpop.f32.mrf.mxu0
        %v723 = vadd.f32 %v571, %v722
        %v724 = vpop.f32.mrf.mxu0
        %725 = vmatprep.mubr.f32.mxu0 0.0
        %v726 = vand.u32 %v249, 4294901760
        %v727 = vsub.f32 %v249, %v726
        %728 = vmatmul.mubr.f32.gmra.mxu0 %v727
        %v729 = vpop.f32.mrf.mxu0
        %v730 = vadd.f32 %v577, %v729
        %v731 = vpop.f32.mrf.mxu0
        %732 = vmatprep.mubr.f32.mxu0 0.0
        %v733 = vand.u32 %v252, 4294901760
        %v734 = vsub.f32 %v252, %v733
        %735 = vmatmul.mubr.f32.gmra.mxu0 %v734
        %v736 = vpop.f32.mrf.mxu0
        %v737 = vadd.f32 %v583, %v736
        %v738 = vpop.f32.mrf.mxu0
        %739 = vmatprep.mubr.f32.mxu0 0.0
        %v740 = vand.u32 %v255, 4294901760
        %v741 = vsub.f32 %v255, %v740
        %742 = vmatmul.mubr.f32.gmra.mxu0 %v741
        %v743 = vpop.f32.mrf.mxu0
        %v744 = vadd.f32 %v589, %v743
        %v745 = vpop.f32.mrf.mxu0
        %746 = vmatprep.mubr.f32.mxu0 0.0
        %v747 = vand.u32 %v258, 4294901760
        %v748 = vsub.f32 %v258, %v747
        %749 = vmatmul.mubr.f32.gmra.mxu0 %v748
        %v750 = vpop.f32.mrf.mxu0
        %v751 = vadd.f32 %v595, %v750
        %v752 = vpop.f32.mrf.mxu0
        %753 = vmatprep.mubr.f32.mxu0 0.0
        %v754 = vand.u32 %v261, 4294901760
        %v755 = vsub.f32 %v261, %v754
        %756 = vmatmul.mubr.f32.gmra.mxu0 %v755
        %v757 = vpop.f32.mrf.mxu0
        %v758 = vadd.f32 %v601, %v757
        %v759 = vpop.f32.mrf.mxu0
        %760 = vmatprep.mubr.f32.mxu0 0.0
        %v761 = vand.u32 %v264, 4294901760
        %v762 = vsub.f32 %v264, %v761
        %763 = vmatmul.mubr.f32.gmra.mxu0 %v762
        %v764 = vpop.f32.mrf.mxu0
        %v765 = vadd.f32 %v607, %v764
        %v766 = vpop.f32.mrf.mxu0
        %767 = vdwg.mxu0
        %768 = vmatprep.subr.mxu0 0.0
        %769 = vmatpush1.msra.mxu0 0.0
        %770 = vmatprep.subr.mxu0 0.0
        %771 = vmatpush1.msra.mxu0 0.0
        %772 = vmatprep.subr.mxu0 0.0
        %773 = vmatpush1.msra.mxu0 0.0
        %774 = vmatprep.subr.mxu0 0.0
        %775 = vmatpush1.msra.mxu0 0.0
        %776 = vmatprep.subr.mxu0 0.0
        %777 = vmatpush1.msra.mxu0 0.0
        %778 = vmatprep.subr.mxu0 0.0
        %779 = vmatpush1.msra.mxu0 0.0
        %780 = vmatprep.subr.mxu0 0.0
        %781 = vmatpush1.msra.mxu0 0.0
        %782 = vmatprep.subr.mxu0 0.0
        %783 = vmatpush1.msra.mxu0 0.0
        %784 = vmatprep.subr.mxu0 0.0
        %785 = vmatpush1.msra.mxu0 0.0
        %786 = vmatprep.subr.mxu0 0.0
        %787 = vmatpush1.msra.mxu0 0.0
        %788 = vmatprep.subr.mxu0 0.0
        %789 = vmatpush1.msra.mxu0 0.0
        %790 = vmatprep.subr.mxu0 0.0
        %791 = vmatpush1.msra.mxu0 0.0
        %792 = vmatprep.subr.mxu0 0.0
        %793 = vmatpush1.msra.mxu0 0.0
        %794 = vmatprep.subr.mxu0 0.0
        %795 = vmatpush1.msra.mxu0 0.0
        %796 = vmatprep.subr.mxu0 0.0
        %797 = vmatpush1.msra.mxu0 0.0
        %798 = vmatprep.subr.mxu0 0.0
        %v799 = vand.u32 %v225, 4294901760
        %800 = vmatpush1.msra.mxu0 %v799
        %801 = vmatprep.subr.mxu0 0.0
        %802 = vmatpush2.msra.mxu0 0.0
        %803 = vmatprep.subr.mxu0 0.0
        %804 = vmatpush2.msra.mxu0 0.0
        %805 = vmatprep.subr.mxu0 0.0
        %806 = vmatpush2.msra.mxu0 0.0
        %807 = vmatprep.subr.mxu0 0.0
        %808 = vmatpush2.msra.mxu0 0.0
        %809 = vmatprep.subr.mxu0 0.0
        %810 = vmatpush2.msra.mxu0 0.0
        %811 = vmatprep.subr.mxu0 0.0
        %812 = vmatpush2.msra.mxu0 0.0
        %813 = vmatprep.subr.mxu0 0.0
        %814 = vmatpush2.msra.mxu0 0.0
        %815 = vmatprep.subr.mxu0 0.0
        %816 = vmatpush2.msra.mxu0 0.0
        %817 = vmatprep.subr.mxu0 0.0
        %818 = vmatpush2.msra.mxu0 0.0
        %819 = vmatprep.subr.mxu0 0.0
        %820 = vmatpush2.msra.mxu0 0.0
        %821 = vmatprep.subr.mxu0 0.0
        %822 = vmatpush2.msra.mxu0 0.0
        %823 = vmatprep.subr.mxu0 0.0
        %824 = vmatpush2.msra.mxu0 0.0
        %825 = vmatprep.subr.mxu0 0.0
        %826 = vmatpush2.msra.mxu0 0.0
        %827 = vmatprep.subr.mxu0 0.0
        %828 = vmatpush2.msra.mxu0 0.0
        %829 = vmatprep.subr.mxu0 0.0
        %830 = vmatpush2.msra.mxu0 0.0
        %831 = vmatprep.subr.mxu0 0.0
        %832 = vmatpush2.msra.mxu0 0.0
        %833 = vmatprep.mubr.f32.mxu0 0.0
        %v834 = vand.u32 %v228, 4294901760
        %v835 = vsub.f32 %v228, %v834
        %v836 = vand.u32 %v835, 4294901760
        %837 = vmatmul.mubr.f32.gmra.mxu0 %v836
        %v838 = vpop.f32.mrf.mxu0
        %v839 = vadd.f32 %v681, %v838
        %v840 = vpop.f32.mrf.mxu0
        %841 = vmatprep.mubr.f32.mxu0 0.0
        %v842 = vand.u32 %v231, 4294901760
        %v843 = vsub.f32 %v231, %v842
        %v844 = vand.u32 %v843, 4294901760
        %845 = vmatmul.mubr.f32.gmra.mxu0 %v844
        %v846 = vpop.f32.mrf.mxu0
        %v847 = vadd.f32 %v688, %v846
        %v848 = vpop.f32.mrf.mxu0
        %849 = vmatprep.mubr.f32.mxu0 0.0
        %v850 = vand.u32 %v234, 4294901760
        %v851 = vsub.f32 %v234, %v850
        %v852 = vand.u32 %v851, 4294901760
        %853 = vmatmul.mubr.f32.gmra.mxu0 %v852
        %v854 = vpop.f32.mrf.mxu0
        %v855 = vadd.f32 %v695, %v854
        %v856 = vpop.f32.mrf.mxu0
        %857 = vmatprep.mubr.f32.mxu0 0.0
        %v858 = vand.u32 %v237, 4294901760
        %v859 = vsub.f32 %v237, %v858
        %v860 = vand.u32 %v859, 4294901760
        %861 = vmatmul.mubr.f32.gmra.mxu0 %v860
        %v862 = vpop.f32.mrf.mxu0
        %v863 = vadd.f32 %v702, %v862
        %v864 = vpop.f32.mrf.mxu0
        %865 = vmatprep.mubr.f32.mxu0 0.0
        %v866 = vand.u32 %v240, 4294901760
        %v867 = vsub.f32 %v240, %v866
        %v868 = vand.u32 %v867, 4294901760
        %869 = vmatmul.mubr.f32.gmra.mxu0 %v868
        %v870 = vpop.f32.mrf.mxu0
        %v871 = vadd.f32 %v709, %v870
        %v872 = vpop.f32.mrf.mxu0
        %873 = vmatprep.mubr.f32.mxu0 0.0
        %v874 = vand.u32 %v243, 4294901760
        %v875 = vsub.f32 %v243, %v874
        %v876 = vand.u32 %v875, 4294901760
        %877 = vmatmul.mubr.f32.gmra.mxu0 %v876
        %v878 = vpop.f32.mrf.mxu0
        %v879 = vadd.f32 %v716, %v878
        %v880 = vpop.f32.mrf.mxu0
        %881 = vmatprep.mubr.f32.mxu0 0.0
        %v882 = vand.u32 %v246, 4294901760
        %v883 = vsub.f32 %v246, %v882
        %v884 = vand.u32 %v883, 4294901760
        %885 = vmatmul.mubr.f32.gmra.mxu0 %v884
        %v886 = vpop.f32.mrf.mxu0
        %v887 = vadd.f32 %v723, %v886
        %v888 = vpop.f32.mrf.mxu0
        %889 = vmatprep.mubr.f32.mxu0 0.0
        %v890 = vand.u32 %v249, 4294901760
        %v891 = vsub.f32 %v249, %v890
        %v892 = vand.u32 %v891, 4294901760
        %893 = vmatmul.mubr.f32.gmra.mxu0 %v892
        %v894 = vpop.f32.mrf.mxu0
        %v895 = vadd.f32 %v730, %v894
        %v896 = vpop.f32.mrf.mxu0
        %897 = vmatprep.mubr.f32.mxu0 0.0
        %v898 = vand.u32 %v252, 4294901760
        %v899 = vsub.f32 %v252, %v898
        %v900 = vand.u32 %v899, 4294901760
        %901 = vmatmul.mubr.f32.gmra.mxu0 %v900
        %v902 = vpop.f32.mrf.mxu0
        %v903 = vadd.f32 %v737, %v902
        %v904 = vpop.f32.mrf.mxu0
        %905 = vmatprep.mubr.f32.mxu0 0.0
        %v906 = vand.u32 %v255, 4294901760
        %v907 = vsub.f32 %v255, %v906
        %v908 = vand.u32 %v907, 4294901760
        %909 = vmatmul.mubr.f32.gmra.mxu0 %v908
        %v910 = vpop.f32.mrf.mxu0
        %v911 = vadd.f32 %v744, %v910
        %v912 = vpop.f32.mrf.mxu0
        %913 = vmatprep.mubr.f32.mxu0 0.0
        %v914 = vand.u32 %v258, 4294901760
        %v915 = vsub.f32 %v258, %v914
        %v916 = vand.u32 %v915, 4294901760
        %917 = vmatmul.mubr.f32.gmra.mxu0 %v916
        %v918 = vpop.f32.mrf.mxu0
        %v919 = vadd.f32 %v751, %v918
        %v920 = vpop.f32.mrf.mxu0
        %921 = vmatprep.mubr.f32.mxu0 0.0
        %v922 = vand.u32 %v261, 4294901760
        %v923 = vsub.f32 %v261, %v922
        %v924 = vand.u32 %v923, 4294901760
        %925 = vmatmul.mubr.f32.gmra.mxu0 %v924
        %v926 = vpop.f32.mrf.mxu0
        %v927 = vadd.f32 %v758, %v926
        %v928 = vpop.f32.mrf.mxu0
        %929 = vmatprep.mubr.f32.mxu0 0.0
        %v930 = vand.u32 %v264, 4294901760
        %v931 = vsub.f32 %v264, %v930
        %v932 = vand.u32 %v931, 4294901760
        %933 = vmatmul.mubr.f32.gmra.mxu0 %v932
        %v934 = vpop.f32.mrf.mxu0
        %v935 = vadd.f32 %v765, %v934
        %v936 = vpop.f32.mrf.mxu0
        %937 = vdwg.mxu0
        %938 = vmatprep.subr.mxu0 0.0
        %939 = vmatpush1.msra.mxu0 0.0
        %940 = vmatprep.subr.mxu0 0.0
        %941 = vmatpush1.msra.mxu0 0.0
        %942 = vmatprep.subr.mxu0 0.0
        %943 = vmatpush1.msra.mxu0 0.0
        %944 = vmatprep.subr.mxu0 0.0
        %945 = vmatpush1.msra.mxu0 0.0
        %946 = vmatprep.subr.mxu0 0.0
        %947 = vmatpush1.msra.mxu0 0.0
        %948 = vmatprep.subr.mxu0 0.0
        %949 = vmatpush1.msra.mxu0 0.0
        %950 = vmatprep.subr.mxu0 0.0
        %951 = vmatpush1.msra.mxu0 0.0
        %952 = vmatprep.subr.mxu0 0.0
        %953 = vmatpush1.msra.mxu0 0.0
        %954 = vmatprep.subr.mxu0 0.0
        %955 = vmatpush1.msra.mxu0 0.0
        %956 = vmatprep.subr.mxu0 0.0
        %957 = vmatpush1.msra.mxu0 0.0
        %958 = vmatprep.subr.mxu0 0.0
        %959 = vmatpush1.msra.mxu0 0.0
        %960 = vmatprep.subr.mxu0 0.0
        %961 = vmatpush1.msra.mxu0 0.0
        %962 = vmatprep.subr.mxu0 0.0
        %963 = vmatpush1.msra.mxu0 0.0
        %964 = vmatprep.subr.mxu0 0.0
        %965 = vmatpush1.msra.mxu0 0.0
        %966 = vmatprep.subr.mxu0 0.0
        %967 = vmatpush1.msra.mxu0 0.0
        %968 = vmatprep.subr.mxu0 0.0
        %v969 = vand.u32 %v225, 4294901760
        %v970 = vsub.f32 %v225, %v969
        %v971 = vand.u32 %v970, 4294901760
        %972 = vmatpush1.msra.mxu0 %v971
        %973 = vmatprep.subr.mxu0 0.0
        %974 = vmatpush2.msra.mxu0 0.0
        %975 = vmatprep.subr.mxu0 0.0
        %976 = vmatpush2.msra.mxu0 0.0
        %977 = vmatprep.subr.mxu0 0.0
        %978 = vmatpush2.msra.mxu0 0.0
        %979 = vmatprep.subr.mxu0 0.0
        %980 = vmatpush2.msra.mxu0 0.0
        %981 = vmatprep.subr.mxu0 0.0
        %982 = vmatpush2.msra.mxu0 0.0
        %983 = vmatprep.subr.mxu0 0.0
        %984 = vmatpush2.msra.mxu0 0.0
        %985 = vmatprep.subr.mxu0 0.0
        %986 = vmatpush2.msra.mxu0 0.0
        %987 = vmatprep.subr.mxu0 0.0
        %988 = vmatpush2.msra.mxu0 0.0
        %989 = vmatprep.subr.mxu0 0.0
        %990 = vmatpush2.msra.mxu0 0.0
        %991 = vmatprep.subr.mxu0 0.0
        %992 = vmatpush2.msra.mxu0 0.0
        %993 = vmatprep.subr.mxu0 0.0
        %994 = vmatpush2.msra.mxu0 0.0
        %995 = vmatprep.subr.mxu0 0.0
        %996 = vmatpush2.msra.mxu0 0.0
        %997 = vmatprep.subr.mxu0 0.0
        %998 = vmatpush2.msra.mxu0 0.0
        %999 = vmatprep.subr.mxu0 0.0
        %1000 = vmatpush2.msra.mxu0 0.0
        %1001 = vmatprep.subr.mxu0 0.0
        %1002 = vmatpush2.msra.mxu0 0.0
        %1003 = vmatprep.subr.mxu0 0.0
        %1004 = vmatpush2.msra.mxu0 0.0
        %1005 = vmatprep.mubr.f32.mxu0 0.0
        %v1006 = vand.u32 %v228, 4294901760
        %1007 = vmatmul.mubr.f32.gmra.mxu0 %v1006
        %v1008 = vpop.f32.mrf.mxu0
        %v1009 = vadd.f32 %v839, %v1008
        %v1010 = vpop.f32.mrf.mxu0
        %1011 = vmatprep.mubr.f32.mxu0 0.0
        %v1012 = vand.u32 %v231, 4294901760
        %1013 = vmatmul.mubr.f32.gmra.mxu0 %v1012
        %v1014 = vpop.f32.mrf.mxu0
        %v1015 = vadd.f32 %v847, %v1014
        %v1016 = vpop.f32.mrf.mxu0
        %1017 = vmatprep.mubr.f32.mxu0 0.0
        %v1018 = vand.u32 %v234, 4294901760
        %1019 = vmatmul.mubr.f32.gmra.mxu0 %v1018
        %v1020 = vpop.f32.mrf.mxu0
        %v1021 = vadd.f32 %v855, %v1020
        %v1022 = vpop.f32.mrf.mxu0
        %1023 = vmatprep.mubr.f32.mxu0 0.0
        %v1024 = vand.u32 %v237, 4294901760
        %1025 = vmatmul.mubr.f32.gmra.mxu0 %v1024
        %v1026 = vpop.f32.mrf.mxu0
        %v1027 = vadd.f32 %v863, %v1026
        %v1028 = vpop.f32.mrf.mxu0
        %1029 = vmatprep.mubr.f32.mxu0 0.0
        %v1030 = vand.u32 %v240, 4294901760
        %1031 = vmatmul.mubr.f32.gmra.mxu0 %v1030
        %v1032 = vpop.f32.mrf.mxu0
        %v1033 = vadd.f32 %v871, %v1032
        %v1034 = vpop.f32.mrf.mxu0
        %1035 = vmatprep.mubr.f32.mxu0 0.0
        %v1036 = vand.u32 %v243, 4294901760
        %1037 = vmatmul.mubr.f32.gmra.mxu0 %v1036
        %v1038 = vpop.f32.mrf.mxu0
        %v1039 = vadd.f32 %v879, %v1038
        %v1040 = vpop.f32.mrf.mxu0
        %1041 = vmatprep.mubr.f32.mxu0 0.0
        %v1042 = vand.u32 %v246, 4294901760
        %1043 = vmatmul.mubr.f32.gmra.mxu0 %v1042
        %v1044 = vpop.f32.mrf.mxu0
        %v1045 = vadd.f32 %v887, %v1044
        %v1046 = vpop.f32.mrf.mxu0
        %1047 = vmatprep.mubr.f32.mxu0 0.0
        %v1048 = vand.u32 %v249, 4294901760
        %1049 = vmatmul.mubr.f32.gmra.mxu0 %v1048
        %v1050 = vpop.f32.mrf.mxu0
        %v1051 = vadd.f32 %v895, %v1050
        %v1052 = vpop.f32.mrf.mxu0
        %1053 = vmatprep.mubr.f32.mxu0 0.0
        %v1054 = vand.u32 %v252, 4294901760
        %1055 = vmatmul.mubr.f32.gmra.mxu0 %v1054
        %v1056 = vpop.f32.mrf.mxu0
        %v1057 = vadd.f32 %v903, %v1056
        %v1058 = vpop.f32.mrf.mxu0
        %1059 = vmatprep.mubr.f32.mxu0 0.0
        %v1060 = vand.u32 %v255, 4294901760
        %1061 = vmatmul.mubr.f32.gmra.mxu0 %v1060
        %v1062 = vpop.f32.mrf.mxu0
        %v1063 = vadd.f32 %v911, %v1062
        %v1064 = vpop.f32.mrf.mxu0
        %1065 = vmatprep.mubr.f32.mxu0 0.0
        %v1066 = vand.u32 %v258, 4294901760
        %1067 = vmatmul.mubr.f32.gmra.mxu0 %v1066
        %v1068 = vpop.f32.mrf.mxu0
        %v1069 = vadd.f32 %v919, %v1068
        %v1070 = vpop.f32.mrf.mxu0
        %1071 = vmatprep.mubr.f32.mxu0 0.0
        %v1072 = vand.u32 %v261, 4294901760
        %1073 = vmatmul.mubr.f32.gmra.mxu0 %v1072
        %v1074 = vpop.f32.mrf.mxu0
        %v1075 = vadd.f32 %v927, %v1074
        %v1076 = vpop.f32.mrf.mxu0
        %1077 = vmatprep.mubr.f32.mxu0 0.0
        %v1078 = vand.u32 %v264, 4294901760
        %1079 = vmatmul.mubr.f32.gmra.mxu0 %v1078
        %v1080 = vpop.f32.mrf.mxu0
        %v1081 = vadd.f32 %v935, %v1080
        %v1082 = vpop.f32.mrf.mxu0
        %1083 = vdwg.mxu0
        %1084 = vmatprep.subr.mxu0 0.0
        %1085 = vmatpush1.msra.mxu0 0.0
        %1086 = vmatprep.subr.mxu0 0.0
        %1087 = vmatpush1.msra.mxu0 0.0
        %1088 = vmatprep.subr.mxu0 0.0
        %1089 = vmatpush1.msra.mxu0 0.0
        %1090 = vmatprep.subr.mxu0 0.0
        %1091 = vmatpush1.msra.mxu0 0.0
        %1092 = vmatprep.subr.mxu0 0.0
        %1093 = vmatpush1.msra.mxu0 0.0
        %1094 = vmatprep.subr.mxu0 0.0
        %1095 = vmatpush1.msra.mxu0 0.0
        %1096 = vmatprep.subr.mxu0 0.0
        %1097 = vmatpush1.msra.mxu0 0.0
        %1098 = vmatprep.subr.mxu0 0.0
        %1099 = vmatpush1.msra.mxu0 0.0
        %1100 = vmatprep.subr.mxu0 0.0
        %1101 = vmatpush1.msra.mxu0 0.0
        %1102 = vmatprep.subr.mxu0 0.0
        %1103 = vmatpush1.msra.mxu0 0.0
        %1104 = vmatprep.subr.mxu0 0.0
        %1105 = vmatpush1.msra.mxu0 0.0
        %1106 = vmatprep.subr.mxu0 0.0
        %1107 = vmatpush1.msra.mxu0 0.0
        %1108 = vmatprep.subr.mxu0 0.0
        %1109 = vmatpush1.msra.mxu0 0.0
        %1110 = vmatprep.subr.mxu0 0.0
        %1111 = vmatpush1.msra.mxu0 0.0
        %1112 = vmatprep.subr.mxu0 0.0
        %1113 = vmatpush1.msra.mxu0 0.0
        %1114 = vmatprep.subr.mxu0 0.0
        %v1115 = vand.u32 %v225, 4294901760
        %1116 = vmatpush1.msra.mxu0 %v1115
        %1117 = vmatprep.subr.mxu0 0.0
        %1118 = vmatpush2.msra.mxu0 0.0
        %1119 = vmatprep.subr.mxu0 0.0
        %1120 = vmatpush2.msra.mxu0 0.0
        %1121 = vmatprep.subr.mxu0 0.0
        %1122 = vmatpush2.msra.mxu0 0.0
        %1123 = vmatprep.subr.mxu0 0.0
        %1124 = vmatpush2.msra.mxu0 0.0
        %1125 = vmatprep.subr.mxu0 0.0
        %1126 = vmatpush2.msra.mxu0 0.0
        %1127 = vmatprep.subr.mxu0 0.0
        %1128 = vmatpush2.msra.mxu0 0.0
        %1129 = vmatprep.subr.mxu0 0.0
        %1130 = vmatpush2.msra.mxu0 0.0
        %1131 = vmatprep.subr.mxu0 0.0
        %1132 = vmatpush2.msra.mxu0 0.0
        %1133 = vmatprep.subr.mxu0 0.0
        %1134 = vmatpush2.msra.mxu0 0.0
        %1135 = vmatprep.subr.mxu0 0.0
        %1136 = vmatpush2.msra.mxu0 0.0
        %1137 = vmatprep.subr.mxu0 0.0
        %1138 = vmatpush2.msra.mxu0 0.0
        %1139 = vmatprep.subr.mxu0 0.0
        %1140 = vmatpush2.msra.mxu0 0.0
        %1141 = vmatprep.subr.mxu0 0.0
        %1142 = vmatpush2.msra.mxu0 0.0
        %1143 = vmatprep.subr.mxu0 0.0
        %1144 = vmatpush2.msra.mxu0 0.0
        %1145 = vmatprep.subr.mxu0 0.0
        %1146 = vmatpush2.msra.mxu0 0.0
        %1147 = vmatprep.subr.mxu0 0.0
        %1148 = vmatpush2.msra.mxu0 0.0
        %1149 = vmatprep.mubr.f32.mxu0 0.0
        %v1150 = vand.u32 %v228, 4294901760
        %1151 = vmatmul.mubr.f32.gmra.mxu0 %v1150
        %v1152 = vpop.f32.mrf.mxu0
        %v1153 = vadd.f32 %v1009, %v1152
        %v1154 = vpop.f32.mrf.mxu0
        %1155 = vmatprep.mubr.f32.mxu0 0.0
        %v1156 = vand.u32 %v231, 4294901760
        %1157 = vmatmul.mubr.f32.gmra.mxu0 %v1156
        %v1158 = vpop.f32.mrf.mxu0
        %v1159 = vadd.f32 %v1015, %v1158
        %v1160 = vpop.f32.mrf.mxu0
        %1161 = vmatprep.mubr.f32.mxu0 0.0
        %v1162 = vand.u32 %v234, 4294901760
        %1163 = vmatmul.mubr.f32.gmra.mxu0 %v1162
        %v1164 = vpop.f32.mrf.mxu0
        %v1165 = vadd.f32 %v1021, %v1164
        %v1166 = vpop.f32.mrf.mxu0
        %1167 = vmatprep.mubr.f32.mxu0 0.0
        %v1168 = vand.u32 %v237, 4294901760
        %1169 = vmatmul.mubr.f32.gmra.mxu0 %v1168
        %v1170 = vpop.f32.mrf.mxu0
        %v1171 = vadd.f32 %v1027, %v1170
        %v1172 = vpop.f32.mrf.mxu0
        %1173 = vmatprep.mubr.f32.mxu0 0.0
        %v1174 = vand.u32 %v240, 4294901760
        %1175 = vmatmul.mubr.f32.gmra.mxu0 %v1174
        %v1176 = vpop.f32.mrf.mxu0
        %v1177 = vadd.f32 %v1033, %v1176
        %v1178 = vpop.f32.mrf.mxu0
        %1179 = vmatprep.mubr.f32.mxu0 0.0
        %v1180 = vand.u32 %v243, 4294901760
        %1181 = vmatmul.mubr.f32.gmra.mxu0 %v1180
        %v1182 = vpop.f32.mrf.mxu0
        %v1183 = vadd.f32 %v1039, %v1182
        %v1184 = vpop.f32.mrf.mxu0
        %1185 = vmatprep.mubr.f32.mxu0 0.0
        %v1186 = vand.u32 %v246, 4294901760
        %1187 = vmatmul.mubr.f32.gmra.mxu0 %v1186
        %v1188 = vpop.f32.mrf.mxu0
        %v1189 = vadd.f32 %v1045, %v1188
        %v1190 = vpop.f32.mrf.mxu0
        %1191 = vmatprep.mubr.f32.mxu0 0.0
        %v1192 = vand.u32 %v249, 4294901760
        %1193 = vmatmul.mubr.f32.gmra.mxu0 %v1192
        %v1194 = vpop.f32.mrf.mxu0
        %v1195 = vadd.f32 %v1051, %v1194
        %v1196 = vpop.f32.mrf.mxu0
        %1197 = vmatprep.mubr.f32.mxu0 0.0
        %v1198 = vand.u32 %v252, 4294901760
        %1199 = vmatmul.mubr.f32.gmra.mxu0 %v1198
        %v1200 = vpop.f32.mrf.mxu0
        %v1201 = vadd.f32 %v1057, %v1200
        %v1202 = vpop.f32.mrf.mxu0
        %1203 = vmatprep.mubr.f32.mxu0 0.0
        %v1204 = vand.u32 %v255, 4294901760
        %1205 = vmatmul.mubr.f32.gmra.mxu0 %v1204
        %v1206 = vpop.f32.mrf.mxu0
        %v1207 = vadd.f32 %v1063, %v1206
        %v1208 = vpop.f32.mrf.mxu0
        %1209 = vmatprep.mubr.f32.mxu0 0.0
        %v1210 = vand.u32 %v258, 4294901760
        %1211 = vmatmul.mubr.f32.gmra.mxu0 %v1210
        %v1212 = vpop.f32.mrf.mxu0
        %v1213 = vadd.f32 %v1069, %v1212
        %v1214 = vpop.f32.mrf.mxu0
        %1215 = vmatprep.mubr.f32.mxu0 0.0
        %v1216 = vand.u32 %v261, 4294901760
        %1217 = vmatmul.mubr.f32.gmra.mxu0 %v1216
        %v1218 = vpop.f32.mrf.mxu0
        %v1219 = vadd.f32 %v1075, %v1218
        %v1220 = vpop.f32.mrf.mxu0
        %1221 = vmatprep.mubr.f32.mxu0 0.0
        %v1222 = vand.u32 %v264, 4294901760
        %1223 = vmatmul.mubr.f32.gmra.mxu0 %v1222
        %v1224 = vpop.f32.mrf.mxu0
        %v1225 = vadd.f32 %v1081, %v1224
        %v1226 = vpop.f32.mrf.mxu0
        %1227 = vdwg.mxu0
        %v1228 = vand.u32 2147483647, %v1153
        %vm1229 = vcmp.le.f32.partialorder %v1228, 0.7853982
        %vm1230 = vcmp.lt.s32.totalorder %v1153, 0
        %v1231 = vand.u32 %v1153, 2139095040
        %v1232 = vshrl.u32 %v1231, 23
        %v1233 = vsub.s32 %v1232, 127
        %v1234 = vand.u32 2147483647, %v1153
        %v1235 = vand.u32 %v1234, 8388607
        %v1236 = vor.u32 %v1235, 8388608
        %v1237 = vsub.s32 0, %v1236
        %v1238 = vadd.s32 %v1233, 1
        %vm1239 = vcmp.gt.s32.totalorder %v1238, 0
        %v1240 = vsel %vm1239, %v1238, 0
        %v1241 = vshrl.u32 %v1240, 5
        %v1242 = vand.u32 %v1240, 31
        %v1243 = vsub.s32 32, %v1242
        %v1244 = vshrl.u32 683565275, %v1243
        %v1245 = vshll.u32 683565275, %v1242
        %v1246 = vshrl.u32 2475754826, %v1243
        %v1247 = vor.u32 %v1245, %v1246
        %v1248 = vshll.u32 2475754826, %v1242
        %v1249 = vshrl.u32 2131351028, %v1243
        %v1250 = vor.u32 %v1248, %v1249
        %v1251 = vshll.u32 2131351028, %v1242
        %v1252 = vshrl.u32 2102212464, %v1243
        %v1253 = vor.u32 %v1251, %v1252
        %v1254 = vshll.u32 2102212464, %v1242
        %v1255 = vshrl.u32 920167782, %v1243
        %v1256 = vor.u32 %v1254, %v1255
        %v1257 = vshll.u32 920167782, %v1242
        %v1258 = vshrl.u32 1326507024, %v1243
        %v1259 = vor.u32 %v1257, %v1258
        %vm1260 = vcmp.lt.s32.totalorder %v1241, 1
        %vm1261 = vcmp.lt.s32.totalorder %v1241, 2
        %vm1262 = vcmp.lt.s32.totalorder %v1241, 3
        %vm1263 = vcmp.lt.s32.totalorder %v1241, 4
        %v1264 = vsel %vm1260, %v1244, %v1247
        %v1265 = vsel %vm1263, %v1253, 2102212464
        %v1266 = vsel %vm1262, %v1250, %v1265
        %v1267 = vsel %vm1261, %v1264, %v1266
        %v1268 = vsel %vm1260, %v1247, %v1250
        %v1269 = vsel %vm1263, %v1256, 920167782
        %v1270 = vsel %vm1262, %v1253, %v1269
        %v1271 = vsel %vm1261, %v1268, %v1270
        %v1272 = vsel %vm1260, %v1250, %v1253
        %v1273 = vsel %vm1263, %v1259, 1326507024
        %v1274 = vsel %vm1262, %v1256, %v1273
        %v1275 = vsel %vm1261, %v1272, %v1274
        %v1276 = vshll.u32 %v1236, 8
        %v1277 = vmul.u32.u64.compose %v1276, %v1275
        %v1278 = vextract.low.u32 %v1277
        %v1279 = vextract.high.u32 %v1277
        %v1280 = vmul.u32.u64.compose %v1276, %v1271
        %v1281 = vextract.low.u32 %v1280
        %v1282 = vextract.high.u32 %v1280
        %v1283 = vmul.u32 %v1276, %v1267
        %v1284 = vadd.s32 %v1279, %v1281
        %vm1285 = vc.u32 %v1279, %v1281
        %v1286 = vadd.s32 %v1282, 1
        %v1287 = vsel %vm1285, %v1286, %v1282
        %v1288 = vadd.s32 %v1283, %v1287
        %v1289 = vadd.s32 %v1288, 536870912
        %v1290 = vshrl.u32 %v1289, 30
        %v1291 = vshll.u32 %v1290, 30
        %v1292 = vsub.s32 %v1288, %v1291
        %vm1293 = vcmp.lt.s32.totalorder %v1292, 0
        %v1294 = vsub.s32 0, %v1292
        %v1295 = vsel %vm1293, %v1294, %v1292
        %v1296 = vclz %v1295
        %v1297 = vsub.s32 %v1296, 2
        %vm1298 = vcmp.gt.s32.totalorder 0, %v1297
        %v1299 = vsel %vm1298, 0, %v1297
        %v1300 = vsub.s32 32, %v1299
        %v1301 = vshll.u32 %v1292, %v1299
        %v1302 = vshrl.u32 %v1284, %v1300
        %v1303 = vor.u32 %v1301, %v1302
        %v1304 = vsub.s32 4294967266, %v1299
        %v1305 = vadd.s32 %v1304, 127
        %v1306 = vshll.u32 %v1305, 23
        %v1307 = vor.u32 4788187, %v1306
        %v1308 = vand.u32 2147483647, %v1307
        %v1310 = vcvt.s32.f32 %v1303
        %v1311 = vmul.f32 %v1310, %v1308
        %v1312 = vxor.u32 %v1311, 2147483648
        %v1313 = vsel %vm1230, %v1312, %v1311
        %v1314 = vsub.s32 4, %v1290
        %v1315 = vsel %vm1230, %v1314, %v1290
        %v1316 = vsel %vm1229, %v1153, %v1313
        %v1317 = vsel %vm1229, 0, %v1315
        %v1318 = vcosq.f32.pop %v1316
        %v1319 = vsinq.f32.pop %v1316
        %vm1320 = vweird.f32 %v1153
        %v1321 = vand.u32 %v1317, 3
        %vm1322 = vcmp.lt.s32.totalorder %v1321, 2
        %vm1323 = vcmp.eq.s32.totalorder %v1321, 0
        %v1324 = vxor.u32 %v1319, 2147483648
        %v1325 = vsel %vm1323, %v1318, %v1324
        %vm1326 = vcmp.eq.s32.totalorder %v1321, 2
        %v1327 = vxor.u32 %v1318, 2147483648
        %v1328 = vsel %vm1326, %v1327, %v1319
        %v1329 = vsel %vm1322, %v1325, %v1328
        %v1330 = vsel %vm1320, nan, %v1329
        %v1331 = vand.u32 2147483647, %v1159
        %vm1332 = vcmp.le.f32.partialorder %v1331, 0.7853982
        %vm1333 = vcmp.lt.s32.totalorder %v1159, 0
        %v1334 = vand.u32 %v1159, 2139095040
        %v1335 = vshrl.u32 %v1334, 23
        %v1336 = vsub.s32 %v1335, 127
        %v1337 = vand.u32 2147483647, %v1159
        %v1338 = vand.u32 %v1337, 8388607
        %v1339 = vor.u32 %v1338, 8388608
        %v1340 = vsub.s32 0, %v1339
        %v1341 = vadd.s32 %v1336, 1
        %vm1342 = vcmp.gt.s32.totalorder %v1341, 0
        %v1343 = vsel %vm1342, %v1341, 0
        %v1344 = vshrl.u32 %v1343, 5
        %v1345 = vand.u32 %v1343, 31
        %v1346 = vsub.s32 32, %v1345
        %v1347 = vshrl.u32 683565275, %v1346
        %v1348 = vshll.u32 683565275, %v1345
        %v1349 = vshrl.u32 2475754826, %v1346
        %v1350 = vor.u32 %v1348, %v1349
        %v1351 = vshll.u32 2475754826, %v1345
        %v1352 = vshrl.u32 2131351028, %v1346
        %v1353 = vor.u32 %v1351, %v1352
        %v1354 = vshll.u32 2131351028, %v1345
        %v1355 = vshrl.u32 2102212464, %v1346
        %v1356 = vor.u32 %v1354, %v1355
        %v1357 = vshll.u32 2102212464, %v1345
        %v1358 = vshrl.u32 920167782, %v1346
        %v1359 = vor.u32 %v1357, %v1358
        %v1360 = vshll.u32 920167782, %v1345
        %v1361 = vshrl.u32 1326507024, %v1346
        %v1362 = vor.u32 %v1360, %v1361
        %vm1363 = vcmp.lt.s32.totalorder %v1344, 1
        %vm1364 = vcmp.lt.s32.totalorder %v1344, 2
        %vm1365 = vcmp.lt.s32.totalorder %v1344, 3
        %vm1366 = vcmp.lt.s32.totalorder %v1344, 4
        %v1367 = vsel %vm1363, %v1347, %v1350
        %v1368 = vsel %vm1366, %v1356, 2102212464
        %v1369 = vsel %vm1365, %v1353, %v1368
        %v1370 = vsel %vm1364, %v1367, %v1369
        %v1371 = vsel %vm1363, %v1350, %v1353
        %v1372 = vsel %vm1366, %v1359, 920167782
        %v1373 = vsel %vm1365, %v1356, %v1372
        %v1374 = vsel %vm1364, %v1371, %v1373
        %v1375 = vsel %vm1363, %v1353, %v1356
        %v1376 = vsel %vm1366, %v1362, 1326507024
        %v1377 = vsel %vm1365, %v1359, %v1376
        %v1378 = vsel %vm1364, %v1375, %v1377
        %v1379 = vshll.u32 %v1339, 8
        %v1380 = vmul.u32.u64.compose %v1379, %v1378
        %v1381 = vextract.low.u32 %v1380
        %v1382 = vextract.high.u32 %v1380
        %v1383 = vmul.u32.u64.compose %v1379, %v1374
        %v1384 = vextract.low.u32 %v1383
        %v1385 = vextract.high.u32 %v1383
        %v1386 = vmul.u32 %v1379, %v1370
        %v1387 = vadd.s32 %v1382, %v1384
        %vm1388 = vc.u32 %v1382, %v1384
        %v1389 = vadd.s32 %v1385, 1
        %v1390 = vsel %vm1388, %v1389, %v1385
        %v1391 = vadd.s32 %v1386, %v1390
        %v1392 = vadd.s32 %v1391, 536870912
        %v1393 = vshrl.u32 %v1392, 30
        %v1394 = vshll.u32 %v1393, 30
        %v1395 = vsub.s32 %v1391, %v1394
        %vm1396 = vcmp.lt.s32.totalorder %v1395, 0
        %v1397 = vsub.s32 0, %v1395
        %v1398 = vsel %vm1396, %v1397, %v1395
        %v1399 = vclz %v1398
        %v1400 = vsub.s32 %v1399, 2
        %vm1401 = vcmp.gt.s32.totalorder 0, %v1400
        %v1402 = vsel %vm1401, 0, %v1400
        %v1403 = vsub.s32 32, %v1402
        %v1404 = vshll.u32 %v1395, %v1402
        %v1405 = vshrl.u32 %v1387, %v1403
        %v1406 = vor.u32 %v1404, %v1405
        %v1407 = vsub.s32 4294967266, %v1402
        %v1408 = vadd.s32 %v1407, 127
        %v1409 = vshll.u32 %v1408, 23
        %v1410 = vor.u32 4788187, %v1409
        %v1411 = vand.u32 2147483647, %v1410
        %v1413 = vcvt.s32.f32 %v1406
        %v1414 = vmul.f32 %v1413, %v1411
        %v1415 = vxor.u32 %v1414, 2147483648
        %v1416 = vsel %vm1333, %v1415, %v1414
        %v1417 = vsub.s32 4, %v1393
        %v1418 = vsel %vm1333, %v1417, %v1393
        %v1419 = vsel %vm1332, %v1159, %v1416
        %v1420 = vsel %vm1332, 0, %v1418
        %v1421 = vcosq.f32.pop %v1419
        %v1422 = vsinq.f32.pop %v1419
        %vm1423 = vweird.f32 %v1159
        %v1424 = vand.u32 %v1420, 3
        %vm1425 = vcmp.lt.s32.totalorder %v1424, 2
        %vm1426 = vcmp.eq.s32.totalorder %v1424, 0
        %v1427 = vxor.u32 %v1422, 2147483648
        %v1428 = vsel %vm1426, %v1421, %v1427
        %vm1429 = vcmp.eq.s32.totalorder %v1424, 2
        %v1430 = vxor.u32 %v1421, 2147483648
        %v1431 = vsel %vm1429, %v1430, %v1422
        %v1432 = vsel %vm1425, %v1428, %v1431
        %v1433 = vsel %vm1423, nan, %v1432
        %v1434 = vand.u32 2147483647, %v1165
        %vm1435 = vcmp.le.f32.partialorder %v1434, 0.7853982
        %vm1436 = vcmp.lt.s32.totalorder %v1165, 0
        %v1437 = vand.u32 %v1165, 2139095040
        %v1438 = vshrl.u32 %v1437, 23
        %v1439 = vsub.s32 %v1438, 127
        %v1440 = vand.u32 2147483647, %v1165
        %v1441 = vand.u32 %v1440, 8388607
        %v1442 = vor.u32 %v1441, 8388608
        %v1443 = vsub.s32 0, %v1442
        %v1444 = vadd.s32 %v1439, 1
        %vm1445 = vcmp.gt.s32.totalorder %v1444, 0
        %v1446 = vsel %vm1445, %v1444, 0
        %v1447 = vshrl.u32 %v1446, 5
        %v1448 = vand.u32 %v1446, 31
        %v1449 = vsub.s32 32, %v1448
        %v1450 = vshrl.u32 683565275, %v1449
        %v1451 = vshll.u32 683565275, %v1448
        %v1452 = vshrl.u32 2475754826, %v1449
        %v1453 = vor.u32 %v1451, %v1452
        %v1454 = vshll.u32 2475754826, %v1448
        %v1455 = vshrl.u32 2131351028, %v1449
        %v1456 = vor.u32 %v1454, %v1455
        %v1457 = vshll.u32 2131351028, %v1448
        %v1458 = vshrl.u32 2102212464, %v1449
        %v1459 = vor.u32 %v1457, %v1458
        %v1460 = vshll.u32 2102212464, %v1448
        %v1461 = vshrl.u32 920167782, %v1449
        %v1462 = vor.u32 %v1460, %v1461
        %v1463 = vshll.u32 920167782, %v1448
        %v1464 = vshrl.u32 1326507024, %v1449
        %v1465 = vor.u32 %v1463, %v1464
        %vm1466 = vcmp.lt.s32.totalorder %v1447, 1
        %vm1467 = vcmp.lt.s32.totalorder %v1447, 2
        %vm1468 = vcmp.lt.s32.totalorder %v1447, 3
        %vm1469 = vcmp.lt.s32.totalorder %v1447, 4
        %v1470 = vsel %vm1466, %v1450, %v1453
        %v1471 = vsel %vm1469, %v1459, 2102212464
        %v1472 = vsel %vm1468, %v1456, %v1471
        %v1473 = vsel %vm1467, %v1470, %v1472
        %v1474 = vsel %vm1466, %v1453, %v1456
        %v1475 = vsel %vm1469, %v1462, 920167782
        %v1476 = vsel %vm1468, %v1459, %v1475
        %v1477 = vsel %vm1467, %v1474, %v1476
        %v1478 = vsel %vm1466, %v1456, %v1459
        %v1479 = vsel %vm1469, %v1465, 1326507024
        %v1480 = vsel %vm1468, %v1462, %v1479
        %v1481 = vsel %vm1467, %v1478, %v1480
        %v1482 = vshll.u32 %v1442, 8
        %v1483 = vmul.u32.u64.compose %v1482, %v1481
        %v1484 = vextract.low.u32 %v1483
        %v1485 = vextract.high.u32 %v1483
        %v1486 = vmul.u32.u64.compose %v1482, %v1477
        %v1487 = vextract.low.u32 %v1486
        %v1488 = vextract.high.u32 %v1486
        %v1489 = vmul.u32 %v1482, %v1473
        %v1490 = vadd.s32 %v1485, %v1487
        %vm1491 = vc.u32 %v1485, %v1487
        %v1492 = vadd.s32 %v1488, 1
        %v1493 = vsel %vm1491, %v1492, %v1488
        %v1494 = vadd.s32 %v1489, %v1493
        %v1495 = vadd.s32 %v1494, 536870912
        %v1496 = vshrl.u32 %v1495, 30
        %v1497 = vshll.u32 %v1496, 30
        %v1498 = vsub.s32 %v1494, %v1497
        %vm1499 = vcmp.lt.s32.totalorder %v1498, 0
        %v1500 = vsub.s32 0, %v1498
        %v1501 = vsel %vm1499, %v1500, %v1498
        %v1502 = vclz %v1501
        %v1503 = vsub.s32 %v1502, 2
        %vm1504 = vcmp.gt.s32.totalorder 0, %v1503
        %v1505 = vsel %vm1504, 0, %v1503
        %v1506 = vsub.s32 32, %v1505
        %v1507 = vshll.u32 %v1498, %v1505
        %v1508 = vshrl.u32 %v1490, %v1506
        %v1509 = vor.u32 %v1507, %v1508
        %v1510 = vsub.s32 4294967266, %v1505
        %v1511 = vadd.s32 %v1510, 127
        %v1512 = vshll.u32 %v1511, 23
        %v1513 = vor.u32 4788187, %v1512
        %v1514 = vand.u32 2147483647, %v1513
        %v1516 = vcvt.s32.f32 %v1509
        %v1517 = vmul.f32 %v1516, %v1514
        %v1518 = vxor.u32 %v1517, 2147483648
        %v1519 = vsel %vm1436, %v1518, %v1517
        %v1520 = vsub.s32 4, %v1496
        %v1521 = vsel %vm1436, %v1520, %v1496
        %v1522 = vsel %vm1435, %v1165, %v1519
        %v1523 = vsel %vm1435, 0, %v1521
        %v1524 = vcosq.f32.pop %v1522
        %v1525 = vsinq.f32.pop %v1522
        %vm1526 = vweird.f32 %v1165
        %v1527 = vand.u32 %v1523, 3
        %vm1528 = vcmp.lt.s32.totalorder %v1527, 2
        %vm1529 = vcmp.eq.s32.totalorder %v1527, 0
        %v1530 = vxor.u32 %v1525, 2147483648
        %v1531 = vsel %vm1529, %v1524, %v1530
        %vm1532 = vcmp.eq.s32.totalorder %v1527, 2
        %v1533 = vxor.u32 %v1524, 2147483648
        %v1534 = vsel %vm1532, %v1533, %v1525
        %v1535 = vsel %vm1528, %v1531, %v1534
        %v1536 = vsel %vm1526, nan, %v1535
        %v1537 = vand.u32 2147483647, %v1171
        %vm1538 = vcmp.le.f32.partialorder %v1537, 0.7853982
        %vm1539 = vcmp.lt.s32.totalorder %v1171, 0
        %v1540 = vand.u32 %v1171, 2139095040
        %v1541 = vshrl.u32 %v1540, 23
        %v1542 = vsub.s32 %v1541, 127
        %v1543 = vand.u32 2147483647, %v1171
        %v1544 = vand.u32 %v1543, 8388607
        %v1545 = vor.u32 %v1544, 8388608
        %v1546 = vsub.s32 0, %v1545
        %v1547 = vadd.s32 %v1542, 1
        %vm1548 = vcmp.gt.s32.totalorder %v1547, 0
        %v1549 = vsel %vm1548, %v1547, 0
        %v1550 = vshrl.u32 %v1549, 5
        %v1551 = vand.u32 %v1549, 31
        %v1552 = vsub.s32 32, %v1551
        %v1553 = vshrl.u32 683565275, %v1552
        %v1554 = vshll.u32 683565275, %v1551
        %v1555 = vshrl.u32 2475754826, %v1552
        %v1556 = vor.u32 %v1554, %v1555
        %v1557 = vshll.u32 2475754826, %v1551
        %v1558 = vshrl.u32 2131351028, %v1552
        %v1559 = vor.u32 %v1557, %v1558
        %v1560 = vshll.u32 2131351028, %v1551
        %v1561 = vshrl.u32 2102212464, %v1552
        %v1562 = vor.u32 %v1560, %v1561
        %v1563 = vshll.u32 2102212464, %v1551
        %v1564 = vshrl.u32 920167782, %v1552
        %v1565 = vor.u32 %v1563, %v1564
        %v1566 = vshll.u32 920167782, %v1551
        %v1567 = vshrl.u32 1326507024, %v1552
        %v1568 = vor.u32 %v1566, %v1567
        %vm1569 = vcmp.lt.s32.totalorder %v1550, 1
        %vm1570 = vcmp.lt.s32.totalorder %v1550, 2
        %vm1571 = vcmp.lt.s32.totalorder %v1550, 3
        %vm1572 = vcmp.lt.s32.totalorder %v1550, 4
        %v1573 = vsel %vm1569, %v1553, %v1556
        %v1574 = vsel %vm1572, %v1562, 2102212464
        %v1575 = vsel %vm1571, %v1559, %v1574
        %v1576 = vsel %vm1570, %v1573, %v1575
        %v1577 = vsel %vm1569, %v1556, %v1559
        %v1578 = vsel %vm1572, %v1565, 920167782
        %v1579 = vsel %vm1571, %v1562, %v1578
        %v1580 = vsel %vm1570, %v1577, %v1579
        %v1581 = vsel %vm1569, %v1559, %v1562
        %v1582 = vsel %vm1572, %v1568, 1326507024
        %v1583 = vsel %vm1571, %v1565, %v1582
        %v1584 = vsel %vm1570, %v1581, %v1583
        %v1585 = vshll.u32 %v1545, 8
        %v1586 = vmul.u32.u64.compose %v1585, %v1584
        %v1587 = vextract.low.u32 %v1586
        %v1588 = vextract.high.u32 %v1586
        %v1589 = vmul.u32.u64.compose %v1585, %v1580
        %v1590 = vextract.low.u32 %v1589
        %v1591 = vextract.high.u32 %v1589
        %v1592 = vmul.u32 %v1585, %v1576
        %v1593 = vadd.s32 %v1588, %v1590
        %vm1594 = vc.u32 %v1588, %v1590
        %v1595 = vadd.s32 %v1591, 1
        %v1596 = vsel %vm1594, %v1595, %v1591
        %v1597 = vadd.s32 %v1592, %v1596
        %v1598 = vadd.s32 %v1597, 536870912
        %v1599 = vshrl.u32 %v1598, 30
        %v1600 = vshll.u32 %v1599, 30
        %v1601 = vsub.s32 %v1597, %v1600
        %vm1602 = vcmp.lt.s32.totalorder %v1601, 0
        %v1603 = vsub.s32 0, %v1601
        %v1604 = vsel %vm1602, %v1603, %v1601
        %v1605 = vclz %v1604
        %v1606 = vsub.s32 %v1605, 2
        %vm1607 = vcmp.gt.s32.totalorder 0, %v1606
        %v1608 = vsel %vm1607, 0, %v1606
        %v1609 = vsub.s32 32, %v1608
        %v1610 = vshll.u32 %v1601, %v1608
        %v1611 = vshrl.u32 %v1593, %v1609
        %v1612 = vor.u32 %v1610, %v1611
        %v1613 = vsub.s32 4294967266, %v1608
        %v1614 = vadd.s32 %v1613, 127
        %v1615 = vshll.u32 %v1614, 23
        %v1616 = vor.u32 4788187, %v1615
        %v1617 = vand.u32 2147483647, %v1616
        %v1619 = vcvt.s32.f32 %v1612
        %v1620 = vmul.f32 %v1619, %v1617
        %v1621 = vxor.u32 %v1620, 2147483648
        %v1622 = vsel %vm1539, %v1621, %v1620
        %v1623 = vsub.s32 4, %v1599
        %v1624 = vsel %vm1539, %v1623, %v1599
        %v1625 = vsel %vm1538, %v1171, %v1622
        %v1626 = vsel %vm1538, 0, %v1624
        %v1627 = vcosq.f32.pop %v1625
        %v1628 = vsinq.f32.pop %v1625
        %vm1629 = vweird.f32 %v1171
        %v1630 = vand.u32 %v1626, 3
        %vm1631 = vcmp.lt.s32.totalorder %v1630, 2
        %vm1632 = vcmp.eq.s32.totalorder %v1630, 0
        %v1633 = vxor.u32 %v1628, 2147483648
        %v1634 = vsel %vm1632, %v1627, %v1633
        %vm1635 = vcmp.eq.s32.totalorder %v1630, 2
        %v1636 = vxor.u32 %v1627, 2147483648
        %v1637 = vsel %vm1635, %v1636, %v1628
        %v1638 = vsel %vm1631, %v1634, %v1637
        %v1639 = vsel %vm1629, nan, %v1638
        %v1640 = vand.u32 2147483647, %v1177
        %vm1641 = vcmp.le.f32.partialorder %v1640, 0.7853982
        %vm1642 = vcmp.lt.s32.totalorder %v1177, 0
        %v1643 = vand.u32 %v1177, 2139095040
        %v1644 = vshrl.u32 %v1643, 23
        %v1645 = vsub.s32 %v1644, 127
        %v1646 = vand.u32 2147483647, %v1177
        %v1647 = vand.u32 %v1646, 8388607
        %v1648 = vor.u32 %v1647, 8388608
        %v1649 = vsub.s32 0, %v1648
        %v1650 = vadd.s32 %v1645, 1
        %vm1651 = vcmp.gt.s32.totalorder %v1650, 0
        %v1652 = vsel %vm1651, %v1650, 0
        %v1653 = vshrl.u32 %v1652, 5
        %v1654 = vand.u32 %v1652, 31
        %v1655 = vsub.s32 32, %v1654
        %v1656 = vshrl.u32 683565275, %v1655
        %v1657 = vshll.u32 683565275, %v1654
        %v1658 = vshrl.u32 2475754826, %v1655
        %v1659 = vor.u32 %v1657, %v1658
        %v1660 = vshll.u32 2475754826, %v1654
        %v1661 = vshrl.u32 2131351028, %v1655
        %v1662 = vor.u32 %v1660, %v1661
        %v1663 = vshll.u32 2131351028, %v1654
        %v1664 = vshrl.u32 2102212464, %v1655
        %v1665 = vor.u32 %v1663, %v1664
        %v1666 = vshll.u32 2102212464, %v1654
        %v1667 = vshrl.u32 920167782, %v1655
        %v1668 = vor.u32 %v1666, %v1667
        %v1669 = vshll.u32 920167782, %v1654
        %v1670 = vshrl.u32 1326507024, %v1655
        %v1671 = vor.u32 %v1669, %v1670
        %vm1672 = vcmp.lt.s32.totalorder %v1653, 1
        %vm1673 = vcmp.lt.s32.totalorder %v1653, 2
        %vm1674 = vcmp.lt.s32.totalorder %v1653, 3
        %vm1675 = vcmp.lt.s32.totalorder %v1653, 4
        %v1676 = vsel %vm1672, %v1656, %v1659
        %v1677 = vsel %vm1675, %v1665, 2102212464
        %v1678 = vsel %vm1674, %v1662, %v1677
        %v1679 = vsel %vm1673, %v1676, %v1678
        %v1680 = vsel %vm1672, %v1659, %v1662
        %v1681 = vsel %vm1675, %v1668, 920167782
        %v1682 = vsel %vm1674, %v1665, %v1681
        %v1683 = vsel %vm1673, %v1680, %v1682
        %v1684 = vsel %vm1672, %v1662, %v1665
        %v1685 = vsel %vm1675, %v1671, 1326507024
        %v1686 = vsel %vm1674, %v1668, %v1685
        %v1687 = vsel %vm1673, %v1684, %v1686
        %v1688 = vshll.u32 %v1648, 8
        %v1689 = vmul.u32.u64.compose %v1688, %v1687
        %v1690 = vextract.low.u32 %v1689
        %v1691 = vextract.high.u32 %v1689
        %v1692 = vmul.u32.u64.compose %v1688, %v1683
        %v1693 = vextract.low.u32 %v1692
        %v1694 = vextract.high.u32 %v1692
        %v1695 = vmul.u32 %v1688, %v1679
        %v1696 = vadd.s32 %v1691, %v1693
        %vm1697 = vc.u32 %v1691, %v1693
        %v1698 = vadd.s32 %v1694, 1
        %v1699 = vsel %vm1697, %v1698, %v1694
        %v1700 = vadd.s32 %v1695, %v1699
        %v1701 = vadd.s32 %v1700, 536870912
        %v1702 = vshrl.u32 %v1701, 30
        %v1703 = vshll.u32 %v1702, 30
        %v1704 = vsub.s32 %v1700, %v1703
        %vm1705 = vcmp.lt.s32.totalorder %v1704, 0
        %v1706 = vsub.s32 0, %v1704
        %v1707 = vsel %vm1705, %v1706, %v1704
        %v1708 = vclz %v1707
        %v1709 = vsub.s32 %v1708, 2
        %vm1710 = vcmp.gt.s32.totalorder 0, %v1709
        %v1711 = vsel %vm1710, 0, %v1709
        %v1712 = vsub.s32 32, %v1711
        %v1713 = vshll.u32 %v1704, %v1711
        %v1714 = vshrl.u32 %v1696, %v1712
        %v1715 = vor.u32 %v1713, %v1714
        %v1716 = vsub.s32 4294967266, %v1711
        %v1717 = vadd.s32 %v1716, 127
        %v1718 = vshll.u32 %v1717, 23
        %v1719 = vor.u32 4788187, %v1718
        %v1720 = vand.u32 2147483647, %v1719
        %v1722 = vcvt.s32.f32 %v1715
        %v1723 = vmul.f32 %v1722, %v1720
        %v1724 = vxor.u32 %v1723, 2147483648
        %v1725 = vsel %vm1642, %v1724, %v1723
        %v1726 = vsub.s32 4, %v1702
        %v1727 = vsel %vm1642, %v1726, %v1702
        %v1728 = vsel %vm1641, %v1177, %v1725
        %v1729 = vsel %vm1641, 0, %v1727
        %v1730 = vcosq.f32.pop %v1728
        %v1731 = vsinq.f32.pop %v1728
        %vm1732 = vweird.f32 %v1177
        %v1733 = vand.u32 %v1729, 3
        %vm1734 = vcmp.lt.s32.totalorder %v1733, 2
        %vm1735 = vcmp.eq.s32.totalorder %v1733, 0
        %v1736 = vxor.u32 %v1731, 2147483648
        %v1737 = vsel %vm1735, %v1730, %v1736
        %vm1738 = vcmp.eq.s32.totalorder %v1733, 2
        %v1739 = vxor.u32 %v1730, 2147483648
        %v1740 = vsel %vm1738, %v1739, %v1731
        %v1741 = vsel %vm1734, %v1737, %v1740
        %v1742 = vsel %vm1732, nan, %v1741
        %v1743 = vand.u32 2147483647, %v1183
        %vm1744 = vcmp.le.f32.partialorder %v1743, 0.7853982
        %vm1745 = vcmp.lt.s32.totalorder %v1183, 0
        %v1746 = vand.u32 %v1183, 2139095040
        %v1747 = vshrl.u32 %v1746, 23
        %v1748 = vsub.s32 %v1747, 127
        %v1749 = vand.u32 2147483647, %v1183
        %v1750 = vand.u32 %v1749, 8388607
        %v1751 = vor.u32 %v1750, 8388608
        %v1752 = vsub.s32 0, %v1751
        %v1753 = vadd.s32 %v1748, 1
        %vm1754 = vcmp.gt.s32.totalorder %v1753, 0
        %v1755 = vsel %vm1754, %v1753, 0
        %v1756 = vshrl.u32 %v1755, 5
        %v1757 = vand.u32 %v1755, 31
        %v1758 = vsub.s32 32, %v1757
        %v1759 = vshrl.u32 683565275, %v1758
        %v1760 = vshll.u32 683565275, %v1757
        %v1761 = vshrl.u32 2475754826, %v1758
        %v1762 = vor.u32 %v1760, %v1761
        %v1763 = vshll.u32 2475754826, %v1757
        %v1764 = vshrl.u32 2131351028, %v1758
        %v1765 = vor.u32 %v1763, %v1764
        %v1766 = vshll.u32 2131351028, %v1757
        %v1767 = vshrl.u32 2102212464, %v1758
        %v1768 = vor.u32 %v1766, %v1767
        %v1769 = vshll.u32 2102212464, %v1757
        %v1770 = vshrl.u32 920167782, %v1758
        %v1771 = vor.u32 %v1769, %v1770
        %v1772 = vshll.u32 920167782, %v1757
        %v1773 = vshrl.u32 1326507024, %v1758
        %v1774 = vor.u32 %v1772, %v1773
        %vm1775 = vcmp.lt.s32.totalorder %v1756, 1
        %vm1776 = vcmp.lt.s32.totalorder %v1756, 2
        %vm1777 = vcmp.lt.s32.totalorder %v1756, 3
        %vm1778 = vcmp.lt.s32.totalorder %v1756, 4
        %v1779 = vsel %vm1775, %v1759, %v1762
        %v1780 = vsel %vm1778, %v1768, 2102212464
        %v1781 = vsel %vm1777, %v1765, %v1780
        %v1782 = vsel %vm1776, %v1779, %v1781
        %v1783 = vsel %vm1775, %v1762, %v1765
        %v1784 = vsel %vm1778, %v1771, 920167782
        %v1785 = vsel %vm1777, %v1768, %v1784
        %v1786 = vsel %vm1776, %v1783, %v1785
        %v1787 = vsel %vm1775, %v1765, %v1768
        %v1788 = vsel %vm1778, %v1774, 1326507024
        %v1789 = vsel %vm1777, %v1771, %v1788
        %v1790 = vsel %vm1776, %v1787, %v1789
        %v1791 = vshll.u32 %v1751, 8
        %v1792 = vmul.u32.u64.compose %v1791, %v1790
        %v1793 = vextract.low.u32 %v1792
        %v1794 = vextract.high.u32 %v1792
        %v1795 = vmul.u32.u64.compose %v1791, %v1786
        %v1796 = vextract.low.u32 %v1795
        %v1797 = vextract.high.u32 %v1795
        %v1798 = vmul.u32 %v1791, %v1782
        %v1799 = vadd.s32 %v1794, %v1796
        %vm1800 = vc.u32 %v1794, %v1796
        %v1801 = vadd.s32 %v1797, 1
        %v1802 = vsel %vm1800, %v1801, %v1797
        %v1803 = vadd.s32 %v1798, %v1802
        %v1804 = vadd.s32 %v1803, 536870912
        %v1805 = vshrl.u32 %v1804, 30
        %v1806 = vshll.u32 %v1805, 30
        %v1807 = vsub.s32 %v1803, %v1806
        %vm1808 = vcmp.lt.s32.totalorder %v1807, 0
        %v1809 = vsub.s32 0, %v1807
        %v1810 = vsel %vm1808, %v1809, %v1807
        %v1811 = vclz %v1810
        %v1812 = vsub.s32 %v1811, 2
        %vm1813 = vcmp.gt.s32.totalorder 0, %v1812
        %v1814 = vsel %vm1813, 0, %v1812
        %v1815 = vsub.s32 32, %v1814
        %v1816 = vshll.u32 %v1807, %v1814
        %v1817 = vshrl.u32 %v1799, %v1815
        %v1818 = vor.u32 %v1816, %v1817
        %v1819 = vsub.s32 4294967266, %v1814
        %v1820 = vadd.s32 %v1819, 127
        %v1821 = vshll.u32 %v1820, 23
        %v1822 = vor.u32 4788187, %v1821
        %v1823 = vand.u32 2147483647, %v1822
        %v1825 = vcvt.s32.f32 %v1818
        %v1826 = vmul.f32 %v1825, %v1823
        %v1827 = vxor.u32 %v1826, 2147483648
        %v1828 = vsel %vm1745, %v1827, %v1826
        %v1829 = vsub.s32 4, %v1805
        %v1830 = vsel %vm1745, %v1829, %v1805
        %v1831 = vsel %vm1744, %v1183, %v1828
        %v1832 = vsel %vm1744, 0, %v1830
        %v1833 = vcosq.f32.pop %v1831
        %v1834 = vsinq.f32.pop %v1831
        %vm1835 = vweird.f32 %v1183
        %v1836 = vand.u32 %v1832, 3
        %vm1837 = vcmp.lt.s32.totalorder %v1836, 2
        %vm1838 = vcmp.eq.s32.totalorder %v1836, 0
        %v1839 = vxor.u32 %v1834, 2147483648
        %v1840 = vsel %vm1838, %v1833, %v1839
        %vm1841 = vcmp.eq.s32.totalorder %v1836, 2
        %v1842 = vxor.u32 %v1833, 2147483648
        %v1843 = vsel %vm1841, %v1842, %v1834
        %v1844 = vsel %vm1837, %v1840, %v1843
        %v1845 = vsel %vm1835, nan, %v1844
        %v1846 = vand.u32 2147483647, %v1189
        %vm1847 = vcmp.le.f32.partialorder %v1846, 0.7853982
        %vm1848 = vcmp.lt.s32.totalorder %v1189, 0
        %v1849 = vand.u32 %v1189, 2139095040
        %v1850 = vshrl.u32 %v1849, 23
        %v1851 = vsub.s32 %v1850, 127
        %v1852 = vand.u32 2147483647, %v1189
        %v1853 = vand.u32 %v1852, 8388607
        %v1854 = vor.u32 %v1853, 8388608
        %v1855 = vsub.s32 0, %v1854
        %v1856 = vadd.s32 %v1851, 1
        %vm1857 = vcmp.gt.s32.totalorder %v1856, 0
        %v1858 = vsel %vm1857, %v1856, 0
        %v1859 = vshrl.u32 %v1858, 5
        %v1860 = vand.u32 %v1858, 31
        %v1861 = vsub.s32 32, %v1860
        %v1862 = vshrl.u32 683565275, %v1861
        %v1863 = vshll.u32 683565275, %v1860
        %v1864 = vshrl.u32 2475754826, %v1861
        %v1865 = vor.u32 %v1863, %v1864
        %v1866 = vshll.u32 2475754826, %v1860
        %v1867 = vshrl.u32 2131351028, %v1861
        %v1868 = vor.u32 %v1866, %v1867
        %v1869 = vshll.u32 2131351028, %v1860
        %v1870 = vshrl.u32 2102212464, %v1861
        %v1871 = vor.u32 %v1869, %v1870
        %v1872 = vshll.u32 2102212464, %v1860
        %v1873 = vshrl.u32 920167782, %v1861
        %v1874 = vor.u32 %v1872, %v1873
        %v1875 = vshll.u32 920167782, %v1860
        %v1876 = vshrl.u32 1326507024, %v1861
        %v1877 = vor.u32 %v1875, %v1876
        %vm1878 = vcmp.lt.s32.totalorder %v1859, 1
        %vm1879 = vcmp.lt.s32.totalorder %v1859, 2
        %vm1880 = vcmp.lt.s32.totalorder %v1859, 3
        %vm1881 = vcmp.lt.s32.totalorder %v1859, 4
        %v1882 = vsel %vm1878, %v1862, %v1865
        %v1883 = vsel %vm1881, %v1871, 2102212464
        %v1884 = vsel %vm1880, %v1868, %v1883
        %v1885 = vsel %vm1879, %v1882, %v1884
        %v1886 = vsel %vm1878, %v1865, %v1868
        %v1887 = vsel %vm1881, %v1874, 920167782
        %v1888 = vsel %vm1880, %v1871, %v1887
        %v1889 = vsel %vm1879, %v1886, %v1888
        %v1890 = vsel %vm1878, %v1868, %v1871
        %v1891 = vsel %vm1881, %v1877, 1326507024
        %v1892 = vsel %vm1880, %v1874, %v1891
        %v1893 = vsel %vm1879, %v1890, %v1892
        %v1894 = vshll.u32 %v1854, 8
        %v1895 = vmul.u32.u64.compose %v1894, %v1893
        %v1896 = vextract.low.u32 %v1895
        %v1897 = vextract.high.u32 %v1895
        %v1898 = vmul.u32.u64.compose %v1894, %v1889
        %v1899 = vextract.low.u32 %v1898
        %v1900 = vextract.high.u32 %v1898
        %v1901 = vmul.u32 %v1894, %v1885
        %v1902 = vadd.s32 %v1897, %v1899
        %vm1903 = vc.u32 %v1897, %v1899
        %v1904 = vadd.s32 %v1900, 1
        %v1905 = vsel %vm1903, %v1904, %v1900
        %v1906 = vadd.s32 %v1901, %v1905
        %v1907 = vadd.s32 %v1906, 536870912
        %v1908 = vshrl.u32 %v1907, 30
        %v1909 = vshll.u32 %v1908, 30
        %v1910 = vsub.s32 %v1906, %v1909
        %vm1911 = vcmp.lt.s32.totalorder %v1910, 0
        %v1912 = vsub.s32 0, %v1910
        %v1913 = vsel %vm1911, %v1912, %v1910
        %v1914 = vclz %v1913
        %v1915 = vsub.s32 %v1914, 2
        %vm1916 = vcmp.gt.s32.totalorder 0, %v1915
        %v1917 = vsel %vm1916, 0, %v1915
        %v1918 = vsub.s32 32, %v1917
        %v1919 = vshll.u32 %v1910, %v1917
        %v1920 = vshrl.u32 %v1902, %v1918
        %v1921 = vor.u32 %v1919, %v1920
        %v1922 = vsub.s32 4294967266, %v1917
        %v1923 = vadd.s32 %v1922, 127
        %v1924 = vshll.u32 %v1923, 23
        %v1925 = vor.u32 4788187, %v1924
        %v1926 = vand.u32 2147483647, %v1925
        %v1928 = vcvt.s32.f32 %v1921
        %v1929 = vmul.f32 %v1928, %v1926
        %v1930 = vxor.u32 %v1929, 2147483648
        %v1931 = vsel %vm1848, %v1930, %v1929
        %v1932 = vsub.s32 4, %v1908
        %v1933 = vsel %vm1848, %v1932, %v1908
        %v1934 = vsel %vm1847, %v1189, %v1931
        %v1935 = vsel %vm1847, 0, %v1933
        %v1936 = vcosq.f32.pop %v1934
        %v1937 = vsinq.f32.pop %v1934
        %vm1938 = vweird.f32 %v1189
        %v1939 = vand.u32 %v1935, 3
        %vm1940 = vcmp.lt.s32.totalorder %v1939, 2
        %vm1941 = vcmp.eq.s32.totalorder %v1939, 0
        %v1942 = vxor.u32 %v1937, 2147483648
        %v1943 = vsel %vm1941, %v1936, %v1942
        %vm1944 = vcmp.eq.s32.totalorder %v1939, 2
        %v1945 = vxor.u32 %v1936, 2147483648
        %v1946 = vsel %vm1944, %v1945, %v1937
        %v1947 = vsel %vm1940, %v1943, %v1946
        %v1948 = vsel %vm1938, nan, %v1947
        %v1949 = vand.u32 2147483647, %v1195
        %vm1950 = vcmp.le.f32.partialorder %v1949, 0.7853982
        %vm1951 = vcmp.lt.s32.totalorder %v1195, 0
        %v1952 = vand.u32 %v1195, 2139095040
        %v1953 = vshrl.u32 %v1952, 23
        %v1954 = vsub.s32 %v1953, 127
        %v1955 = vand.u32 2147483647, %v1195
        %v1956 = vand.u32 %v1955, 8388607
        %v1957 = vor.u32 %v1956, 8388608
        %v1958 = vsub.s32 0, %v1957
        %v1959 = vadd.s32 %v1954, 1
        %vm1960 = vcmp.gt.s32.totalorder %v1959, 0
        %v1961 = vsel %vm1960, %v1959, 0
        %v1962 = vshrl.u32 %v1961, 5
        %v1963 = vand.u32 %v1961, 31
        %v1964 = vsub.s32 32, %v1963
        %v1965 = vshrl.u32 683565275, %v1964
        %v1966 = vshll.u32 683565275, %v1963
        %v1967 = vshrl.u32 2475754826, %v1964
        %v1968 = vor.u32 %v1966, %v1967
        %v1969 = vshll.u32 2475754826, %v1963
        %v1970 = vshrl.u32 2131351028, %v1964
        %v1971 = vor.u32 %v1969, %v1970
        %v1972 = vshll.u32 2131351028, %v1963
        %v1973 = vshrl.u32 2102212464, %v1964
        %v1974 = vor.u32 %v1972, %v1973
        %v1975 = vshll.u32 2102212464, %v1963
        %v1976 = vshrl.u32 920167782, %v1964
        %v1977 = vor.u32 %v1975, %v1976
        %v1978 = vshll.u32 920167782, %v1963
        %v1979 = vshrl.u32 1326507024, %v1964
        %v1980 = vor.u32 %v1978, %v1979
        %vm1981 = vcmp.lt.s32.totalorder %v1962, 1
        %vm1982 = vcmp.lt.s32.totalorder %v1962, 2
        %vm1983 = vcmp.lt.s32.totalorder %v1962, 3
        %vm1984 = vcmp.lt.s32.totalorder %v1962, 4
        %v1985 = vsel %vm1981, %v1965, %v1968
        %v1986 = vsel %vm1984, %v1974, 2102212464
        %v1987 = vsel %vm1983, %v1971, %v1986
        %v1988 = vsel %vm1982, %v1985, %v1987
        %v1989 = vsel %vm1981, %v1968, %v1971
        %v1990 = vsel %vm1984, %v1977, 920167782
        %v1991 = vsel %vm1983, %v1974, %v1990
        %v1992 = vsel %vm1982, %v1989, %v1991
        %v1993 = vsel %vm1981, %v1971, %v1974
        %v1994 = vsel %vm1984, %v1980, 1326507024
        %v1995 = vsel %vm1983, %v1977, %v1994
        %v1996 = vsel %vm1982, %v1993, %v1995
        %v1997 = vshll.u32 %v1957, 8
        %v1998 = vmul.u32.u64.compose %v1997, %v1996
        %v1999 = vextract.low.u32 %v1998
        %v2000 = vextract.high.u32 %v1998
        %v2001 = vmul.u32.u64.compose %v1997, %v1992
        %v2002 = vextract.low.u32 %v2001
        %v2003 = vextract.high.u32 %v2001
        %v2004 = vmul.u32 %v1997, %v1988
        %v2005 = vadd.s32 %v2000, %v2002
        %vm2006 = vc.u32 %v2000, %v2002
        %v2007 = vadd.s32 %v2003, 1
        %v2008 = vsel %vm2006, %v2007, %v2003
        %v2009 = vadd.s32 %v2004, %v2008
        %v2010 = vadd.s32 %v2009, 536870912
        %v2011 = vshrl.u32 %v2010, 30
        %v2012 = vshll.u32 %v2011, 30
        %v2013 = vsub.s32 %v2009, %v2012
        %vm2014 = vcmp.lt.s32.totalorder %v2013, 0
        %v2015 = vsub.s32 0, %v2013
        %v2016 = vsel %vm2014, %v2015, %v2013
        %v2017 = vclz %v2016
        %v2018 = vsub.s32 %v2017, 2
        %vm2019 = vcmp.gt.s32.totalorder 0, %v2018
        %v2020 = vsel %vm2019, 0, %v2018
        %v2021 = vsub.s32 32, %v2020
        %v2022 = vshll.u32 %v2013, %v2020
        %v2023 = vshrl.u32 %v2005, %v2021
        %v2024 = vor.u32 %v2022, %v2023
        %v2025 = vsub.s32 4294967266, %v2020
        %v2026 = vadd.s32 %v2025, 127
        %v2027 = vshll.u32 %v2026, 23
        %v2028 = vor.u32 4788187, %v2027
        %v2029 = vand.u32 2147483647, %v2028
        %v2031 = vcvt.s32.f32 %v2024
        %v2032 = vmul.f32 %v2031, %v2029
        %v2033 = vxor.u32 %v2032, 2147483648
        %v2034 = vsel %vm1951, %v2033, %v2032
        %v2035 = vsub.s32 4, %v2011
        %v2036 = vsel %vm1951, %v2035, %v2011
        %v2037 = vsel %vm1950, %v1195, %v2034
        %v2038 = vsel %vm1950, 0, %v2036
        %v2039 = vcosq.f32.pop %v2037
        %v2040 = vsinq.f32.pop %v2037
        %vm2041 = vweird.f32 %v1195
        %v2042 = vand.u32 %v2038, 3
        %vm2043 = vcmp.lt.s32.totalorder %v2042, 2
        %vm2044 = vcmp.eq.s32.totalorder %v2042, 0
        %v2045 = vxor.u32 %v2040, 2147483648
        %v2046 = vsel %vm2044, %v2039, %v2045
        %vm2047 = vcmp.eq.s32.totalorder %v2042, 2
        %v2048 = vxor.u32 %v2039, 2147483648
        %v2049 = vsel %vm2047, %v2048, %v2040
        %v2050 = vsel %vm2043, %v2046, %v2049
        %v2051 = vsel %vm2041, nan, %v2050
        %v2052 = vand.u32 2147483647, %v1201
        %vm2053 = vcmp.le.f32.partialorder %v2052, 0.7853982
        %vm2054 = vcmp.lt.s32.totalorder %v1201, 0
        %v2055 = vand.u32 %v1201, 2139095040
        %v2056 = vshrl.u32 %v2055, 23
        %v2057 = vsub.s32 %v2056, 127
        %v2058 = vand.u32 2147483647, %v1201
        %v2059 = vand.u32 %v2058, 8388607
        %v2060 = vor.u32 %v2059, 8388608
        %v2061 = vsub.s32 0, %v2060
        %v2062 = vadd.s32 %v2057, 1
        %vm2063 = vcmp.gt.s32.totalorder %v2062, 0
        %v2064 = vsel %vm2063, %v2062, 0
        %v2065 = vshrl.u32 %v2064, 5
        %v2066 = vand.u32 %v2064, 31
        %v2067 = vsub.s32 32, %v2066
        %v2068 = vshrl.u32 683565275, %v2067
        %v2069 = vshll.u32 683565275, %v2066
        %v2070 = vshrl.u32 2475754826, %v2067
        %v2071 = vor.u32 %v2069, %v2070
        %v2072 = vshll.u32 2475754826, %v2066
        %v2073 = vshrl.u32 2131351028, %v2067
        %v2074 = vor.u32 %v2072, %v2073
        %v2075 = vshll.u32 2131351028, %v2066
        %v2076 = vshrl.u32 2102212464, %v2067
        %v2077 = vor.u32 %v2075, %v2076
        %v2078 = vshll.u32 2102212464, %v2066
        %v2079 = vshrl.u32 920167782, %v2067
        %v2080 = vor.u32 %v2078, %v2079
        %v2081 = vshll.u32 920167782, %v2066
        %v2082 = vshrl.u32 1326507024, %v2067
        %v2083 = vor.u32 %v2081, %v2082
        %vm2084 = vcmp.lt.s32.totalorder %v2065, 1
        %vm2085 = vcmp.lt.s32.totalorder %v2065, 2
        %vm2086 = vcmp.lt.s32.totalorder %v2065, 3
        %vm2087 = vcmp.lt.s32.totalorder %v2065, 4
        %v2088 = vsel %vm2084, %v2068, %v2071
        %v2089 = vsel %vm2087, %v2077, 2102212464
        %v2090 = vsel %vm2086, %v2074, %v2089
        %v2091 = vsel %vm2085, %v2088, %v2090
        %v2092 = vsel %vm2084, %v2071, %v2074
        %v2093 = vsel %vm2087, %v2080, 920167782
        %v2094 = vsel %vm2086, %v2077, %v2093
        %v2095 = vsel %vm2085, %v2092, %v2094
        %v2096 = vsel %vm2084, %v2074, %v2077
        %v2097 = vsel %vm2087, %v2083, 1326507024
        %v2098 = vsel %vm2086, %v2080, %v2097
        %v2099 = vsel %vm2085, %v2096, %v2098
        %v2100 = vshll.u32 %v2060, 8
        %v2101 = vmul.u32.u64.compose %v2100, %v2099
        %v2102 = vextract.low.u32 %v2101
        %v2103 = vextract.high.u32 %v2101
        %v2104 = vmul.u32.u64.compose %v2100, %v2095
        %v2105 = vextract.low.u32 %v2104
        %v2106 = vextract.high.u32 %v2104
        %v2107 = vmul.u32 %v2100, %v2091
        %v2108 = vadd.s32 %v2103, %v2105
        %vm2109 = vc.u32 %v2103, %v2105
        %v2110 = vadd.s32 %v2106, 1
        %v2111 = vsel %vm2109, %v2110, %v2106
        %v2112 = vadd.s32 %v2107, %v2111
        %v2113 = vadd.s32 %v2112, 536870912
        %v2114 = vshrl.u32 %v2113, 30
        %v2115 = vshll.u32 %v2114, 30
        %v2116 = vsub.s32 %v2112, %v2115
        %vm2117 = vcmp.lt.s32.totalorder %v2116, 0
        %v2118 = vsub.s32 0, %v2116
        %v2119 = vsel %vm2117, %v2118, %v2116
        %v2120 = vclz %v2119
        %v2121 = vsub.s32 %v2120, 2
        %vm2122 = vcmp.gt.s32.totalorder 0, %v2121
        %v2123 = vsel %vm2122, 0, %v2121
        %v2124 = vsub.s32 32, %v2123
        %v2125 = vshll.u32 %v2116, %v2123
        %v2126 = vshrl.u32 %v2108, %v2124
        %v2127 = vor.u32 %v2125, %v2126
        %v2128 = vsub.s32 4294967266, %v2123
        %v2129 = vadd.s32 %v2128, 127
        %v2130 = vshll.u32 %v2129, 23
        %v2131 = vor.u32 4788187, %v2130
        %v2132 = vand.u32 2147483647, %v2131
        %v2134 = vcvt.s32.f32 %v2127
        %v2135 = vmul.f32 %v2134, %v2132
        %v2136 = vxor.u32 %v2135, 2147483648
        %v2137 = vsel %vm2054, %v2136, %v2135
        %v2138 = vsub.s32 4, %v2114
        %v2139 = vsel %vm2054, %v2138, %v2114
        %v2140 = vsel %vm2053, %v1201, %v2137
        %v2141 = vsel %vm2053, 0, %v2139
        %v2142 = vcosq.f32.pop %v2140
        %v2143 = vsinq.f32.pop %v2140
        %vm2144 = vweird.f32 %v1201
        %v2145 = vand.u32 %v2141, 3
        %vm2146 = vcmp.lt.s32.totalorder %v2145, 2
        %vm2147 = vcmp.eq.s32.totalorder %v2145, 0
        %v2148 = vxor.u32 %v2143, 2147483648
        %v2149 = vsel %vm2147, %v2142, %v2148
        %vm2150 = vcmp.eq.s32.totalorder %v2145, 2
        %v2151 = vxor.u32 %v2142, 2147483648
        %v2152 = vsel %vm2150, %v2151, %v2143
        %v2153 = vsel %vm2146, %v2149, %v2152
        %v2154 = vsel %vm2144, nan, %v2153
        %v2155 = vand.u32 2147483647, %v1207
        %vm2156 = vcmp.le.f32.partialorder %v2155, 0.7853982
        %vm2157 = vcmp.lt.s32.totalorder %v1207, 0
        %v2158 = vand.u32 %v1207, 2139095040
        %v2159 = vshrl.u32 %v2158, 23
        %v2160 = vsub.s32 %v2159, 127
        %v2161 = vand.u32 2147483647, %v1207
        %v2162 = vand.u32 %v2161, 8388607
        %v2163 = vor.u32 %v2162, 8388608
        %v2164 = vsub.s32 0, %v2163
        %v2165 = vadd.s32 %v2160, 1
        %vm2166 = vcmp.gt.s32.totalorder %v2165, 0
        %v2167 = vsel %vm2166, %v2165, 0
        %v2168 = vshrl.u32 %v2167, 5
        %v2169 = vand.u32 %v2167, 31
        %v2170 = vsub.s32 32, %v2169
        %v2171 = vshrl.u32 683565275, %v2170
        %v2172 = vshll.u32 683565275, %v2169
        %v2173 = vshrl.u32 2475754826, %v2170
        %v2174 = vor.u32 %v2172, %v2173
        %v2175 = vshll.u32 2475754826, %v2169
        %v2176 = vshrl.u32 2131351028, %v2170
        %v2177 = vor.u32 %v2175, %v2176
        %v2178 = vshll.u32 2131351028, %v2169
        %v2179 = vshrl.u32 2102212464, %v2170
        %v2180 = vor.u32 %v2178, %v2179
        %v2181 = vshll.u32 2102212464, %v2169
        %v2182 = vshrl.u32 920167782, %v2170
        %v2183 = vor.u32 %v2181, %v2182
        %v2184 = vshll.u32 920167782, %v2169
        %v2185 = vshrl.u32 1326507024, %v2170
        %v2186 = vor.u32 %v2184, %v2185
        %vm2187 = vcmp.lt.s32.totalorder %v2168, 1
        %vm2188 = vcmp.lt.s32.totalorder %v2168, 2
        %vm2189 = vcmp.lt.s32.totalorder %v2168, 3
        %vm2190 = vcmp.lt.s32.totalorder %v2168, 4
        %v2191 = vsel %vm2187, %v2171, %v2174
        %v2192 = vsel %vm2190, %v2180, 2102212464
        %v2193 = vsel %vm2189, %v2177, %v2192
        %v2194 = vsel %vm2188, %v2191, %v2193
        %v2195 = vsel %vm2187, %v2174, %v2177
        %v2196 = vsel %vm2190, %v2183, 920167782
        %v2197 = vsel %vm2189, %v2180, %v2196
        %v2198 = vsel %vm2188, %v2195, %v2197
        %v2199 = vsel %vm2187, %v2177, %v2180
        %v2200 = vsel %vm2190, %v2186, 1326507024
        %v2201 = vsel %vm2189, %v2183, %v2200
        %v2202 = vsel %vm2188, %v2199, %v2201
        %v2203 = vshll.u32 %v2163, 8
        %v2204 = vmul.u32.u64.compose %v2203, %v2202
        %v2205 = vextract.low.u32 %v2204
        %v2206 = vextract.high.u32 %v2204
        %v2207 = vmul.u32.u64.compose %v2203, %v2198
        %v2208 = vextract.low.u32 %v2207
        %v2209 = vextract.high.u32 %v2207
        %v2210 = vmul.u32 %v2203, %v2194
        %v2211 = vadd.s32 %v2206, %v2208
        %vm2212 = vc.u32 %v2206, %v2208
        %v2213 = vadd.s32 %v2209, 1
        %v2214 = vsel %vm2212, %v2213, %v2209
        %v2215 = vadd.s32 %v2210, %v2214
        %v2216 = vadd.s32 %v2215, 536870912
        %v2217 = vshrl.u32 %v2216, 30
        %v2218 = vshll.u32 %v2217, 30
        %v2219 = vsub.s32 %v2215, %v2218
        %vm2220 = vcmp.lt.s32.totalorder %v2219, 0
        %v2221 = vsub.s32 0, %v2219
        %v2222 = vsel %vm2220, %v2221, %v2219
        %v2223 = vclz %v2222
        %v2224 = vsub.s32 %v2223, 2
        %vm2225 = vcmp.gt.s32.totalorder 0, %v2224
        %v2226 = vsel %vm2225, 0, %v2224
        %v2227 = vsub.s32 32, %v2226
        %v2228 = vshll.u32 %v2219, %v2226
        %v2229 = vshrl.u32 %v2211, %v2227
        %v2230 = vor.u32 %v2228, %v2229
        %v2231 = vsub.s32 4294967266, %v2226
        %v2232 = vadd.s32 %v2231, 127
        %v2233 = vshll.u32 %v2232, 23
        %v2234 = vor.u32 4788187, %v2233
        %v2235 = vand.u32 2147483647, %v2234
        %v2237 = vcvt.s32.f32 %v2230
        %v2238 = vmul.f32 %v2237, %v2235
        %v2239 = vxor.u32 %v2238, 2147483648
        %v2240 = vsel %vm2157, %v2239, %v2238
        %v2241 = vsub.s32 4, %v2217
        %v2242 = vsel %vm2157, %v2241, %v2217
        %v2243 = vsel %vm2156, %v1207, %v2240
        %v2244 = vsel %vm2156, 0, %v2242
        %v2245 = vcosq.f32.pop %v2243
        %v2246 = vsinq.f32.pop %v2243
        %vm2247 = vweird.f32 %v1207
        %v2248 = vand.u32 %v2244, 3
        %vm2249 = vcmp.lt.s32.totalorder %v2248, 2
        %vm2250 = vcmp.eq.s32.totalorder %v2248, 0
        %v2251 = vxor.u32 %v2246, 2147483648
        %v2252 = vsel %vm2250, %v2245, %v2251
        %vm2253 = vcmp.eq.s32.totalorder %v2248, 2
        %v2254 = vxor.u32 %v2245, 2147483648
        %v2255 = vsel %vm2253, %v2254, %v2246
        %v2256 = vsel %vm2249, %v2252, %v2255
        %v2257 = vsel %vm2247, nan, %v2256
        %v2258 = vand.u32 2147483647, %v1213
        %vm2259 = vcmp.le.f32.partialorder %v2258, 0.7853982
        %vm2260 = vcmp.lt.s32.totalorder %v1213, 0
        %v2261 = vand.u32 %v1213, 2139095040
        %v2262 = vshrl.u32 %v2261, 23
        %v2263 = vsub.s32 %v2262, 127
        %v2264 = vand.u32 2147483647, %v1213
        %v2265 = vand.u32 %v2264, 8388607
        %v2266 = vor.u32 %v2265, 8388608
        %v2267 = vsub.s32 0, %v2266
        %v2268 = vadd.s32 %v2263, 1
        %vm2269 = vcmp.gt.s32.totalorder %v2268, 0
        %v2270 = vsel %vm2269, %v2268, 0
        %v2271 = vshrl.u32 %v2270, 5
        %v2272 = vand.u32 %v2270, 31
        %v2273 = vsub.s32 32, %v2272
        %v2274 = vshrl.u32 683565275, %v2273
        %v2275 = vshll.u32 683565275, %v2272
        %v2276 = vshrl.u32 2475754826, %v2273
        %v2277 = vor.u32 %v2275, %v2276
        %v2278 = vshll.u32 2475754826, %v2272
        %v2279 = vshrl.u32 2131351028, %v2273
        %v2280 = vor.u32 %v2278, %v2279
        %v2281 = vshll.u32 2131351028, %v2272
        %v2282 = vshrl.u32 2102212464, %v2273
        %v2283 = vor.u32 %v2281, %v2282
        %v2284 = vshll.u32 2102212464, %v2272
        %v2285 = vshrl.u32 920167782, %v2273
        %v2286 = vor.u32 %v2284, %v2285
        %v2287 = vshll.u32 920167782, %v2272
        %v2288 = vshrl.u32 1326507024, %v2273
        %v2289 = vor.u32 %v2287, %v2288
        %vm2290 = vcmp.lt.s32.totalorder %v2271, 1
        %vm2291 = vcmp.lt.s32.totalorder %v2271, 2
        %vm2292 = vcmp.lt.s32.totalorder %v2271, 3
        %vm2293 = vcmp.lt.s32.totalorder %v2271, 4
        %v2294 = vsel %vm2290, %v2274, %v2277
        %v2295 = vsel %vm2293, %v2283, 2102212464
        %v2296 = vsel %vm2292, %v2280, %v2295
        %v2297 = vsel %vm2291, %v2294, %v2296
        %v2298 = vsel %vm2290, %v2277, %v2280
        %v2299 = vsel %vm2293, %v2286, 920167782
        %v2300 = vsel %vm2292, %v2283, %v2299
        %v2301 = vsel %vm2291, %v2298, %v2300
        %v2302 = vsel %vm2290, %v2280, %v2283
        %v2303 = vsel %vm2293, %v2289, 1326507024
        %v2304 = vsel %vm2292, %v2286, %v2303
        %v2305 = vsel %vm2291, %v2302, %v2304
        %v2306 = vshll.u32 %v2266, 8
        %v2307 = vmul.u32.u64.compose %v2306, %v2305
        %v2308 = vextract.low.u32 %v2307
        %v2309 = vextract.high.u32 %v2307
        %v2310 = vmul.u32.u64.compose %v2306, %v2301
        %v2311 = vextract.low.u32 %v2310
        %v2312 = vextract.high.u32 %v2310
        %v2313 = vmul.u32 %v2306, %v2297
        %v2314 = vadd.s32 %v2309, %v2311
        %vm2315 = vc.u32 %v2309, %v2311
        %v2316 = vadd.s32 %v2312, 1
        %v2317 = vsel %vm2315, %v2316, %v2312
        %v2318 = vadd.s32 %v2313, %v2317
        %v2319 = vadd.s32 %v2318, 536870912
        %v2320 = vshrl.u32 %v2319, 30
        %v2321 = vshll.u32 %v2320, 30
        %v2322 = vsub.s32 %v2318, %v2321
        %vm2323 = vcmp.lt.s32.totalorder %v2322, 0
        %v2324 = vsub.s32 0, %v2322
        %v2325 = vsel %vm2323, %v2324, %v2322
        %v2326 = vclz %v2325
        %v2327 = vsub.s32 %v2326, 2
        %vm2328 = vcmp.gt.s32.totalorder 0, %v2327
        %v2329 = vsel %vm2328, 0, %v2327
        %v2330 = vsub.s32 32, %v2329
        %v2331 = vshll.u32 %v2322, %v2329
        %v2332 = vshrl.u32 %v2314, %v2330
        %v2333 = vor.u32 %v2331, %v2332
        %v2334 = vsub.s32 4294967266, %v2329
        %v2335 = vadd.s32 %v2334, 127
        %v2336 = vshll.u32 %v2335, 23
        %v2337 = vor.u32 4788187, %v2336
        %v2338 = vand.u32 2147483647, %v2337
        %v2340 = vcvt.s32.f32 %v2333
        %v2341 = vmul.f32 %v2340, %v2338
        %v2342 = vxor.u32 %v2341, 2147483648
        %v2343 = vsel %vm2260, %v2342, %v2341
        %v2344 = vsub.s32 4, %v2320
        %v2345 = vsel %vm2260, %v2344, %v2320
        %v2346 = vsel %vm2259, %v1213, %v2343
        %v2347 = vsel %vm2259, 0, %v2345
        %v2348 = vcosq.f32.pop %v2346
        %v2349 = vsinq.f32.pop %v2346
        %vm2350 = vweird.f32 %v1213
        %v2351 = vand.u32 %v2347, 3
        %vm2352 = vcmp.lt.s32.totalorder %v2351, 2
        %vm2353 = vcmp.eq.s32.totalorder %v2351, 0
        %v2354 = vxor.u32 %v2349, 2147483648
        %v2355 = vsel %vm2353, %v2348, %v2354
        %vm2356 = vcmp.eq.s32.totalorder %v2351, 2
        %v2357 = vxor.u32 %v2348, 2147483648
        %v2358 = vsel %vm2356, %v2357, %v2349
        %v2359 = vsel %vm2352, %v2355, %v2358
        %v2360 = vsel %vm2350, nan, %v2359
        %v2361 = vand.u32 2147483647, %v1219
        %vm2362 = vcmp.le.f32.partialorder %v2361, 0.7853982
        %vm2363 = vcmp.lt.s32.totalorder %v1219, 0
        %v2364 = vand.u32 %v1219, 2139095040
        %v2365 = vshrl.u32 %v2364, 23
        %v2366 = vsub.s32 %v2365, 127
        %v2367 = vand.u32 2147483647, %v1219
        %v2368 = vand.u32 %v2367, 8388607
        %v2369 = vor.u32 %v2368, 8388608
        %v2370 = vsub.s32 0, %v2369
        %v2371 = vadd.s32 %v2366, 1
        %vm2372 = vcmp.gt.s32.totalorder %v2371, 0
        %v2373 = vsel %vm2372, %v2371, 0
        %v2374 = vshrl.u32 %v2373, 5
        %v2375 = vand.u32 %v2373, 31
        %v2376 = vsub.s32 32, %v2375
        %v2377 = vshrl.u32 683565275, %v2376
        %v2378 = vshll.u32 683565275, %v2375
        %v2379 = vshrl.u32 2475754826, %v2376
        %v2380 = vor.u32 %v2378, %v2379
        %v2381 = vshll.u32 2475754826, %v2375
        %v2382 = vshrl.u32 2131351028, %v2376
        %v2383 = vor.u32 %v2381, %v2382
        %v2384 = vshll.u32 2131351028, %v2375
        %v2385 = vshrl.u32 2102212464, %v2376
        %v2386 = vor.u32 %v2384, %v2385
        %v2387 = vshll.u32 2102212464, %v2375
        %v2388 = vshrl.u32 920167782, %v2376
        %v2389 = vor.u32 %v2387, %v2388
        %v2390 = vshll.u32 920167782, %v2375
        %v2391 = vshrl.u32 1326507024, %v2376
        %v2392 = vor.u32 %v2390, %v2391
        %vm2393 = vcmp.lt.s32.totalorder %v2374, 1
        %vm2394 = vcmp.lt.s32.totalorder %v2374, 2
        %vm2395 = vcmp.lt.s32.totalorder %v2374, 3
        %vm2396 = vcmp.lt.s32.totalorder %v2374, 4
        %v2397 = vsel %vm2393, %v2377, %v2380
        %v2398 = vsel %vm2396, %v2386, 2102212464
        %v2399 = vsel %vm2395, %v2383, %v2398
        %v2400 = vsel %vm2394, %v2397, %v2399
        %v2401 = vsel %vm2393, %v2380, %v2383
        %v2402 = vsel %vm2396, %v2389, 920167782
        %v2403 = vsel %vm2395, %v2386, %v2402
        %v2404 = vsel %vm2394, %v2401, %v2403
        %v2405 = vsel %vm2393, %v2383, %v2386
        %v2406 = vsel %vm2396, %v2392, 1326507024
        %v2407 = vsel %vm2395, %v2389, %v2406
        %v2408 = vsel %vm2394, %v2405, %v2407
        %v2409 = vshll.u32 %v2369, 8
        %v2410 = vmul.u32.u64.compose %v2409, %v2408
        %v2411 = vextract.low.u32 %v2410
        %v2412 = vextract.high.u32 %v2410
        %v2413 = vmul.u32.u64.compose %v2409, %v2404
        %v2414 = vextract.low.u32 %v2413
        %v2415 = vextract.high.u32 %v2413
        %v2416 = vmul.u32 %v2409, %v2400
        %v2417 = vadd.s32 %v2412, %v2414
        %vm2418 = vc.u32 %v2412, %v2414
        %v2419 = vadd.s32 %v2415, 1
        %v2420 = vsel %vm2418, %v2419, %v2415
        %v2421 = vadd.s32 %v2416, %v2420
        %v2422 = vadd.s32 %v2421, 536870912
        %v2423 = vshrl.u32 %v2422, 30
        %v2424 = vshll.u32 %v2423, 30
        %v2425 = vsub.s32 %v2421, %v2424
        %vm2426 = vcmp.lt.s32.totalorder %v2425, 0
        %v2427 = vsub.s32 0, %v2425
        %v2428 = vsel %vm2426, %v2427, %v2425
        %v2429 = vclz %v2428
        %v2430 = vsub.s32 %v2429, 2
        %vm2431 = vcmp.gt.s32.totalorder 0, %v2430
        %v2432 = vsel %vm2431, 0, %v2430
        %v2433 = vsub.s32 32, %v2432
        %v2434 = vshll.u32 %v2425, %v2432
        %v2435 = vshrl.u32 %v2417, %v2433
        %v2436 = vor.u32 %v2434, %v2435
        %v2437 = vsub.s32 4294967266, %v2432
        %v2438 = vadd.s32 %v2437, 127
        %v2439 = vshll.u32 %v2438, 23
        %v2440 = vor.u32 4788187, %v2439
        %v2441 = vand.u32 2147483647, %v2440
        %v2443 = vcvt.s32.f32 %v2436
        %v2444 = vmul.f32 %v2443, %v2441
        %v2445 = vxor.u32 %v2444, 2147483648
        %v2446 = vsel %vm2363, %v2445, %v2444
        %v2447 = vsub.s32 4, %v2423
        %v2448 = vsel %vm2363, %v2447, %v2423
        %v2449 = vsel %vm2362, %v1219, %v2446
        %v2450 = vsel %vm2362, 0, %v2448
        %v2451 = vcosq.f32.pop %v2449
        %v2452 = vsinq.f32.pop %v2449
        %vm2453 = vweird.f32 %v1219
        %v2454 = vand.u32 %v2450, 3
        %vm2455 = vcmp.lt.s32.totalorder %v2454, 2
        %vm2456 = vcmp.eq.s32.totalorder %v2454, 0
        %v2457 = vxor.u32 %v2452, 2147483648
        %v2458 = vsel %vm2456, %v2451, %v2457
        %vm2459 = vcmp.eq.s32.totalorder %v2454, 2
        %v2460 = vxor.u32 %v2451, 2147483648
        %v2461 = vsel %vm2459, %v2460, %v2452
        %v2462 = vsel %vm2455, %v2458, %v2461
        %v2463 = vsel %vm2453, nan, %v2462
        %v2464 = vand.u32 2147483647, %v1225
        %vm2465 = vcmp.le.f32.partialorder %v2464, 0.7853982
        %vm2466 = vcmp.lt.s32.totalorder %v1225, 0
        %v2467 = vand.u32 %v1225, 2139095040
        %v2468 = vshrl.u32 %v2467, 23
        %v2469 = vsub.s32 %v2468, 127
        %v2470 = vand.u32 2147483647, %v1225
        %v2471 = vand.u32 %v2470, 8388607
        %v2472 = vor.u32 %v2471, 8388608
        %v2473 = vsub.s32 0, %v2472
        %v2474 = vadd.s32 %v2469, 1
        %vm2475 = vcmp.gt.s32.totalorder %v2474, 0
        %v2476 = vsel %vm2475, %v2474, 0
        %v2477 = vshrl.u32 %v2476, 5
        %v2478 = vand.u32 %v2476, 31
        %v2479 = vsub.s32 32, %v2478
        %v2480 = vshrl.u32 683565275, %v2479
        %v2481 = vshll.u32 683565275, %v2478
        %v2482 = vshrl.u32 2475754826, %v2479
        %v2483 = vor.u32 %v2481, %v2482
        %v2484 = vshll.u32 2475754826, %v2478
        %v2485 = vshrl.u32 2131351028, %v2479
        %v2486 = vor.u32 %v2484, %v2485
        %v2487 = vshll.u32 2131351028, %v2478
        %v2488 = vshrl.u32 2102212464, %v2479
        %v2489 = vor.u32 %v2487, %v2488
        %v2490 = vshll.u32 2102212464, %v2478
        %v2491 = vshrl.u32 920167782, %v2479
        %v2492 = vor.u32 %v2490, %v2491
        %v2493 = vshll.u32 920167782, %v2478
        %v2494 = vshrl.u32 1326507024, %v2479
        %v2495 = vor.u32 %v2493, %v2494
        %vm2496 = vcmp.lt.s32.totalorder %v2477, 1
        %vm2497 = vcmp.lt.s32.totalorder %v2477, 2
        %vm2498 = vcmp.lt.s32.totalorder %v2477, 3
        %vm2499 = vcmp.lt.s32.totalorder %v2477, 4
        %v2500 = vsel %vm2496, %v2480, %v2483
        %v2501 = vsel %vm2499, %v2489, 2102212464
        %v2502 = vsel %vm2498, %v2486, %v2501
        %v2503 = vsel %vm2497, %v2500, %v2502
        %v2504 = vsel %vm2496, %v2483, %v2486
        %v2505 = vsel %vm2499, %v2492, 920167782
        %v2506 = vsel %vm2498, %v2489, %v2505
        %v2507 = vsel %vm2497, %v2504, %v2506
        %v2508 = vsel %vm2496, %v2486, %v2489
        %v2509 = vsel %vm2499, %v2495, 1326507024
        %v2510 = vsel %vm2498, %v2492, %v2509
        %v2511 = vsel %vm2497, %v2508, %v2510
        %v2512 = vshll.u32 %v2472, 8
        %v2513 = vmul.u32.u64.compose %v2512, %v2511
        %v2514 = vextract.low.u32 %v2513
        %v2515 = vextract.high.u32 %v2513
        %v2516 = vmul.u32.u64.compose %v2512, %v2507
        %v2517 = vextract.low.u32 %v2516
        %v2518 = vextract.high.u32 %v2516
        %v2519 = vmul.u32 %v2512, %v2503
        %v2520 = vadd.s32 %v2515, %v2517
        %vm2521 = vc.u32 %v2515, %v2517
        %v2522 = vadd.s32 %v2518, 1
        %v2523 = vsel %vm2521, %v2522, %v2518
        %v2524 = vadd.s32 %v2519, %v2523
        %v2525 = vadd.s32 %v2524, 536870912
        %v2526 = vshrl.u32 %v2525, 30
        %v2527 = vshll.u32 %v2526, 30
        %v2528 = vsub.s32 %v2524, %v2527
        %vm2529 = vcmp.lt.s32.totalorder %v2528, 0
        %v2530 = vsub.s32 0, %v2528
        %v2531 = vsel %vm2529, %v2530, %v2528
        %v2532 = vclz %v2531
        %v2533 = vsub.s32 %v2532, 2
        %vm2534 = vcmp.gt.s32.totalorder 0, %v2533
        %v2535 = vsel %vm2534, 0, %v2533
        %v2536 = vsub.s32 32, %v2535
        %v2537 = vshll.u32 %v2528, %v2535
        %v2538 = vshrl.u32 %v2520, %v2536
        %v2539 = vor.u32 %v2537, %v2538
        %v2540 = vsub.s32 4294967266, %v2535
        %v2541 = vadd.s32 %v2540, 127
        %v2542 = vshll.u32 %v2541, 23
        %v2543 = vor.u32 4788187, %v2542
        %v2544 = vand.u32 2147483647, %v2543
        %v2546 = vcvt.s32.f32 %v2539
        %v2547 = vmul.f32 %v2546, %v2544
        %v2548 = vxor.u32 %v2547, 2147483648
        %v2549 = vsel %vm2466, %v2548, %v2547
        %v2550 = vsub.s32 4, %v2526
        %v2551 = vsel %vm2466, %v2550, %v2526
        %v2552 = vsel %vm2465, %v1225, %v2549
        %v2553 = vsel %vm2465, 0, %v2551
        %v2554 = vcosq.f32.pop %v2552
        %v2555 = vsinq.f32.pop %v2552
        %vm2556 = vweird.f32 %v1225
        %v2557 = vand.u32 %v2553, 3
        %vm2558 = vcmp.lt.s32.totalorder %v2557, 2
        %vm2559 = vcmp.eq.s32.totalorder %v2557, 0
        %v2560 = vxor.u32 %v2555, 2147483648
        %v2561 = vsel %vm2559, %v2554, %v2560
        %vm2562 = vcmp.eq.s32.totalorder %v2557, 2
        %v2563 = vxor.u32 %v2554, 2147483648
        %v2564 = vsel %vm2562, %v2563, %v2555
        %v2565 = vsel %vm2558, %v2561, %v2564
        %v2566 = vsel %vm2556, nan, %v2565
        %2567 = vst [vmem:[%s180] sm:$0xff] %v1330
        %2568 = vst [vmem:[%s180 + $0x8] sm:$0xff] %v1433
        %2569 = vst [vmem:[%s180 + $0x10] sm:$0xff] %v1536
        %2570 = vst [vmem:[%s180 + $0x18] sm:$0xff] %v1639
        %2571 = vst [vmem:[%s180 + $0x20] sm:$0xff] %v1742
        %2572 = vst [vmem:[%s180 + $0x28] sm:$0xff] %v1845
        %2573 = vst [vmem:[%s180 + $0x30] sm:$0xff] %v1948
        %2574 = vst [vmem:[%s180 + $0x38] sm:$0xff] %v2051
        %2575 = vst [vmem:[%s180 + $0x40] sm:$0xff] %v2154
        %2576 = vst [vmem:[%s180 + $0x48] sm:$0xff] %v2257
        %2577 = vst [vmem:[%s180 + $0x50] sm:$0xff] %v2360
        %2578 = vst [vmem:[%s180 + $0x58] sm:$0xff] %v2463
        %2579 = vst [vmem:[%s180 + $0x60] sm:$0xff] %v2566
        %v2580 = vand.u32 2147483647, %v1153
        %vm2581 = vcmp.le.f32.partialorder %v2580, 0.7853982
        %vm2582 = vcmp.lt.s32.totalorder %v1153, 0
        %v2583 = vand.u32 %v1153, 2139095040
        %v2584 = vshrl.u32 %v2583, 23
        %v2585 = vsub.s32 %v2584, 127
        %v2586 = vand.u32 2147483647, %v1153
        %v2587 = vand.u32 %v2586, 8388607
        %v2588 = vor.u32 %v2587, 8388608
        %v2589 = vsub.s32 0, %v2588
        %v2590 = vadd.s32 %v2585, 1
        %vm2591 = vcmp.gt.s32.totalorder %v2590, 0
        %v2592 = vsel %vm2591, %v2590, 0
        %v2593 = vshrl.u32 %v2592, 5
        %v2594 = vand.u32 %v2592, 31
        %v2595 = vsub.s32 32, %v2594
        %v2596 = vshrl.u32 683565275, %v2595
        %v2597 = vshll.u32 683565275, %v2594
        %v2598 = vshrl.u32 2475754826, %v2595
        %v2599 = vor.u32 %v2597, %v2598
        %v2600 = vshll.u32 2475754826, %v2594
        %v2601 = vshrl.u32 2131351028, %v2595
        %v2602 = vor.u32 %v2600, %v2601
        %v2603 = vshll.u32 2131351028, %v2594
        %v2604 = vshrl.u32 2102212464, %v2595
        %v2605 = vor.u32 %v2603, %v2604
        %v2606 = vshll.u32 2102212464, %v2594
        %v2607 = vshrl.u32 920167782, %v2595
        %v2608 = vor.u32 %v2606, %v2607
        %v2609 = vshll.u32 920167782, %v2594
        %v2610 = vshrl.u32 1326507024, %v2595
        %v2611 = vor.u32 %v2609, %v2610
        %vm2612 = vcmp.lt.s32.totalorder %v2593, 1
        %vm2613 = vcmp.lt.s32.totalorder %v2593, 2
        %vm2614 = vcmp.lt.s32.totalorder %v2593, 3
        %vm2615 = vcmp.lt.s32.totalorder %v2593, 4
        %v2616 = vsel %vm2612, %v2596, %v2599
        %v2617 = vsel %vm2615, %v2605, 2102212464
        %v2618 = vsel %vm2614, %v2602, %v2617
        %v2619 = vsel %vm2613, %v2616, %v2618
        %v2620 = vsel %vm2612, %v2599, %v2602
        %v2621 = vsel %vm2615, %v2608, 920167782
        %v2622 = vsel %vm2614, %v2605, %v2621
        %v2623 = vsel %vm2613, %v2620, %v2622
        %v2624 = vsel %vm2612, %v2602, %v2605
        %v2625 = vsel %vm2615, %v2611, 1326507024
        %v2626 = vsel %vm2614, %v2608, %v2625
        %v2627 = vsel %vm2613, %v2624, %v2626
        %v2628 = vshll.u32 %v2588, 8
        %v2629 = vmul.u32.u64.compose %v2628, %v2627
        %v2630 = vextract.low.u32 %v2629
        %v2631 = vextract.high.u32 %v2629
        %v2632 = vmul.u32.u64.compose %v2628, %v2623
        %v2633 = vextract.low.u32 %v2632
        %v2634 = vextract.high.u32 %v2632
        %v2635 = vmul.u32 %v2628, %v2619
        %v2636 = vadd.s32 %v2631, %v2633
        %vm2637 = vc.u32 %v2631, %v2633
        %v2638 = vadd.s32 %v2634, 1
        %v2639 = vsel %vm2637, %v2638, %v2634
        %v2640 = vadd.s32 %v2635, %v2639
        %v2641 = vadd.s32 %v2640, 536870912
        %v2642 = vshrl.u32 %v2641, 30
        %v2643 = vshll.u32 %v2642, 30
        %v2644 = vsub.s32 %v2640, %v2643
        %vm2645 = vcmp.lt.s32.totalorder %v2644, 0
        %v2646 = vsub.s32 0, %v2644
        %v2647 = vsel %vm2645, %v2646, %v2644
        %v2648 = vclz %v2647
        %v2649 = vsub.s32 %v2648, 2
        %vm2650 = vcmp.gt.s32.totalorder 0, %v2649
        %v2651 = vsel %vm2650, 0, %v2649
        %v2652 = vsub.s32 32, %v2651
        %v2653 = vshll.u32 %v2644, %v2651
        %v2654 = vshrl.u32 %v2636, %v2652
        %v2655 = vor.u32 %v2653, %v2654
        %v2656 = vsub.s32 4294967266, %v2651
        %v2657 = vadd.s32 %v2656, 127
        %v2658 = vshll.u32 %v2657, 23
        %v2659 = vor.u32 4788187, %v2658
        %v2660 = vand.u32 2147483647, %v2659
        %v2662 = vcvt.s32.f32 %v2655
        %v2663 = vmul.f32 %v2662, %v2660
        %v2664 = vxor.u32 %v2663, 2147483648
        %v2665 = vsel %vm2582, %v2664, %v2663
        %v2666 = vsub.s32 4, %v2642
        %v2667 = vsel %vm2582, %v2666, %v2642
        %v2668 = vsel %vm2581, %v1153, %v2665
        %v2669 = vsel %vm2581, 0, %v2667
        %v2670 = vcosq.f32.pop %v2668
        %v2671 = vsinq.f32.pop %v2668
        %vm2672 = vweird.f32 %v1153
        %v2673 = vadd.s32 %v2669, 3
        %v2674 = vand.u32 %v2673, 3
        %vm2675 = vcmp.lt.s32.totalorder %v2674, 2
        %vm2676 = vcmp.eq.s32.totalorder %v2674, 0
        %v2677 = vxor.u32 %v2671, 2147483648
        %v2678 = vsel %vm2676, %v2670, %v2677
        %vm2679 = vcmp.eq.s32.totalorder %v2674, 2
        %v2680 = vxor.u32 %v2670, 2147483648
        %v2681 = vsel %vm2679, %v2680, %v2671
        %v2682 = vsel %vm2675, %v2678, %v2681
        %v2683 = vsel %vm2672, nan, %v2682
        %v2684 = vand.u32 2147483647, %v1159
        %vm2685 = vcmp.le.f32.partialorder %v2684, 0.7853982
        %vm2686 = vcmp.lt.s32.totalorder %v1159, 0
        %v2687 = vand.u32 %v1159, 2139095040
        %v2688 = vshrl.u32 %v2687, 23
        %v2689 = vsub.s32 %v2688, 127
        %v2690 = vand.u32 2147483647, %v1159
        %v2691 = vand.u32 %v2690, 8388607
        %v2692 = vor.u32 %v2691, 8388608
        %v2693 = vsub.s32 0, %v2692
        %v2694 = vadd.s32 %v2689, 1
        %vm2695 = vcmp.gt.s32.totalorder %v2694, 0
        %v2696 = vsel %vm2695, %v2694, 0
        %v2697 = vshrl.u32 %v2696, 5
        %v2698 = vand.u32 %v2696, 31
        %v2699 = vsub.s32 32, %v2698
        %v2700 = vshrl.u32 683565275, %v2699
        %v2701 = vshll.u32 683565275, %v2698
        %v2702 = vshrl.u32 2475754826, %v2699
        %v2703 = vor.u32 %v2701, %v2702
        %v2704 = vshll.u32 2475754826, %v2698
        %v2705 = vshrl.u32 2131351028, %v2699
        %v2706 = vor.u32 %v2704, %v2705
        %v2707 = vshll.u32 2131351028, %v2698
        %v2708 = vshrl.u32 2102212464, %v2699
        %v2709 = vor.u32 %v2707, %v2708
        %v2710 = vshll.u32 2102212464, %v2698
        %v2711 = vshrl.u32 920167782, %v2699
        %v2712 = vor.u32 %v2710, %v2711
        %v2713 = vshll.u32 920167782, %v2698
        %v2714 = vshrl.u32 1326507024, %v2699
        %v2715 = vor.u32 %v2713, %v2714
        %vm2716 = vcmp.lt.s32.totalorder %v2697, 1
        %vm2717 = vcmp.lt.s32.totalorder %v2697, 2
        %vm2718 = vcmp.lt.s32.totalorder %v2697, 3
        %vm2719 = vcmp.lt.s32.totalorder %v2697, 4
        %v2720 = vsel %vm2716, %v2700, %v2703
        %v2721 = vsel %vm2719, %v2709, 2102212464
        %v2722 = vsel %vm2718, %v2706, %v2721
        %v2723 = vsel %vm2717, %v2720, %v2722
        %v2724 = vsel %vm2716, %v2703, %v2706
        %v2725 = vsel %vm2719, %v2712, 920167782
        %v2726 = vsel %vm2718, %v2709, %v2725
        %v2727 = vsel %vm2717, %v2724, %v2726
        %v2728 = vsel %vm2716, %v2706, %v2709
        %v2729 = vsel %vm2719, %v2715, 1326507024
        %v2730 = vsel %vm2718, %v2712, %v2729
        %v2731 = vsel %vm2717, %v2728, %v2730
        %v2732 = vshll.u32 %v2692, 8
        %v2733 = vmul.u32.u64.compose %v2732, %v2731
        %v2734 = vextract.low.u32 %v2733
        %v2735 = vextract.high.u32 %v2733
        %v2736 = vmul.u32.u64.compose %v2732, %v2727
        %v2737 = vextract.low.u32 %v2736
        %v2738 = vextract.high.u32 %v2736
        %v2739 = vmul.u32 %v2732, %v2723
        %v2740 = vadd.s32 %v2735, %v2737
        %vm2741 = vc.u32 %v2735, %v2737
        %v2742 = vadd.s32 %v2738, 1
        %v2743 = vsel %vm2741, %v2742, %v2738
        %v2744 = vadd.s32 %v2739, %v2743
        %v2745 = vadd.s32 %v2744, 536870912
        %v2746 = vshrl.u32 %v2745, 30
        %v2747 = vshll.u32 %v2746, 30
        %v2748 = vsub.s32 %v2744, %v2747
        %vm2749 = vcmp.lt.s32.totalorder %v2748, 0
        %v2750 = vsub.s32 0, %v2748
        %v2751 = vsel %vm2749, %v2750, %v2748
        %v2752 = vclz %v2751
        %v2753 = vsub.s32 %v2752, 2
        %vm2754 = vcmp.gt.s32.totalorder 0, %v2753
        %v2755 = vsel %vm2754, 0, %v2753
        %v2756 = vsub.s32 32, %v2755
        %v2757 = vshll.u32 %v2748, %v2755
        %v2758 = vshrl.u32 %v2740, %v2756
        %v2759 = vor.u32 %v2757, %v2758
        %v2760 = vsub.s32 4294967266, %v2755
        %v2761 = vadd.s32 %v2760, 127
        %v2762 = vshll.u32 %v2761, 23
        %v2763 = vor.u32 4788187, %v2762
        %v2764 = vand.u32 2147483647, %v2763
        %v2766 = vcvt.s32.f32 %v2759
        %v2767 = vmul.f32 %v2766, %v2764
        %v2768 = vxor.u32 %v2767, 2147483648
        %v2769 = vsel %vm2686, %v2768, %v2767
        %v2770 = vsub.s32 4, %v2746
        %v2771 = vsel %vm2686, %v2770, %v2746
        %v2772 = vsel %vm2685, %v1159, %v2769
        %v2773 = vsel %vm2685, 0, %v2771
        %v2774 = vcosq.f32.pop %v2772
        %v2775 = vsinq.f32.pop %v2772
        %vm2776 = vweird.f32 %v1159
        %v2777 = vadd.s32 %v2773, 3
        %v2778 = vand.u32 %v2777, 3
        %vm2779 = vcmp.lt.s32.totalorder %v2778, 2
        %vm2780 = vcmp.eq.s32.totalorder %v2778, 0
        %v2781 = vxor.u32 %v2775, 2147483648
        %v2782 = vsel %vm2780, %v2774, %v2781
        %vm2783 = vcmp.eq.s32.totalorder %v2778, 2
        %v2784 = vxor.u32 %v2774, 2147483648
        %v2785 = vsel %vm2783, %v2784, %v2775
        %v2786 = vsel %vm2779, %v2782, %v2785
        %v2787 = vsel %vm2776, nan, %v2786
        %v2788 = vand.u32 2147483647, %v1165
        %vm2789 = vcmp.le.f32.partialorder %v2788, 0.7853982
        %vm2790 = vcmp.lt.s32.totalorder %v1165, 0
        %v2791 = vand.u32 %v1165, 2139095040
        %v2792 = vshrl.u32 %v2791, 23
        %v2793 = vsub.s32 %v2792, 127
        %v2794 = vand.u32 2147483647, %v1165
        %v2795 = vand.u32 %v2794, 8388607
        %v2796 = vor.u32 %v2795, 8388608
        %v2797 = vsub.s32 0, %v2796
        %v2798 = vadd.s32 %v2793, 1
        %vm2799 = vcmp.gt.s32.totalorder %v2798, 0
        %v2800 = vsel %vm2799, %v2798, 0
        %v2801 = vshrl.u32 %v2800, 5
        %v2802 = vand.u32 %v2800, 31
        %v2803 = vsub.s32 32, %v2802
        %v2804 = vshrl.u32 683565275, %v2803
        %v2805 = vshll.u32 683565275, %v2802
        %v2806 = vshrl.u32 2475754826, %v2803
        %v2807 = vor.u32 %v2805, %v2806
        %v2808 = vshll.u32 2475754826, %v2802
        %v2809 = vshrl.u32 2131351028, %v2803
        %v2810 = vor.u32 %v2808, %v2809
        %v2811 = vshll.u32 2131351028, %v2802
        %v2812 = vshrl.u32 2102212464, %v2803
        %v2813 = vor.u32 %v2811, %v2812
        %v2814 = vshll.u32 2102212464, %v2802
        %v2815 = vshrl.u32 920167782, %v2803
        %v2816 = vor.u32 %v2814, %v2815
        %v2817 = vshll.u32 920167782, %v2802
        %v2818 = vshrl.u32 1326507024, %v2803
        %v2819 = vor.u32 %v2817, %v2818
        %vm2820 = vcmp.lt.s32.totalorder %v2801, 1
        %vm2821 = vcmp.lt.s32.totalorder %v2801, 2
        %vm2822 = vcmp.lt.s32.totalorder %v2801, 3
        %vm2823 = vcmp.lt.s32.totalorder %v2801, 4
        %v2824 = vsel %vm2820, %v2804, %v2807
        %v2825 = vsel %vm2823, %v2813, 2102212464
        %v2826 = vsel %vm2822, %v2810, %v2825
        %v2827 = vsel %vm2821, %v2824, %v2826
        %v2828 = vsel %vm2820, %v2807, %v2810
        %v2829 = vsel %vm2823, %v2816, 920167782
        %v2830 = vsel %vm2822, %v2813, %v2829
        %v2831 = vsel %vm2821, %v2828, %v2830
        %v2832 = vsel %vm2820, %v2810, %v2813
        %v2833 = vsel %vm2823, %v2819, 1326507024
        %v2834 = vsel %vm2822, %v2816, %v2833
        %v2835 = vsel %vm2821, %v2832, %v2834
        %v2836 = vshll.u32 %v2796, 8
        %v2837 = vmul.u32.u64.compose %v2836, %v2835
        %v2838 = vextract.low.u32 %v2837
        %v2839 = vextract.high.u32 %v2837
        %v2840 = vmul.u32.u64.compose %v2836, %v2831
        %v2841 = vextract.low.u32 %v2840
        %v2842 = vextract.high.u32 %v2840
        %v2843 = vmul.u32 %v2836, %v2827
        %v2844 = vadd.s32 %v2839, %v2841
        %vm2845 = vc.u32 %v2839, %v2841
        %v2846 = vadd.s32 %v2842, 1
        %v2847 = vsel %vm2845, %v2846, %v2842
        %v2848 = vadd.s32 %v2843, %v2847
        %v2849 = vadd.s32 %v2848, 536870912
        %v2850 = vshrl.u32 %v2849, 30
        %v2851 = vshll.u32 %v2850, 30
        %v2852 = vsub.s32 %v2848, %v2851
        %vm2853 = vcmp.lt.s32.totalorder %v2852, 0
        %v2854 = vsub.s32 0, %v2852
        %v2855 = vsel %vm2853, %v2854, %v2852
        %v2856 = vclz %v2855
        %v2857 = vsub.s32 %v2856, 2
        %vm2858 = vcmp.gt.s32.totalorder 0, %v2857
        %v2859 = vsel %vm2858, 0, %v2857
        %v2860 = vsub.s32 32, %v2859
        %v2861 = vshll.u32 %v2852, %v2859
        %v2862 = vshrl.u32 %v2844, %v2860
        %v2863 = vor.u32 %v2861, %v2862
        %v2864 = vsub.s32 4294967266, %v2859
        %v2865 = vadd.s32 %v2864, 127
        %v2866 = vshll.u32 %v2865, 23
        %v2867 = vor.u32 4788187, %v2866
        %v2868 = vand.u32 2147483647, %v2867
        %v2870 = vcvt.s32.f32 %v2863
        %v2871 = vmul.f32 %v2870, %v2868
        %v2872 = vxor.u32 %v2871, 2147483648
        %v2873 = vsel %vm2790, %v2872, %v2871
        %v2874 = vsub.s32 4, %v2850
        %v2875 = vsel %vm2790, %v2874, %v2850
        %v2876 = vsel %vm2789, %v1165, %v2873
        %v2877 = vsel %vm2789, 0, %v2875
        %v2878 = vcosq.f32.pop %v2876
        %v2879 = vsinq.f32.pop %v2876
        %vm2880 = vweird.f32 %v1165
        %v2881 = vadd.s32 %v2877, 3
        %v2882 = vand.u32 %v2881, 3
        %vm2883 = vcmp.lt.s32.totalorder %v2882, 2
        %vm2884 = vcmp.eq.s32.totalorder %v2882, 0
        %v2885 = vxor.u32 %v2879, 2147483648
        %v2886 = vsel %vm2884, %v2878, %v2885
        %vm2887 = vcmp.eq.s32.totalorder %v2882, 2
        %v2888 = vxor.u32 %v2878, 2147483648
        %v2889 = vsel %vm2887, %v2888, %v2879
        %v2890 = vsel %vm2883, %v2886, %v2889
        %v2891 = vsel %vm2880, nan, %v2890
        %v2892 = vand.u32 2147483647, %v1171
        %vm2893 = vcmp.le.f32.partialorder %v2892, 0.7853982
        %vm2894 = vcmp.lt.s32.totalorder %v1171, 0
        %v2895 = vand.u32 %v1171, 2139095040
        %v2896 = vshrl.u32 %v2895, 23
        %v2897 = vsub.s32 %v2896, 127
        %v2898 = vand.u32 2147483647, %v1171
        %v2899 = vand.u32 %v2898, 8388607
        %v2900 = vor.u32 %v2899, 8388608
        %v2901 = vsub.s32 0, %v2900
        %v2902 = vadd.s32 %v2897, 1
        %vm2903 = vcmp.gt.s32.totalorder %v2902, 0
        %v2904 = vsel %vm2903, %v2902, 0
        %v2905 = vshrl.u32 %v2904, 5
        %v2906 = vand.u32 %v2904, 31
        %v2907 = vsub.s32 32, %v2906
        %v2908 = vshrl.u32 683565275, %v2907
        %v2909 = vshll.u32 683565275, %v2906
        %v2910 = vshrl.u32 2475754826, %v2907
        %v2911 = vor.u32 %v2909, %v2910
        %v2912 = vshll.u32 2475754826, %v2906
        %v2913 = vshrl.u32 2131351028, %v2907
        %v2914 = vor.u32 %v2912, %v2913
        %v2915 = vshll.u32 2131351028, %v2906
        %v2916 = vshrl.u32 2102212464, %v2907
        %v2917 = vor.u32 %v2915, %v2916
        %v2918 = vshll.u32 2102212464, %v2906
        %v2919 = vshrl.u32 920167782, %v2907
        %v2920 = vor.u32 %v2918, %v2919
        %v2921 = vshll.u32 920167782, %v2906
        %v2922 = vshrl.u32 1326507024, %v2907
        %v2923 = vor.u32 %v2921, %v2922
        %vm2924 = vcmp.lt.s32.totalorder %v2905, 1
        %vm2925 = vcmp.lt.s32.totalorder %v2905, 2
        %vm2926 = vcmp.lt.s32.totalorder %v2905, 3
        %vm2927 = vcmp.lt.s32.totalorder %v2905, 4
        %v2928 = vsel %vm2924, %v2908, %v2911
        %v2929 = vsel %vm2927, %v2917, 2102212464
        %v2930 = vsel %vm2926, %v2914, %v2929
        %v2931 = vsel %vm2925, %v2928, %v2930
        %v2932 = vsel %vm2924, %v2911, %v2914
        %v2933 = vsel %vm2927, %v2920, 920167782
        %v2934 = vsel %vm2926, %v2917, %v2933
        %v2935 = vsel %vm2925, %v2932, %v2934
        %v2936 = vsel %vm2924, %v2914, %v2917
        %v2937 = vsel %vm2927, %v2923, 1326507024
        %v2938 = vsel %vm2926, %v2920, %v2937
        %v2939 = vsel %vm2925, %v2936, %v2938
        %v2940 = vshll.u32 %v2900, 8
        %v2941 = vmul.u32.u64.compose %v2940, %v2939
        %v2942 = vextract.low.u32 %v2941
        %v2943 = vextract.high.u32 %v2941
        %v2944 = vmul.u32.u64.compose %v2940, %v2935
        %v2945 = vextract.low.u32 %v2944
        %v2946 = vextract.high.u32 %v2944
        %v2947 = vmul.u32 %v2940, %v2931
        %v2948 = vadd.s32 %v2943, %v2945
        %vm2949 = vc.u32 %v2943, %v2945
        %v2950 = vadd.s32 %v2946, 1
        %v2951 = vsel %vm2949, %v2950, %v2946
        %v2952 = vadd.s32 %v2947, %v2951
        %v2953 = vadd.s32 %v2952, 536870912
        %v2954 = vshrl.u32 %v2953, 30
        %v2955 = vshll.u32 %v2954, 30
        %v2956 = vsub.s32 %v2952, %v2955
        %vm2957 = vcmp.lt.s32.totalorder %v2956, 0
        %v2958 = vsub.s32 0, %v2956
        %v2959 = vsel %vm2957, %v2958, %v2956
        %v2960 = vclz %v2959
        %v2961 = vsub.s32 %v2960, 2
        %vm2962 = vcmp.gt.s32.totalorder 0, %v2961
        %v2963 = vsel %vm2962, 0, %v2961
        %v2964 = vsub.s32 32, %v2963
        %v2965 = vshll.u32 %v2956, %v2963
        %v2966 = vshrl.u32 %v2948, %v2964
        %v2967 = vor.u32 %v2965, %v2966
        %v2968 = vsub.s32 4294967266, %v2963
        %v2969 = vadd.s32 %v2968, 127
        %v2970 = vshll.u32 %v2969, 23
        %v2971 = vor.u32 4788187, %v2970
        %v2972 = vand.u32 2147483647, %v2971
        %v2974 = vcvt.s32.f32 %v2967
        %v2975 = vmul.f32 %v2974, %v2972
        %v2976 = vxor.u32 %v2975, 2147483648
        %v2977 = vsel %vm2894, %v2976, %v2975
        %v2978 = vsub.s32 4, %v2954
        %v2979 = vsel %vm2894, %v2978, %v2954
        %v2980 = vsel %vm2893, %v1171, %v2977
        %v2981 = vsel %vm2893, 0, %v2979
        %v2982 = vcosq.f32.pop %v2980
        %v2983 = vsinq.f32.pop %v2980
        %vm2984 = vweird.f32 %v1171
        %v2985 = vadd.s32 %v2981, 3
        %v2986 = vand.u32 %v2985, 3
        %vm2987 = vcmp.lt.s32.totalorder %v2986, 2
        %vm2988 = vcmp.eq.s32.totalorder %v2986, 0
        %v2989 = vxor.u32 %v2983, 2147483648
        %v2990 = vsel %vm2988, %v2982, %v2989
        %vm2991 = vcmp.eq.s32.totalorder %v2986, 2
        %v2992 = vxor.u32 %v2982, 2147483648
        %v2993 = vsel %vm2991, %v2992, %v2983
        %v2994 = vsel %vm2987, %v2990, %v2993
        %v2995 = vsel %vm2984, nan, %v2994
        %v2996 = vand.u32 2147483647, %v1177
        %vm2997 = vcmp.le.f32.partialorder %v2996, 0.7853982
        %vm2998 = vcmp.lt.s32.totalorder %v1177, 0
        %v2999 = vand.u32 %v1177, 2139095040
        %v3000 = vshrl.u32 %v2999, 23
        %v3001 = vsub.s32 %v3000, 127
        %v3002 = vand.u32 2147483647, %v1177
        %v3003 = vand.u32 %v3002, 8388607
        %v3004 = vor.u32 %v3003, 8388608
        %v3005 = vsub.s32 0, %v3004
        %v3006 = vadd.s32 %v3001, 1
        %vm3007 = vcmp.gt.s32.totalorder %v3006, 0
        %v3008 = vsel %vm3007, %v3006, 0
        %v3009 = vshrl.u32 %v3008, 5
        %v3010 = vand.u32 %v3008, 31
        %v3011 = vsub.s32 32, %v3010
        %v3012 = vshrl.u32 683565275, %v3011
        %v3013 = vshll.u32 683565275, %v3010
        %v3014 = vshrl.u32 2475754826, %v3011
        %v3015 = vor.u32 %v3013, %v3014
        %v3016 = vshll.u32 2475754826, %v3010
        %v3017 = vshrl.u32 2131351028, %v3011
        %v3018 = vor.u32 %v3016, %v3017
        %v3019 = vshll.u32 2131351028, %v3010
        %v3020 = vshrl.u32 2102212464, %v3011
        %v3021 = vor.u32 %v3019, %v3020
        %v3022 = vshll.u32 2102212464, %v3010
        %v3023 = vshrl.u32 920167782, %v3011
        %v3024 = vor.u32 %v3022, %v3023
        %v3025 = vshll.u32 920167782, %v3010
        %v3026 = vshrl.u32 1326507024, %v3011
        %v3027 = vor.u32 %v3025, %v3026
        %vm3028 = vcmp.lt.s32.totalorder %v3009, 1
        %vm3029 = vcmp.lt.s32.totalorder %v3009, 2
        %vm3030 = vcmp.lt.s32.totalorder %v3009, 3
        %vm3031 = vcmp.lt.s32.totalorder %v3009, 4
        %v3032 = vsel %vm3028, %v3012, %v3015
        %v3033 = vsel %vm3031, %v3021, 2102212464
        %v3034 = vsel %vm3030, %v3018, %v3033
        %v3035 = vsel %vm3029, %v3032, %v3034
        %v3036 = vsel %vm3028, %v3015, %v3018
        %v3037 = vsel %vm3031, %v3024, 920167782
        %v3038 = vsel %vm3030, %v3021, %v3037
        %v3039 = vsel %vm3029, %v3036, %v3038
        %v3040 = vsel %vm3028, %v3018, %v3021
        %v3041 = vsel %vm3031, %v3027, 1326507024
        %v3042 = vsel %vm3030, %v3024, %v3041
        %v3043 = vsel %vm3029, %v3040, %v3042
        %v3044 = vshll.u32 %v3004, 8
        %v3045 = vmul.u32.u64.compose %v3044, %v3043
        %v3046 = vextract.low.u32 %v3045
        %v3047 = vextract.high.u32 %v3045
        %v3048 = vmul.u32.u64.compose %v3044, %v3039
        %v3049 = vextract.low.u32 %v3048
        %v3050 = vextract.high.u32 %v3048
        %v3051 = vmul.u32 %v3044, %v3035
        %v3052 = vadd.s32 %v3047, %v3049
        %vm3053 = vc.u32 %v3047, %v3049
        %v3054 = vadd.s32 %v3050, 1
        %v3055 = vsel %vm3053, %v3054, %v3050
        %v3056 = vadd.s32 %v3051, %v3055
        %v3057 = vadd.s32 %v3056, 536870912
        %v3058 = vshrl.u32 %v3057, 30
        %v3059 = vshll.u32 %v3058, 30
        %v3060 = vsub.s32 %v3056, %v3059
        %vm3061 = vcmp.lt.s32.totalorder %v3060, 0
        %v3062 = vsub.s32 0, %v3060
        %v3063 = vsel %vm3061, %v3062, %v3060
        %v3064 = vclz %v3063
        %v3065 = vsub.s32 %v3064, 2
        %vm3066 = vcmp.gt.s32.totalorder 0, %v3065
        %v3067 = vsel %vm3066, 0, %v3065
        %v3068 = vsub.s32 32, %v3067
        %v3069 = vshll.u32 %v3060, %v3067
        %v3070 = vshrl.u32 %v3052, %v3068
        %v3071 = vor.u32 %v3069, %v3070
        %v3072 = vsub.s32 4294967266, %v3067
        %v3073 = vadd.s32 %v3072, 127
        %v3074 = vshll.u32 %v3073, 23
        %v3075 = vor.u32 4788187, %v3074
        %v3076 = vand.u32 2147483647, %v3075
        %v3078 = vcvt.s32.f32 %v3071
        %v3079 = vmul.f32 %v3078, %v3076
        %v3080 = vxor.u32 %v3079, 2147483648
        %v3081 = vsel %vm2998, %v3080, %v3079
        %v3082 = vsub.s32 4, %v3058
        %v3083 = vsel %vm2998, %v3082, %v3058
        %v3084 = vsel %vm2997, %v1177, %v3081
        %v3085 = vsel %vm2997, 0, %v3083
        %v3086 = vcosq.f32.pop %v3084
        %v3087 = vsinq.f32.pop %v3084
        %vm3088 = vweird.f32 %v1177
        %v3089 = vadd.s32 %v3085, 3
        %v3090 = vand.u32 %v3089, 3
        %vm3091 = vcmp.lt.s32.totalorder %v3090, 2
        %vm3092 = vcmp.eq.s32.totalorder %v3090, 0
        %v3093 = vxor.u32 %v3087, 2147483648
        %v3094 = vsel %vm3092, %v3086, %v3093
        %vm3095 = vcmp.eq.s32.totalorder %v3090, 2
        %v3096 = vxor.u32 %v3086, 2147483648
        %v3097 = vsel %vm3095, %v3096, %v3087
        %v3098 = vsel %vm3091, %v3094, %v3097
        %v3099 = vsel %vm3088, nan, %v3098
        %v3100 = vand.u32 2147483647, %v1183
        %vm3101 = vcmp.le.f32.partialorder %v3100, 0.7853982
        %vm3102 = vcmp.lt.s32.totalorder %v1183, 0
        %v3103 = vand.u32 %v1183, 2139095040
        %v3104 = vshrl.u32 %v3103, 23
        %v3105 = vsub.s32 %v3104, 127
        %v3106 = vand.u32 2147483647, %v1183
        %v3107 = vand.u32 %v3106, 8388607
        %v3108 = vor.u32 %v3107, 8388608
        %v3109 = vsub.s32 0, %v3108
        %v3110 = vadd.s32 %v3105, 1
        %vm3111 = vcmp.gt.s32.totalorder %v3110, 0
        %v3112 = vsel %vm3111, %v3110, 0
        %v3113 = vshrl.u32 %v3112, 5
        %v3114 = vand.u32 %v3112, 31
        %v3115 = vsub.s32 32, %v3114
        %v3116 = vshrl.u32 683565275, %v3115
        %v3117 = vshll.u32 683565275, %v3114
        %v3118 = vshrl.u32 2475754826, %v3115
        %v3119 = vor.u32 %v3117, %v3118
        %v3120 = vshll.u32 2475754826, %v3114
        %v3121 = vshrl.u32 2131351028, %v3115
        %v3122 = vor.u32 %v3120, %v3121
        %v3123 = vshll.u32 2131351028, %v3114
        %v3124 = vshrl.u32 2102212464, %v3115
        %v3125 = vor.u32 %v3123, %v3124
        %v3126 = vshll.u32 2102212464, %v3114
        %v3127 = vshrl.u32 920167782, %v3115
        %v3128 = vor.u32 %v3126, %v3127
        %v3129 = vshll.u32 920167782, %v3114
        %v3130 = vshrl.u32 1326507024, %v3115
        %v3131 = vor.u32 %v3129, %v3130
        %vm3132 = vcmp.lt.s32.totalorder %v3113, 1
        %vm3133 = vcmp.lt.s32.totalorder %v3113, 2
        %vm3134 = vcmp.lt.s32.totalorder %v3113, 3
        %vm3135 = vcmp.lt.s32.totalorder %v3113, 4
        %v3136 = vsel %vm3132, %v3116, %v3119
        %v3137 = vsel %vm3135, %v3125, 2102212464
        %v3138 = vsel %vm3134, %v3122, %v3137
        %v3139 = vsel %vm3133, %v3136, %v3138
        %v3140 = vsel %vm3132, %v3119, %v3122
        %v3141 = vsel %vm3135, %v3128, 920167782
        %v3142 = vsel %vm3134, %v3125, %v3141
        %v3143 = vsel %vm3133, %v3140, %v3142
        %v3144 = vsel %vm3132, %v3122, %v3125
        %v3145 = vsel %vm3135, %v3131, 1326507024
        %v3146 = vsel %vm3134, %v3128, %v3145
        %v3147 = vsel %vm3133, %v3144, %v3146
        %v3148 = vshll.u32 %v3108, 8
        %v3149 = vmul.u32.u64.compose %v3148, %v3147
        %v3150 = vextract.low.u32 %v3149
        %v3151 = vextract.high.u32 %v3149
        %v3152 = vmul.u32.u64.compose %v3148, %v3143
        %v3153 = vextract.low.u32 %v3152
        %v3154 = vextract.high.u32 %v3152
        %v3155 = vmul.u32 %v3148, %v3139
        %v3156 = vadd.s32 %v3151, %v3153
        %vm3157 = vc.u32 %v3151, %v3153
        %v3158 = vadd.s32 %v3154, 1
        %v3159 = vsel %vm3157, %v3158, %v3154
        %v3160 = vadd.s32 %v3155, %v3159
        %v3161 = vadd.s32 %v3160, 536870912
        %v3162 = vshrl.u32 %v3161, 30
        %v3163 = vshll.u32 %v3162, 30
        %v3164 = vsub.s32 %v3160, %v3163
        %vm3165 = vcmp.lt.s32.totalorder %v3164, 0
        %v3166 = vsub.s32 0, %v3164
        %v3167 = vsel %vm3165, %v3166, %v3164
        %v3168 = vclz %v3167
        %v3169 = vsub.s32 %v3168, 2
        %vm3170 = vcmp.gt.s32.totalorder 0, %v3169
        %v3171 = vsel %vm3170, 0, %v3169
        %v3172 = vsub.s32 32, %v3171
        %v3173 = vshll.u32 %v3164, %v3171
        %v3174 = vshrl.u32 %v3156, %v3172
        %v3175 = vor.u32 %v3173, %v3174
        %v3176 = vsub.s32 4294967266, %v3171
        %v3177 = vadd.s32 %v3176, 127
        %v3178 = vshll.u32 %v3177, 23
        %v3179 = vor.u32 4788187, %v3178
        %v3180 = vand.u32 2147483647, %v3179
        %v3182 = vcvt.s32.f32 %v3175
        %v3183 = vmul.f32 %v3182, %v3180
        %v3184 = vxor.u32 %v3183, 2147483648
        %v3185 = vsel %vm3102, %v3184, %v3183
        %v3186 = vsub.s32 4, %v3162
        %v3187 = vsel %vm3102, %v3186, %v3162
        %v3188 = vsel %vm3101, %v1183, %v3185
        %v3189 = vsel %vm3101, 0, %v3187
        %v3190 = vcosq.f32.pop %v3188
        %v3191 = vsinq.f32.pop %v3188
        %vm3192 = vweird.f32 %v1183
        %v3193 = vadd.s32 %v3189, 3
        %v3194 = vand.u32 %v3193, 3
        %vm3195 = vcmp.lt.s32.totalorder %v3194, 2
        %vm3196 = vcmp.eq.s32.totalorder %v3194, 0
        %v3197 = vxor.u32 %v3191, 2147483648
        %v3198 = vsel %vm3196, %v3190, %v3197
        %vm3199 = vcmp.eq.s32.totalorder %v3194, 2
        %v3200 = vxor.u32 %v3190, 2147483648
        %v3201 = vsel %vm3199, %v3200, %v3191
        %v3202 = vsel %vm3195, %v3198, %v3201
        %v3203 = vsel %vm3192, nan, %v3202
        %v3204 = vand.u32 2147483647, %v1189
        %vm3205 = vcmp.le.f32.partialorder %v3204, 0.7853982
        %vm3206 = vcmp.lt.s32.totalorder %v1189, 0
        %v3207 = vand.u32 %v1189, 2139095040
        %v3208 = vshrl.u32 %v3207, 23
        %v3209 = vsub.s32 %v3208, 127
        %v3210 = vand.u32 2147483647, %v1189
        %v3211 = vand.u32 %v3210, 8388607
        %v3212 = vor.u32 %v3211, 8388608
        %v3213 = vsub.s32 0, %v3212
        %v3214 = vadd.s32 %v3209, 1
        %vm3215 = vcmp.gt.s32.totalorder %v3214, 0
        %v3216 = vsel %vm3215, %v3214, 0
        %v3217 = vshrl.u32 %v3216, 5
        %v3218 = vand.u32 %v3216, 31
        %v3219 = vsub.s32 32, %v3218
        %v3220 = vshrl.u32 683565275, %v3219
        %v3221 = vshll.u32 683565275, %v3218
        %v3222 = vshrl.u32 2475754826, %v3219
        %v3223 = vor.u32 %v3221, %v3222
        %v3224 = vshll.u32 2475754826, %v3218
        %v3225 = vshrl.u32 2131351028, %v3219
        %v3226 = vor.u32 %v3224, %v3225
        %v3227 = vshll.u32 2131351028, %v3218
        %v3228 = vshrl.u32 2102212464, %v3219
        %v3229 = vor.u32 %v3227, %v3228
        %v3230 = vshll.u32 2102212464, %v3218
        %v3231 = vshrl.u32 920167782, %v3219
        %v3232 = vor.u32 %v3230, %v3231
        %v3233 = vshll.u32 920167782, %v3218
        %v3234 = vshrl.u32 1326507024, %v3219
        %v3235 = vor.u32 %v3233, %v3234
        %vm3236 = vcmp.lt.s32.totalorder %v3217, 1
        %vm3237 = vcmp.lt.s32.totalorder %v3217, 2
        %vm3238 = vcmp.lt.s32.totalorder %v3217, 3
        %vm3239 = vcmp.lt.s32.totalorder %v3217, 4
        %v3240 = vsel %vm3236, %v3220, %v3223
        %v3241 = vsel %vm3239, %v3229, 2102212464
        %v3242 = vsel %vm3238, %v3226, %v3241
        %v3243 = vsel %vm3237, %v3240, %v3242
        %v3244 = vsel %vm3236, %v3223, %v3226
        %v3245 = vsel %vm3239, %v3232, 920167782
        %v3246 = vsel %vm3238, %v3229, %v3245
        %v3247 = vsel %vm3237, %v3244, %v3246
        %v3248 = vsel %vm3236, %v3226, %v3229
        %v3249 = vsel %vm3239, %v3235, 1326507024
        %v3250 = vsel %vm3238, %v3232, %v3249
        %v3251 = vsel %vm3237, %v3248, %v3250
        %v3252 = vshll.u32 %v3212, 8
        %v3253 = vmul.u32.u64.compose %v3252, %v3251
        %v3254 = vextract.low.u32 %v3253
        %v3255 = vextract.high.u32 %v3253
        %v3256 = vmul.u32.u64.compose %v3252, %v3247
        %v3257 = vextract.low.u32 %v3256
        %v3258 = vextract.high.u32 %v3256
        %v3259 = vmul.u32 %v3252, %v3243
        %v3260 = vadd.s32 %v3255, %v3257
        %vm3261 = vc.u32 %v3255, %v3257
        %v3262 = vadd.s32 %v3258, 1
        %v3263 = vsel %vm3261, %v3262, %v3258
        %v3264 = vadd.s32 %v3259, %v3263
        %v3265 = vadd.s32 %v3264, 536870912
        %v3266 = vshrl.u32 %v3265, 30
        %v3267 = vshll.u32 %v3266, 30
        %v3268 = vsub.s32 %v3264, %v3267
        %vm3269 = vcmp.lt.s32.totalorder %v3268, 0
        %v3270 = vsub.s32 0, %v3268
        %v3271 = vsel %vm3269, %v3270, %v3268
        %v3272 = vclz %v3271
        %v3273 = vsub.s32 %v3272, 2
        %vm3274 = vcmp.gt.s32.totalorder 0, %v3273
        %v3275 = vsel %vm3274, 0, %v3273
        %v3276 = vsub.s32 32, %v3275
        %v3277 = vshll.u32 %v3268, %v3275
        %v3278 = vshrl.u32 %v3260, %v3276
        %v3279 = vor.u32 %v3277, %v3278
        %v3280 = vsub.s32 4294967266, %v3275
        %v3281 = vadd.s32 %v3280, 127
        %v3282 = vshll.u32 %v3281, 23
        %v3283 = vor.u32 4788187, %v3282
        %v3284 = vand.u32 2147483647, %v3283
        %v3286 = vcvt.s32.f32 %v3279
        %v3287 = vmul.f32 %v3286, %v3284
        %v3288 = vxor.u32 %v3287, 2147483648
        %v3289 = vsel %vm3206, %v3288, %v3287
        %v3290 = vsub.s32 4, %v3266
        %v3291 = vsel %vm3206, %v3290, %v3266
        %v3292 = vsel %vm3205, %v1189, %v3289
        %v3293 = vsel %vm3205, 0, %v3291
        %v3294 = vcosq.f32.pop %v3292
        %v3295 = vsinq.f32.pop %v3292
        %vm3296 = vweird.f32 %v1189
        %v3297 = vadd.s32 %v3293, 3
        %v3298 = vand.u32 %v3297, 3
        %vm3299 = vcmp.lt.s32.totalorder %v3298, 2
        %vm3300 = vcmp.eq.s32.totalorder %v3298, 0
        %v3301 = vxor.u32 %v3295, 2147483648
        %v3302 = vsel %vm3300, %v3294, %v3301
        %vm3303 = vcmp.eq.s32.totalorder %v3298, 2
        %v3304 = vxor.u32 %v3294, 2147483648
        %v3305 = vsel %vm3303, %v3304, %v3295
        %v3306 = vsel %vm3299, %v3302, %v3305
        %v3307 = vsel %vm3296, nan, %v3306
        %v3308 = vand.u32 2147483647, %v1195
        %vm3309 = vcmp.le.f32.partialorder %v3308, 0.7853982
        %vm3310 = vcmp.lt.s32.totalorder %v1195, 0
        %v3311 = vand.u32 %v1195, 2139095040
        %v3312 = vshrl.u32 %v3311, 23
        %v3313 = vsub.s32 %v3312, 127
        %v3314 = vand.u32 2147483647, %v1195
        %v3315 = vand.u32 %v3314, 8388607
        %v3316 = vor.u32 %v3315, 8388608
        %v3317 = vsub.s32 0, %v3316
        %v3318 = vadd.s32 %v3313, 1
        %vm3319 = vcmp.gt.s32.totalorder %v3318, 0
        %v3320 = vsel %vm3319, %v3318, 0
        %v3321 = vshrl.u32 %v3320, 5
        %v3322 = vand.u32 %v3320, 31
        %v3323 = vsub.s32 32, %v3322
        %v3324 = vshrl.u32 683565275, %v3323
        %v3325 = vshll.u32 683565275, %v3322
        %v3326 = vshrl.u32 2475754826, %v3323
        %v3327 = vor.u32 %v3325, %v3326
        %v3328 = vshll.u32 2475754826, %v3322
        %v3329 = vshrl.u32 2131351028, %v3323
        %v3330 = vor.u32 %v3328, %v3329
        %v3331 = vshll.u32 2131351028, %v3322
        %v3332 = vshrl.u32 2102212464, %v3323
        %v3333 = vor.u32 %v3331, %v3332
        %v3334 = vshll.u32 2102212464, %v3322
        %v3335 = vshrl.u32 920167782, %v3323
        %v3336 = vor.u32 %v3334, %v3335
        %v3337 = vshll.u32 920167782, %v3322
        %v3338 = vshrl.u32 1326507024, %v3323
        %v3339 = vor.u32 %v3337, %v3338
        %vm3340 = vcmp.lt.s32.totalorder %v3321, 1
        %vm3341 = vcmp.lt.s32.totalorder %v3321, 2
        %vm3342 = vcmp.lt.s32.totalorder %v3321, 3
        %vm3343 = vcmp.lt.s32.totalorder %v3321, 4
        %v3344 = vsel %vm3340, %v3324, %v3327
        %v3345 = vsel %vm3343, %v3333, 2102212464
        %v3346 = vsel %vm3342, %v3330, %v3345
        %v3347 = vsel %vm3341, %v3344, %v3346
        %v3348 = vsel %vm3340, %v3327, %v3330
        %v3349 = vsel %vm3343, %v3336, 920167782
        %v3350 = vsel %vm3342, %v3333, %v3349
        %v3351 = vsel %vm3341, %v3348, %v3350
        %v3352 = vsel %vm3340, %v3330, %v3333
        %v3353 = vsel %vm3343, %v3339, 1326507024
        %v3354 = vsel %vm3342, %v3336, %v3353
        %v3355 = vsel %vm3341, %v3352, %v3354
        %v3356 = vshll.u32 %v3316, 8
        %v3357 = vmul.u32.u64.compose %v3356, %v3355
        %v3358 = vextract.low.u32 %v3357
        %v3359 = vextract.high.u32 %v3357
        %v3360 = vmul.u32.u64.compose %v3356, %v3351
        %v3361 = vextract.low.u32 %v3360
        %v3362 = vextract.high.u32 %v3360
        %v3363 = vmul.u32 %v3356, %v3347
        %v3364 = vadd.s32 %v3359, %v3361
        %vm3365 = vc.u32 %v3359, %v3361
        %v3366 = vadd.s32 %v3362, 1
        %v3367 = vsel %vm3365, %v3366, %v3362
        %v3368 = vadd.s32 %v3363, %v3367
        %v3369 = vadd.s32 %v3368, 536870912
        %v3370 = vshrl.u32 %v3369, 30
        %v3371 = vshll.u32 %v3370, 30
        %v3372 = vsub.s32 %v3368, %v3371
        %vm3373 = vcmp.lt.s32.totalorder %v3372, 0
        %v3374 = vsub.s32 0, %v3372
        %v3375 = vsel %vm3373, %v3374, %v3372
        %v3376 = vclz %v3375
        %v3377 = vsub.s32 %v3376, 2
        %vm3378 = vcmp.gt.s32.totalorder 0, %v3377
        %v3379 = vsel %vm3378, 0, %v3377
        %v3380 = vsub.s32 32, %v3379
        %v3381 = vshll.u32 %v3372, %v3379
        %v3382 = vshrl.u32 %v3364, %v3380
        %v3383 = vor.u32 %v3381, %v3382
        %v3384 = vsub.s32 4294967266, %v3379
        %v3385 = vadd.s32 %v3384, 127
        %v3386 = vshll.u32 %v3385, 23
        %v3387 = vor.u32 4788187, %v3386
        %v3388 = vand.u32 2147483647, %v3387
        %v3390 = vcvt.s32.f32 %v3383
        %v3391 = vmul.f32 %v3390, %v3388
        %v3392 = vxor.u32 %v3391, 2147483648
        %v3393 = vsel %vm3310, %v3392, %v3391
        %v3394 = vsub.s32 4, %v3370
        %v3395 = vsel %vm3310, %v3394, %v3370
        %v3396 = vsel %vm3309, %v1195, %v3393
        %v3397 = vsel %vm3309, 0, %v3395
        %v3398 = vcosq.f32.pop %v3396
        %v3399 = vsinq.f32.pop %v3396
        %vm3400 = vweird.f32 %v1195
        %v3401 = vadd.s32 %v3397, 3
        %v3402 = vand.u32 %v3401, 3
        %vm3403 = vcmp.lt.s32.totalorder %v3402, 2
        %vm3404 = vcmp.eq.s32.totalorder %v3402, 0
        %v3405 = vxor.u32 %v3399, 2147483648
        %v3406 = vsel %vm3404, %v3398, %v3405
        %vm3407 = vcmp.eq.s32.totalorder %v3402, 2
        %v3408 = vxor.u32 %v3398, 2147483648
        %v3409 = vsel %vm3407, %v3408, %v3399
        %v3410 = vsel %vm3403, %v3406, %v3409
        %v3411 = vsel %vm3400, nan, %v3410
        %v3412 = vand.u32 2147483647, %v1201
        %vm3413 = vcmp.le.f32.partialorder %v3412, 0.7853982
        %vm3414 = vcmp.lt.s32.totalorder %v1201, 0
        %v3415 = vand.u32 %v1201, 2139095040
        %v3416 = vshrl.u32 %v3415, 23
        %v3417 = vsub.s32 %v3416, 127
        %v3418 = vand.u32 2147483647, %v1201
        %v3419 = vand.u32 %v3418, 8388607
        %v3420 = vor.u32 %v3419, 8388608
        %v3421 = vsub.s32 0, %v3420
        %v3422 = vadd.s32 %v3417, 1
        %vm3423 = vcmp.gt.s32.totalorder %v3422, 0
        %v3424 = vsel %vm3423, %v3422, 0
        %v3425 = vshrl.u32 %v3424, 5
        %v3426 = vand.u32 %v3424, 31
        %v3427 = vsub.s32 32, %v3426
        %v3428 = vshrl.u32 683565275, %v3427
        %v3429 = vshll.u32 683565275, %v3426
        %v3430 = vshrl.u32 2475754826, %v3427
        %v3431 = vor.u32 %v3429, %v3430
        %v3432 = vshll.u32 2475754826, %v3426
        %v3433 = vshrl.u32 2131351028, %v3427
        %v3434 = vor.u32 %v3432, %v3433
        %v3435 = vshll.u32 2131351028, %v3426
        %v3436 = vshrl.u32 2102212464, %v3427
        %v3437 = vor.u32 %v3435, %v3436
        %v3438 = vshll.u32 2102212464, %v3426
        %v3439 = vshrl.u32 920167782, %v3427
        %v3440 = vor.u32 %v3438, %v3439
        %v3441 = vshll.u32 920167782, %v3426
        %v3442 = vshrl.u32 1326507024, %v3427
        %v3443 = vor.u32 %v3441, %v3442
        %vm3444 = vcmp.lt.s32.totalorder %v3425, 1
        %vm3445 = vcmp.lt.s32.totalorder %v3425, 2
        %vm3446 = vcmp.lt.s32.totalorder %v3425, 3
        %vm3447 = vcmp.lt.s32.totalorder %v3425, 4
        %v3448 = vsel %vm3444, %v3428, %v3431
        %v3449 = vsel %vm3447, %v3437, 2102212464
        %v3450 = vsel %vm3446, %v3434, %v3449
        %v3451 = vsel %vm3445, %v3448, %v3450
        %v3452 = vsel %vm3444, %v3431, %v3434
        %v3453 = vsel %vm3447, %v3440, 920167782
        %v3454 = vsel %vm3446, %v3437, %v3453
        %v3455 = vsel %vm3445, %v3452, %v3454
        %v3456 = vsel %vm3444, %v3434, %v3437
        %v3457 = vsel %vm3447, %v3443, 1326507024
        %v3458 = vsel %vm3446, %v3440, %v3457
        %v3459 = vsel %vm3445, %v3456, %v3458
        %v3460 = vshll.u32 %v3420, 8
        %v3461 = vmul.u32.u64.compose %v3460, %v3459
        %v3462 = vextract.low.u32 %v3461
        %v3463 = vextract.high.u32 %v3461
        %v3464 = vmul.u32.u64.compose %v3460, %v3455
        %v3465 = vextract.low.u32 %v3464
        %v3466 = vextract.high.u32 %v3464
        %v3467 = vmul.u32 %v3460, %v3451
        %v3468 = vadd.s32 %v3463, %v3465
        %vm3469 = vc.u32 %v3463, %v3465
        %v3470 = vadd.s32 %v3466, 1
        %v3471 = vsel %vm3469, %v3470, %v3466
        %v3472 = vadd.s32 %v3467, %v3471
        %v3473 = vadd.s32 %v3472, 536870912
        %v3474 = vshrl.u32 %v3473, 30
        %v3475 = vshll.u32 %v3474, 30
        %v3476 = vsub.s32 %v3472, %v3475
        %vm3477 = vcmp.lt.s32.totalorder %v3476, 0
        %v3478 = vsub.s32 0, %v3476
        %v3479 = vsel %vm3477, %v3478, %v3476
        %v3480 = vclz %v3479
        %v3481 = vsub.s32 %v3480, 2
        %vm3482 = vcmp.gt.s32.totalorder 0, %v3481
        %v3483 = vsel %vm3482, 0, %v3481
        %v3484 = vsub.s32 32, %v3483
        %v3485 = vshll.u32 %v3476, %v3483
        %v3486 = vshrl.u32 %v3468, %v3484
        %v3487 = vor.u32 %v3485, %v3486
        %v3488 = vsub.s32 4294967266, %v3483
        %v3489 = vadd.s32 %v3488, 127
        %v3490 = vshll.u32 %v3489, 23
        %v3491 = vor.u32 4788187, %v3490
        %v3492 = vand.u32 2147483647, %v3491
        %v3494 = vcvt.s32.f32 %v3487
        %v3495 = vmul.f32 %v3494, %v3492
        %v3496 = vxor.u32 %v3495, 2147483648
        %v3497 = vsel %vm3414, %v3496, %v3495
        %v3498 = vsub.s32 4, %v3474
        %v3499 = vsel %vm3414, %v3498, %v3474
        %v3500 = vsel %vm3413, %v1201, %v3497
        %v3501 = vsel %vm3413, 0, %v3499
        %v3502 = vcosq.f32.pop %v3500
        %v3503 = vsinq.f32.pop %v3500
        %vm3504 = vweird.f32 %v1201
        %v3505 = vadd.s32 %v3501, 3
        %v3506 = vand.u32 %v3505, 3
        %vm3507 = vcmp.lt.s32.totalorder %v3506, 2
        %vm3508 = vcmp.eq.s32.totalorder %v3506, 0
        %v3509 = vxor.u32 %v3503, 2147483648
        %v3510 = vsel %vm3508, %v3502, %v3509
        %vm3511 = vcmp.eq.s32.totalorder %v3506, 2
        %v3512 = vxor.u32 %v3502, 2147483648
        %v3513 = vsel %vm3511, %v3512, %v3503
        %v3514 = vsel %vm3507, %v3510, %v3513
        %v3515 = vsel %vm3504, nan, %v3514
        %v3516 = vand.u32 2147483647, %v1207
        %vm3517 = vcmp.le.f32.partialorder %v3516, 0.7853982
        %vm3518 = vcmp.lt.s32.totalorder %v1207, 0
        %v3519 = vand.u32 %v1207, 2139095040
        %v3520 = vshrl.u32 %v3519, 23
        %v3521 = vsub.s32 %v3520, 127
        %v3522 = vand.u32 2147483647, %v1207
        %v3523 = vand.u32 %v3522, 8388607
        %v3524 = vor.u32 %v3523, 8388608
        %v3525 = vsub.s32 0, %v3524
        %v3526 = vadd.s32 %v3521, 1
        %vm3527 = vcmp.gt.s32.totalorder %v3526, 0
        %v3528 = vsel %vm3527, %v3526, 0
        %v3529 = vshrl.u32 %v3528, 5
        %v3530 = vand.u32 %v3528, 31
        %v3531 = vsub.s32 32, %v3530
        %v3532 = vshrl.u32 683565275, %v3531
        %v3533 = vshll.u32 683565275, %v3530
        %v3534 = vshrl.u32 2475754826, %v3531
        %v3535 = vor.u32 %v3533, %v3534
        %v3536 = vshll.u32 2475754826, %v3530
        %v3537 = vshrl.u32 2131351028, %v3531
        %v3538 = vor.u32 %v3536, %v3537
        %v3539 = vshll.u32 2131351028, %v3530
        %v3540 = vshrl.u32 2102212464, %v3531
        %v3541 = vor.u32 %v3539, %v3540
        %v3542 = vshll.u32 2102212464, %v3530
        %v3543 = vshrl.u32 920167782, %v3531
        %v3544 = vor.u32 %v3542, %v3543
        %v3545 = vshll.u32 920167782, %v3530
        %v3546 = vshrl.u32 1326507024, %v3531
        %v3547 = vor.u32 %v3545, %v3546
        %vm3548 = vcmp.lt.s32.totalorder %v3529, 1
        %vm3549 = vcmp.lt.s32.totalorder %v3529, 2
        %vm3550 = vcmp.lt.s32.totalorder %v3529, 3
        %vm3551 = vcmp.lt.s32.totalorder %v3529, 4
        %v3552 = vsel %vm3548, %v3532, %v3535
        %v3553 = vsel %vm3551, %v3541, 2102212464
        %v3554 = vsel %vm3550, %v3538, %v3553
        %v3555 = vsel %vm3549, %v3552, %v3554
        %v3556 = vsel %vm3548, %v3535, %v3538
        %v3557 = vsel %vm3551, %v3544, 920167782
        %v3558 = vsel %vm3550, %v3541, %v3557
        %v3559 = vsel %vm3549, %v3556, %v3558
        %v3560 = vsel %vm3548, %v3538, %v3541
        %v3561 = vsel %vm3551, %v3547, 1326507024
        %v3562 = vsel %vm3550, %v3544, %v3561
        %v3563 = vsel %vm3549, %v3560, %v3562
        %v3564 = vshll.u32 %v3524, 8
        %v3565 = vmul.u32.u64.compose %v3564, %v3563
        %v3566 = vextract.low.u32 %v3565
        %v3567 = vextract.high.u32 %v3565
        %v3568 = vmul.u32.u64.compose %v3564, %v3559
        %v3569 = vextract.low.u32 %v3568
        %v3570 = vextract.high.u32 %v3568
        %v3571 = vmul.u32 %v3564, %v3555
        %v3572 = vadd.s32 %v3567, %v3569
        %vm3573 = vc.u32 %v3567, %v3569
        %v3574 = vadd.s32 %v3570, 1
        %v3575 = vsel %vm3573, %v3574, %v3570
        %v3576 = vadd.s32 %v3571, %v3575
        %v3577 = vadd.s32 %v3576, 536870912
        %v3578 = vshrl.u32 %v3577, 30
        %v3579 = vshll.u32 %v3578, 30
        %v3580 = vsub.s32 %v3576, %v3579
        %vm3581 = vcmp.lt.s32.totalorder %v3580, 0
        %v3582 = vsub.s32 0, %v3580
        %v3583 = vsel %vm3581, %v3582, %v3580
        %v3584 = vclz %v3583
        %v3585 = vsub.s32 %v3584, 2
        %vm3586 = vcmp.gt.s32.totalorder 0, %v3585
        %v3587 = vsel %vm3586, 0, %v3585
        %v3588 = vsub.s32 32, %v3587
        %v3589 = vshll.u32 %v3580, %v3587
        %v3590 = vshrl.u32 %v3572, %v3588
        %v3591 = vor.u32 %v3589, %v3590
        %v3592 = vsub.s32 4294967266, %v3587
        %v3593 = vadd.s32 %v3592, 127
        %v3594 = vshll.u32 %v3593, 23
        %v3595 = vor.u32 4788187, %v3594
        %v3596 = vand.u32 2147483647, %v3595
        %v3598 = vcvt.s32.f32 %v3591
        %v3599 = vmul.f32 %v3598, %v3596
        %v3600 = vxor.u32 %v3599, 2147483648
        %v3601 = vsel %vm3518, %v3600, %v3599
        %v3602 = vsub.s32 4, %v3578
        %v3603 = vsel %vm3518, %v3602, %v3578
        %v3604 = vsel %vm3517, %v1207, %v3601
        %v3605 = vsel %vm3517, 0, %v3603
        %v3606 = vcosq.f32.pop %v3604
        %v3607 = vsinq.f32.pop %v3604
        %vm3608 = vweird.f32 %v1207
        %v3609 = vadd.s32 %v3605, 3
        %v3610 = vand.u32 %v3609, 3
        %vm3611 = vcmp.lt.s32.totalorder %v3610, 2
        %vm3612 = vcmp.eq.s32.totalorder %v3610, 0
        %v3613 = vxor.u32 %v3607, 2147483648
        %v3614 = vsel %vm3612, %v3606, %v3613
        %vm3615 = vcmp.eq.s32.totalorder %v3610, 2
        %v3616 = vxor.u32 %v3606, 2147483648
        %v3617 = vsel %vm3615, %v3616, %v3607
        %v3618 = vsel %vm3611, %v3614, %v3617
        %v3619 = vsel %vm3608, nan, %v3618
        %v3620 = vand.u32 2147483647, %v1213
        %vm3621 = vcmp.le.f32.partialorder %v3620, 0.7853982
        %vm3622 = vcmp.lt.s32.totalorder %v1213, 0
        %v3623 = vand.u32 %v1213, 2139095040
        %v3624 = vshrl.u32 %v3623, 23
        %v3625 = vsub.s32 %v3624, 127
        %v3626 = vand.u32 2147483647, %v1213
        %v3627 = vand.u32 %v3626, 8388607
        %v3628 = vor.u32 %v3627, 8388608
        %v3629 = vsub.s32 0, %v3628
        %v3630 = vadd.s32 %v3625, 1
        %vm3631 = vcmp.gt.s32.totalorder %v3630, 0
        %v3632 = vsel %vm3631, %v3630, 0
        %v3633 = vshrl.u32 %v3632, 5
        %v3634 = vand.u32 %v3632, 31
        %v3635 = vsub.s32 32, %v3634
        %v3636 = vshrl.u32 683565275, %v3635
        %v3637 = vshll.u32 683565275, %v3634
        %v3638 = vshrl.u32 2475754826, %v3635
        %v3639 = vor.u32 %v3637, %v3638
        %v3640 = vshll.u32 2475754826, %v3634
        %v3641 = vshrl.u32 2131351028, %v3635
        %v3642 = vor.u32 %v3640, %v3641
        %v3643 = vshll.u32 2131351028, %v3634
        %v3644 = vshrl.u32 2102212464, %v3635
        %v3645 = vor.u32 %v3643, %v3644
        %v3646 = vshll.u32 2102212464, %v3634
        %v3647 = vshrl.u32 920167782, %v3635
        %v3648 = vor.u32 %v3646, %v3647
        %v3649 = vshll.u32 920167782, %v3634
        %v3650 = vshrl.u32 1326507024, %v3635
        %v3651 = vor.u32 %v3649, %v3650
        %vm3652 = vcmp.lt.s32.totalorder %v3633, 1
        %vm3653 = vcmp.lt.s32.totalorder %v3633, 2
        %vm3654 = vcmp.lt.s32.totalorder %v3633, 3
        %vm3655 = vcmp.lt.s32.totalorder %v3633, 4
        %v3656 = vsel %vm3652, %v3636, %v3639
        %v3657 = vsel %vm3655, %v3645, 2102212464
        %v3658 = vsel %vm3654, %v3642, %v3657
        %v3659 = vsel %vm3653, %v3656, %v3658
        %v3660 = vsel %vm3652, %v3639, %v3642
        %v3661 = vsel %vm3655, %v3648, 920167782
        %v3662 = vsel %vm3654, %v3645, %v3661
        %v3663 = vsel %vm3653, %v3660, %v3662
        %v3664 = vsel %vm3652, %v3642, %v3645
        %v3665 = vsel %vm3655, %v3651, 1326507024
        %v3666 = vsel %vm3654, %v3648, %v3665
        %v3667 = vsel %vm3653, %v3664, %v3666
        %v3668 = vshll.u32 %v3628, 8
        %v3669 = vmul.u32.u64.compose %v3668, %v3667
        %v3670 = vextract.low.u32 %v3669
        %v3671 = vextract.high.u32 %v3669
        %v3672 = vmul.u32.u64.compose %v3668, %v3663
        %v3673 = vextract.low.u32 %v3672
        %v3674 = vextract.high.u32 %v3672
        %v3675 = vmul.u32 %v3668, %v3659
        %v3676 = vadd.s32 %v3671, %v3673
        %vm3677 = vc.u32 %v3671, %v3673
        %v3678 = vadd.s32 %v3674, 1
        %v3679 = vsel %vm3677, %v3678, %v3674
        %v3680 = vadd.s32 %v3675, %v3679
        %v3681 = vadd.s32 %v3680, 536870912
        %v3682 = vshrl.u32 %v3681, 30
        %v3683 = vshll.u32 %v3682, 30
        %v3684 = vsub.s32 %v3680, %v3683
        %vm3685 = vcmp.lt.s32.totalorder %v3684, 0
        %v3686 = vsub.s32 0, %v3684
        %v3687 = vsel %vm3685, %v3686, %v3684
        %v3688 = vclz %v3687
        %v3689 = vsub.s32 %v3688, 2
        %vm3690 = vcmp.gt.s32.totalorder 0, %v3689
        %v3691 = vsel %vm3690, 0, %v3689
        %v3692 = vsub.s32 32, %v3691
        %v3693 = vshll.u32 %v3684, %v3691
        %v3694 = vshrl.u32 %v3676, %v3692
        %v3695 = vor.u32 %v3693, %v3694
        %v3696 = vsub.s32 4294967266, %v3691
        %v3697 = vadd.s32 %v3696, 127
        %v3698 = vshll.u32 %v3697, 23
        %v3699 = vor.u32 4788187, %v3698
        %v3700 = vand.u32 2147483647, %v3699
        %v3702 = vcvt.s32.f32 %v3695
        %v3703 = vmul.f32 %v3702, %v3700
        %v3704 = vxor.u32 %v3703, 2147483648
        %v3705 = vsel %vm3622, %v3704, %v3703
        %v3706 = vsub.s32 4, %v3682
        %v3707 = vsel %vm3622, %v3706, %v3682
        %v3708 = vsel %vm3621, %v1213, %v3705
        %v3709 = vsel %vm3621, 0, %v3707
        %v3710 = vcosq.f32.pop %v3708
        %v3711 = vsinq.f32.pop %v3708
        %vm3712 = vweird.f32 %v1213
        %v3713 = vadd.s32 %v3709, 3
        %v3714 = vand.u32 %v3713, 3
        %vm3715 = vcmp.lt.s32.totalorder %v3714, 2
        %vm3716 = vcmp.eq.s32.totalorder %v3714, 0
        %v3717 = vxor.u32 %v3711, 2147483648
        %v3718 = vsel %vm3716, %v3710, %v3717
        %vm3719 = vcmp.eq.s32.totalorder %v3714, 2
        %v3720 = vxor.u32 %v3710, 2147483648
        %v3721 = vsel %vm3719, %v3720, %v3711
        %v3722 = vsel %vm3715, %v3718, %v3721
        %v3723 = vsel %vm3712, nan, %v3722
        %v3724 = vand.u32 2147483647, %v1219
        %vm3725 = vcmp.le.f32.partialorder %v3724, 0.7853982
        %vm3726 = vcmp.lt.s32.totalorder %v1219, 0
        %v3727 = vand.u32 %v1219, 2139095040
        %v3728 = vshrl.u32 %v3727, 23
        %v3729 = vsub.s32 %v3728, 127
        %v3730 = vand.u32 2147483647, %v1219
        %v3731 = vand.u32 %v3730, 8388607
        %v3732 = vor.u32 %v3731, 8388608
        %v3733 = vsub.s32 0, %v3732
        %v3734 = vadd.s32 %v3729, 1
        %vm3735 = vcmp.gt.s32.totalorder %v3734, 0
        %v3736 = vsel %vm3735, %v3734, 0
        %v3737 = vshrl.u32 %v3736, 5
        %v3738 = vand.u32 %v3736, 31
        %v3739 = vsub.s32 32, %v3738
        %v3740 = vshrl.u32 683565275, %v3739
        %v3741 = vshll.u32 683565275, %v3738
        %v3742 = vshrl.u32 2475754826, %v3739
        %v3743 = vor.u32 %v3741, %v3742
        %v3744 = vshll.u32 2475754826, %v3738
        %v3745 = vshrl.u32 2131351028, %v3739
        %v3746 = vor.u32 %v3744, %v3745
        %v3747 = vshll.u32 2131351028, %v3738
        %v3748 = vshrl.u32 2102212464, %v3739
        %v3749 = vor.u32 %v3747, %v3748
        %v3750 = vshll.u32 2102212464, %v3738
        %v3751 = vshrl.u32 920167782, %v3739
        %v3752 = vor.u32 %v3750, %v3751
        %v3753 = vshll.u32 920167782, %v3738
        %v3754 = vshrl.u32 1326507024, %v3739
        %v3755 = vor.u32 %v3753, %v3754
        %vm3756 = vcmp.lt.s32.totalorder %v3737, 1
        %vm3757 = vcmp.lt.s32.totalorder %v3737, 2
        %vm3758 = vcmp.lt.s32.totalorder %v3737, 3
        %vm3759 = vcmp.lt.s32.totalorder %v3737, 4
        %v3760 = vsel %vm3756, %v3740, %v3743
        %v3761 = vsel %vm3759, %v3749, 2102212464
        %v3762 = vsel %vm3758, %v3746, %v3761
        %v3763 = vsel %vm3757, %v3760, %v3762
        %v3764 = vsel %vm3756, %v3743, %v3746
        %v3765 = vsel %vm3759, %v3752, 920167782
        %v3766 = vsel %vm3758, %v3749, %v3765
        %v3767 = vsel %vm3757, %v3764, %v3766
        %v3768 = vsel %vm3756, %v3746, %v3749
        %v3769 = vsel %vm3759, %v3755, 1326507024
        %v3770 = vsel %vm3758, %v3752, %v3769
        %v3771 = vsel %vm3757, %v3768, %v3770
        %v3772 = vshll.u32 %v3732, 8
        %v3773 = vmul.u32.u64.compose %v3772, %v3771
        %v3774 = vextract.low.u32 %v3773
        %v3775 = vextract.high.u32 %v3773
        %v3776 = vmul.u32.u64.compose %v3772, %v3767
        %v3777 = vextract.low.u32 %v3776
        %v3778 = vextract.high.u32 %v3776
        %v3779 = vmul.u32 %v3772, %v3763
        %v3780 = vadd.s32 %v3775, %v3777
        %vm3781 = vc.u32 %v3775, %v3777
        %v3782 = vadd.s32 %v3778, 1
        %v3783 = vsel %vm3781, %v3782, %v3778
        %v3784 = vadd.s32 %v3779, %v3783
        %v3785 = vadd.s32 %v3784, 536870912
        %v3786 = vshrl.u32 %v3785, 30
        %v3787 = vshll.u32 %v3786, 30
        %v3788 = vsub.s32 %v3784, %v3787
        %vm3789 = vcmp.lt.s32.totalorder %v3788, 0
        %v3790 = vsub.s32 0, %v3788
        %v3791 = vsel %vm3789, %v3790, %v3788
        %v3792 = vclz %v3791
        %v3793 = vsub.s32 %v3792, 2
        %vm3794 = vcmp.gt.s32.totalorder 0, %v3793
        %v3795 = vsel %vm3794, 0, %v3793
        %v3796 = vsub.s32 32, %v3795
        %v3797 = vshll.u32 %v3788, %v3795
        %v3798 = vshrl.u32 %v3780, %v3796
        %v3799 = vor.u32 %v3797, %v3798
        %v3800 = vsub.s32 4294967266, %v3795
        %v3801 = vadd.s32 %v3800, 127
        %v3802 = vshll.u32 %v3801, 23
        %v3803 = vor.u32 4788187, %v3802
        %v3804 = vand.u32 2147483647, %v3803
        %v3806 = vcvt.s32.f32 %v3799
        %v3807 = vmul.f32 %v3806, %v3804
        %v3808 = vxor.u32 %v3807, 2147483648
        %v3809 = vsel %vm3726, %v3808, %v3807
        %v3810 = vsub.s32 4, %v3786
        %v3811 = vsel %vm3726, %v3810, %v3786
        %v3812 = vsel %vm3725, %v1219, %v3809
        %v3813 = vsel %vm3725, 0, %v3811
        %v3814 = vcosq.f32.pop %v3812
        %v3815 = vsinq.f32.pop %v3812
        %vm3816 = vweird.f32 %v1219
        %v3817 = vadd.s32 %v3813, 3
        %v3818 = vand.u32 %v3817, 3
        %vm3819 = vcmp.lt.s32.totalorder %v3818, 2
        %vm3820 = vcmp.eq.s32.totalorder %v3818, 0
        %v3821 = vxor.u32 %v3815, 2147483648
        %v3822 = vsel %vm3820, %v3814, %v3821
        %vm3823 = vcmp.eq.s32.totalorder %v3818, 2
        %v3824 = vxor.u32 %v3814, 2147483648
        %v3825 = vsel %vm3823, %v3824, %v3815
        %v3826 = vsel %vm3819, %v3822, %v3825
        %v3827 = vsel %vm3816, nan, %v3826
        %v3828 = vand.u32 2147483647, %v1225
        %vm3829 = vcmp.le.f32.partialorder %v3828, 0.7853982
        %vm3830 = vcmp.lt.s32.totalorder %v1225, 0
        %v3831 = vand.u32 %v1225, 2139095040
        %v3832 = vshrl.u32 %v3831, 23
        %v3833 = vsub.s32 %v3832, 127
        %v3834 = vand.u32 2147483647, %v1225
        %v3835 = vand.u32 %v3834, 8388607
        %v3836 = vor.u32 %v3835, 8388608
        %v3837 = vsub.s32 0, %v3836
        %v3838 = vadd.s32 %v3833, 1
        %vm3839 = vcmp.gt.s32.totalorder %v3838, 0
        %v3840 = vsel %vm3839, %v3838, 0
        %v3841 = vshrl.u32 %v3840, 5
        %v3842 = vand.u32 %v3840, 31
        %v3843 = vsub.s32 32, %v3842
        %v3844 = vshrl.u32 683565275, %v3843
        %v3845 = vshll.u32 683565275, %v3842
        %v3846 = vshrl.u32 2475754826, %v3843
        %v3847 = vor.u32 %v3845, %v3846
        %v3848 = vshll.u32 2475754826, %v3842
        %v3849 = vshrl.u32 2131351028, %v3843
        %v3850 = vor.u32 %v3848, %v3849
        %v3851 = vshll.u32 2131351028, %v3842
        %v3852 = vshrl.u32 2102212464, %v3843
        %v3853 = vor.u32 %v3851, %v3852
        %v3854 = vshll.u32 2102212464, %v3842
        %v3855 = vshrl.u32 920167782, %v3843
        %v3856 = vor.u32 %v3854, %v3855
        %v3857 = vshll.u32 920167782, %v3842
        %v3858 = vshrl.u32 1326507024, %v3843
        %v3859 = vor.u32 %v3857, %v3858
        %vm3860 = vcmp.lt.s32.totalorder %v3841, 1
        %vm3861 = vcmp.lt.s32.totalorder %v3841, 2
        %vm3862 = vcmp.lt.s32.totalorder %v3841, 3
        %vm3863 = vcmp.lt.s32.totalorder %v3841, 4
        %v3864 = vsel %vm3860, %v3844, %v3847
        %v3865 = vsel %vm3863, %v3853, 2102212464
        %v3866 = vsel %vm3862, %v3850, %v3865
        %v3867 = vsel %vm3861, %v3864, %v3866
        %v3868 = vsel %vm3860, %v3847, %v3850
        %v3869 = vsel %vm3863, %v3856, 920167782
        %v3870 = vsel %vm3862, %v3853, %v3869
        %v3871 = vsel %vm3861, %v3868, %v3870
        %v3872 = vsel %vm3860, %v3850, %v3853
        %v3873 = vsel %vm3863, %v3859, 1326507024
        %v3874 = vsel %vm3862, %v3856, %v3873
        %v3875 = vsel %vm3861, %v3872, %v3874
        %v3876 = vshll.u32 %v3836, 8
        %v3877 = vmul.u32.u64.compose %v3876, %v3875
        %v3878 = vextract.low.u32 %v3877
        %v3879 = vextract.high.u32 %v3877
        %v3880 = vmul.u32.u64.compose %v3876, %v3871
        %v3881 = vextract.low.u32 %v3880
        %v3882 = vextract.high.u32 %v3880
        %v3883 = vmul.u32 %v3876, %v3867
        %v3884 = vadd.s32 %v3879, %v3881
        %vm3885 = vc.u32 %v3879, %v3881
        %v3886 = vadd.s32 %v3882, 1
        %v3887 = vsel %vm3885, %v3886, %v3882
        %v3888 = vadd.s32 %v3883, %v3887
        %v3889 = vadd.s32 %v3888, 536870912
        %v3890 = vshrl.u32 %v3889, 30
        %v3891 = vshll.u32 %v3890, 30
        %v3892 = vsub.s32 %v3888, %v3891
        %vm3893 = vcmp.lt.s32.totalorder %v3892, 0
        %v3894 = vsub.s32 0, %v3892
        %v3895 = vsel %vm3893, %v3894, %v3892
        %v3896 = vclz %v3895
        %v3897 = vsub.s32 %v3896, 2
        %vm3898 = vcmp.gt.s32.totalorder 0, %v3897
        %v3899 = vsel %vm3898, 0, %v3897
        %v3900 = vsub.s32 32, %v3899
        %v3901 = vshll.u32 %v3892, %v3899
        %v3902 = vshrl.u32 %v3884, %v3900
        %v3903 = vor.u32 %v3901, %v3902
        %v3904 = vsub.s32 4294967266, %v3899
        %v3905 = vadd.s32 %v3904, 127
        %v3906 = vshll.u32 %v3905, 23
        %v3907 = vor.u32 4788187, %v3906
        %v3908 = vand.u32 2147483647, %v3907
        %v3910 = vcvt.s32.f32 %v3903
        %v3911 = vmul.f32 %v3910, %v3908
        %v3912 = vxor.u32 %v3911, 2147483648
        %v3913 = vsel %vm3830, %v3912, %v3911
        %v3914 = vsub.s32 4, %v3890
        %v3915 = vsel %vm3830, %v3914, %v3890
        %v3916 = vsel %vm3829, %v1225, %v3913
        %v3917 = vsel %vm3829, 0, %v3915
        %v3918 = vcosq.f32.pop %v3916
        %v3919 = vsinq.f32.pop %v3916
        %vm3920 = vweird.f32 %v1225
        %v3921 = vadd.s32 %v3917, 3
        %v3922 = vand.u32 %v3921, 3
        %vm3923 = vcmp.lt.s32.totalorder %v3922, 2
        %vm3924 = vcmp.eq.s32.totalorder %v3922, 0
        %v3925 = vxor.u32 %v3919, 2147483648
        %v3926 = vsel %vm3924, %v3918, %v3925
        %vm3927 = vcmp.eq.s32.totalorder %v3922, 2
        %v3928 = vxor.u32 %v3918, 2147483648
        %v3929 = vsel %vm3927, %v3928, %v3919
        %v3930 = vsel %vm3923, %v3926, %v3929
        %v3931 = vsel %vm3920, nan, %v3930
        %3932 = vst [vmem:[%s187] sm:$0xff] %v2683
        %3933 = vst [vmem:[%s187 + $0x8] sm:$0xff] %v2787
        %3934 = vst [vmem:[%s187 + $0x10] sm:$0xff] %v2891
        %3935 = vst [vmem:[%s187 + $0x18] sm:$0xff] %v2995
        %3936 = vst [vmem:[%s187 + $0x20] sm:$0xff] %v3099
        %3937 = vst [vmem:[%s187 + $0x28] sm:$0xff] %v3203
        %3938 = vst [vmem:[%s187 + $0x30] sm:$0xff] %v3307
        %3939 = vst [vmem:[%s187 + $0x38] sm:$0xff] %v3411
        %3940 = vst [vmem:[%s187 + $0x40] sm:$0xff] %v3515
        %3941 = vst [vmem:[%s187 + $0x48] sm:$0xff] %v3619
        %3942 = vst [vmem:[%s187 + $0x50] sm:$0xff] %v3723
        %3943 = vst [vmem:[%s187 + $0x58] sm:$0xff] %v3827
        %3944 = vst [vmem:[%s187 + $0x60] sm:$0xff] %v3931
        %s3945 = sand.u32 %s76, 1
        %s3946 = scalar_lea.sflag [#allocation3], %s3945
        %s3947 = sand.u32 %s76, 1
        %s3948 = smul.addr %s3947, 104
        %s3949 = scalar_lea.vmem [#allocation2], %s3948
        %s3950 = sand.u32 %s102, 1
        %s3951 = scalar_lea.sflag [#allocation5], %s3950
        %s3952 = sand.u32 %s102, 1
        %s3953 = smul.addr %s3952, 104
        %s3954 = scalar_lea.vmem [#allocation4], %s3953
        // Predicated region
        $region29: #{tpu_custom_call.1} parent=27 // pred_check
          %p3955 = pneg %p86
        $region30: #{tpu_custom_call.1} parent=27 // pred_check_branch
          %3957 = sbr.rel (%p3955) target = $region32
        $region31: #{tpu_custom_call.1} parent=27 // pred_region
          %s3958 = smul.u32 13, %s21
          %s3959 = ssub.s32 25, %s3958
          %p3960 = scmp.lt.s32.totalorder %s3959, 13
          %s3961 = scalar_select %p3960, %s3959, 13
          %s3962 = smul.u32 128, %s3961
          %s3964 = ssub.s32 1664, %s3962
          %3965 = vsyncadd %s3946, %s3964
          %p3966 = scmp.ne.s32.totalorder 0, %s3962
          %s3967 = smul.addr %s3958, 128
          %s3968 = scalar_lea.hbm %s2, %s3967
          %s3969 = smul.u32 8, %s3961
          %s3970 = sshll.u32 %s3949, 4
          %s3971 = int_to_ptr.vmem [resolvable:$true] %s3970
          %s3972 = sshll.u32 %s3969, 4
          %3976 = dma.vmem_to_hbm [thread:$0]  (%p3966), %s3971, %s3972, %s3968, %s3946, 128, 128, 8
        $region32: #{tpu_custom_call.1} parent=27 // pred_fallthru
          _
        // Predicated region
        $region33: #{tpu_custom_call.1} parent=27 // pred_check
          %p3977 = pneg %p112
        $region34: #{tpu_custom_call.1} parent=27 // pred_check_branch
          %3979 = sbr.rel (%p3977) target = $region36
        $region35: #{tpu_custom_call.1} parent=27 // pred_region
          %s3980 = smul.u32 13, %s21
          %s3981 = ssub.s32 25, %s3980
          %p3982 = scmp.lt.s32.totalorder %s3981, 13
          %s3983 = scalar_select %p3982, %s3981, 13
          %s3984 = smul.u32 128, %s3983
          %s3986 = ssub.s32 1664, %s3984
          %3987 = vsyncadd %s3951, %s3986
          %p3988 = scmp.ne.s32.totalorder 0, %s3984
          %s3989 = smul.addr %s3980, 128
          %s3990 = scalar_lea.hbm %s3, %s3989
          %s3991 = smul.u32 8, %s3983
          %s3992 = sshll.u32 %s3954, 4
          %s3993 = int_to_ptr.vmem [resolvable:$true] %s3992
          %s3994 = sshll.u32 %s3991, 4
          %3998 = dma.vmem_to_hbm [thread:$0]  (%p3988), %s3993, %s3994, %s3990, %s3951, 128, 128, 8
        $region36: #{tpu_custom_call.1} parent=27 // pred_fallthru
          _
      $region28: #{tpu_custom_call.1} parent=5 // pred_fallthru
        _
      %p3999 = scmp.le.s32.totalorder 2, %s16
      // Predicated region
      $region37: #{tpu_custom_call.1} parent=5 // pred_check
        %p4000 = pneg %p3999
      $region38: #{tpu_custom_call.1} parent=5 // pred_check_branch
        %4002 = sbr.rel (%p4000) target = $region40
      $region39: #{tpu_custom_call.1} parent=5 // pred_region
        %s4003 = ssub.s32 %s16, 2
        // Predicated region
        $region41: #{tpu_custom_call.1} parent=39 // pred_check
          %p4004 = pneg %p92
        $region42: #{tpu_custom_call.1} parent=39 // pred_check_branch
          %4006 = sbr.rel (%p4004) target = $region44
        $region43: #{tpu_custom_call.1} parent=39 // pred_region
          %s4007 = sand.u32 %s77, 1
          %s4008 = scalar_lea.sflag [#allocation3], %s4007
          %s4009 = sand.u32 %s77, 1
          %s4010 = smul.addr %s4009, 104
          %s4011 = scalar_lea.vmem [#allocation2], %s4010
          %4012 = dma.done %s4008, 1664
        $region44: #{tpu_custom_call.1} parent=39 // pred_fallthru
          _
        // Predicated region
        $region45: #{tpu_custom_call.1} parent=39 // pred_check
          %p4013 = pneg %p118
        $region46: #{tpu_custom_call.1} parent=39 // pred_check_branch
          %4015 = sbr.rel (%p4013) target = $region48
        $region47: #{tpu_custom_call.1} parent=39 // pred_region
          %s4016 = sand.u32 %s103, 1
          %s4017 = scalar_lea.sflag [#allocation5], %s4016
          %s4018 = sand.u32 %s103, 1
          %s4019 = smul.addr %s4018, 104
          %s4020 = scalar_lea.vmem [#allocation4], %s4019
          %4021 = dma.done %s4017, 1664
        $region48: #{tpu_custom_call.1} parent=39 // pred_fallthru
          _
      $region40: #{tpu_custom_call.1} parent=5 // pred_fallthru
        _
    $region6: #{tpu_custom_call.1} parent=1 // loop_footer
      %s20 = sadd.s32 1, %s16
    $region7: #{tpu_custom_call.1} parent=1 // loop_footer_branch
      %15 = sbr.rel target = $region3
    $region8: #{tpu_custom_call.1} parent=1 // loop_exit
      _
    %4022 = vsyncpa [#allocation3], 1
    %s4023 = scalar_lea.sflag [#allocation3], 1
    %4024 = vsyncpa %s4023, 1
    %4025 = vsyncpa [#allocation5], 1
    %s4026 = scalar_lea.sflag [#allocation5], 1
    %4027 = vsyncpa %s4026, 1

</llo_original>
